<compile_context>
chip_gen: v5e
topology: v5e:2x2
jax: 0.10.0
libtpu: 0.0.40
codegen_flags: <defaults>
</compile_context>

<pallas_src>
import math

import jax
import jax.numpy as jnp
from jax.experimental import pallas as pl
from jax.experimental.pallas import tpu as pltpu

# ----------------------------- config (small synthetic Vocos) -----------------------------
SR = 8000
N_FFT = 64
HOP = 16
N_FREQ = N_FFT // 2 + 1          # 33 rfft bins
FREQ_PAD = 64                    # freq axis zero-padded to 64 lanes (no in-kernel lane slicing)
N_MELS = 32                      # backbone input_channels
DIM = 64                         # backbone dim
INTER = 128                      # backbone intermediate_dim
N_LAYERS = 2                     # ConvNeXt blocks
KSZ = 7                          # conv kernel size
KPAD = KSZ // 2                  # 3
N_SLABS = N_FFT // HOP           # 4 hop-slabs per frame (overlap-add)
PAD_SLABS = (N_FFT // 2) // HOP  # 2 (center-pad trim in hop-slab units)
EPS_LN = 1e-6
CLIP_VAL = 1e-7                  # safe_log clip value


def _round_up(x, m):
    return ((x + m - 1) // m) * m


# ----------------------------- BlockSpec helpers -----------------------------
def _bspec(*tail):
    """Per-batch block: squeezed leading batch dim, full trailing dims."""
    zeros = (0,) * len(tail)
    return pl.BlockSpec((None,) + tuple(tail), lambda b, z=zeros: (b,) + z)


def _cspec(*shape):
    """Batch-shared weight/constant block: the whole array, VMEM-resident across the grid."""
    zeros = (0,) * len(shape)
    return pl.BlockSpec(tuple(shape), lambda b, z=zeros: z)


# ----------------------------- in-kernel math helpers -----------------------------
def _erf(x):
    # A&S 7.1.26 rational approximation (|err| < 1.5e-7): exact-erf GELU (PyTorch nn.GELU default)
    a1, a2, a3, a4, a5 = 0.254829592, -0.284496736, 1.421413741, -1.453152027, 1.061405429
    p = 0.3275911
    s = jnp.where(x < 0.0, -1.0, 1.0)
    ax = jnp.abs(x)
    t = 1.0 / (1.0 + p * ax)
    poly = ((((a5 * t + a4) * t + a3) * t + a2) * t + a1) * t
    return s * (1.0 - poly * jnp.exp(-ax * ax))


def _gelu(x):
    return 0.5 * x * (1.0 + _erf(x * (1.0 / math.sqrt(2.0))))


def _layernorm(x, g, b):
    mu = jnp.mean(x, axis=-1, keepdims=True)
    xc = x - mu
    var = jnp.mean(xc * xc, axis=-1, keepdims=True)       # biased variance (PyTorch LayerNorm)
    return xc * jax.lax.rsqrt(var + EPS_LN) * g + b


# ----------------------------- the fused Vocos kernel -----------------------------
def _vocos_kernel(*refs):
    it = iter(refs)
    xslab = next(it)                                       # (NS_TOTAL, HOP) hop-slabs of padded audio
    cos_b = next(it); sin_b = next(it); mel_fb = next(it)
    emb_w = next(it); emb_b = next(it); ng = next(it); nb = next(it)
    blocks = [tuple(next(it) for _ in range(9)) for _ in range(N_LAYERS)]
    fg = next(it); fbeta = next(it)
    wm = next(it); bm = next(it); wp = next(it); bp = next(it)
    icos = next(it); isin = next(it); ienv = next(it)
    out_ref = next(it)                                     # (L-1, HOP) waveform in hop-slabs
    melpad = next(it)                                      # (Lp, N_MELS) scratch: zero-padded log-mel
    state = next(it)                                       # (Lp, DIM)   scratch: padded channel-last state
    ola = next(it)                                         # (L+N_SLABS-1, HOP) scratch: overlap-add acc

    L = ienv.shape[0] + 1                                  # number of STFT frames
    Lp = state.shape[0]
    tail = Lp - KPAD - L                                   # trailing pad rows (>= KPAD)

    # ---- stage 1: |STFT| (windowed DFT as matmul) -> mel -> safe_log --------------------
    # Frame l spans hop slabs l..l+3; build (L, N_FFT) frames from 4 shifted slab views.
    frames = jnp.concatenate([xslab[pl.ds(j, L), :] for j in range(N_SLABS)], axis=-1)
    re = jnp.dot(frames, cos_b[...], preferred_element_type=jnp.float32)
    im = jnp.dot(frames, sin_b[...], preferred_element_type=jnp.float32)
    mag = jnp.sqrt(re * re + im * im)                      # |STFT| (power=1); padded bins are 0
    mel = jnp.dot(mag, mel_fb[...], preferred_element_type=jnp.float32)
    logmel = jnp.log(jnp.maximum(mel, CLIP_VAL))           # safe_log

    # ---- stage 2: embed Conv1d(n_mels, dim, k=7) as ONE K=7*N_MELS matmul + LayerNorm ----
    melpad[pl.ds(0, KPAD), :] = jnp.zeros((KPAD, N_MELS), jnp.float32)
    melpad[pl.ds(KPAD + L, tail), :] = jnp.zeros((tail, N_MELS), jnp.float32)
    melpad[pl.ds(KPAD, L), :] = logmel
    cat = jnp.concatenate([melpad[pl.ds(k, L), :] for k in range(KSZ)], axis=-1)   # (L, 7*N_MELS)
    emb = jnp.dot(cat, emb_w[...], preferred_element_type=jnp.float32) + emb_b[...]
    h = _layernorm(emb, ng[...], nb[...])                  # backbone.norm

    # persistent padded state (only pad rows are zeroed; data rows are written once per stage)
    state[pl.ds(0, KPAD), :] = jnp.zeros((KPAD, DIM), jnp.float32)
    state[pl.ds(KPAD + L, tail), :] = jnp.zeros((tail, DIM), jnp.float32)
    state[pl.ds(KPAD, L), :] = h

    # ---- stage 3: ConvNeXt blocks (unrolled; everything stays in VMEM) -------------------
    for (dw_w, dw_b, lg, lb, w1, b1, w2, b2, gamma) in blocks:
        # depthwise Conv1d(dim, dim, k=7, groups=dim): 7 shifted row views (VPU work)
        acc = jnp.zeros((L, DIM), jnp.float32) + dw_b[...]
        for k in range(KSZ):
            acc = acc + state[pl.ds(k, L), :] * dw_w[pl.ds(k, 1), :]
        hh = _layernorm(acc, lg[...], lb[...])
        hh = _gelu(jnp.dot(hh, w1[...], preferred_element_type=jnp.float32) + b1[...])
        hh = jnp.dot(hh, w2[...], preferred_element_type=jnp.float32) + b2[...]
        # residual + layer scale, written back in place (reads above already materialized)
        state[pl.ds(KPAD, L), :] = state[pl.ds(KPAD, L), :] + gamma[...] * hh

    # ---- stage 4: final LayerNorm + ISTFTHead + windowed iSTFT + overlap-add -------------
    x = _layernorm(state[pl.ds(KPAD, L), :], fg[...], fbeta[...])
    m = jnp.dot(x, wm[...], preferred_element_type=jnp.float32) + bm[...]
    ph = jnp.dot(x, wp[...], preferred_element_type=jnp.float32) + bp[...]
    smag = jnp.minimum(jnp.exp(m), 1e2)                    # exp + clip(max=1e2); pad bins ~exp(-30)=0
    s_re = smag * jnp.cos(ph)
    s_im = smag * jnp.sin(ph)
    # 2 full-frame matmuls -> (L, N_FFT) windowed time frames, then 4 hop-shifted OLA adds.
    fo = (jnp.dot(s_re, icos[...], preferred_element_type=jnp.float32)
          + jnp.dot(s_im, isin[...], preferred_element_type=jnp.float32))
    ola[...] = jnp.zeros_like(ola)
    for j in range(N_SLABS):
        ola[pl.ds(j, L), :] = ola[pl.ds(j, L), :] + fo[:, j * HOP:(j + 1) * HOP]
    # trim the center padding and scale by the precomputed inverse window envelope.
    # TODO(synk): output is stored as (L-1, HOP) hop-slabs (one contiguous 1 KB DMA per batch);
    # the (16,16)->(2,128) lane-dense in-VMEM reshape was skipped to avoid a risky relayout —
    # the free XLA reshape to (B, T) happens in the wrapper.
    out_ref[...] = ola[pl.ds(PAD_SLABS, L - 1), :] * ienv[...]


# ----------------------------- pallas_call wrapper (one fused call) -----------------------------
def vocos_fused(xslab, p):
    B, ns_total, _ = xslab.shape
    L = ns_total - N_SLABS + 1
    Lp = _round_up(L + 2 * KPAD, 8)
    out_slabs = L - 1                                      # (L-1)*HOP == T

    flat = [xslab, p["cos_b"], p["sin_b"], p["mel_fb"],
            p["embed_w"], p["embed_b"], p["norm_g"], p["norm_b"]]
    in_specs = [_bspec(ns_total, HOP),
                _cspec(N_FFT, FREQ_PAD), _cspec(N_FFT, FREQ_PAD), _cspec(FREQ_PAD, N_MELS),
                _cspec(KSZ * N_MELS, DIM), _cspec(1, DIM), _cspec(1, DIM), _cspec(1, DIM)]
    for blk in p["blocks"]:
        flat += [blk["dw_w"], blk["dw_b"], blk["ln_g"], blk["ln_b"],
                 blk["pw1_w"], blk["pw1_b"], blk["pw2_w"], blk["pw2_b"], blk["gamma"]]
        in_specs += [_cspec(KSZ, DIM), _cspec(1, DIM), _cspec(1, DIM), _cspec(1, DIM),
                     _cspec(DIM, INTER), _cspec(1, INTER), _cspec(INTER, DIM), _cspec(1, DIM),
                     _cspec(1, DIM)]
    flat += [p["final_g"], p["final_b"], p["head_wm"], p["head_bm"], p["head_wp"], p["head_bp"],
             p["icos"], p["isin"], p["inv_env"]]
    in_specs += [_cspec(1, DIM), _cspec(1, DIM),
                 _cspec(DIM, FREQ_PAD), _cspec(1, FREQ_PAD),
                 _cspec(DIM, FREQ_PAD), _cspec(1, FREQ_PAD),
                 _cspec(FREQ_PAD, N_FFT), _cspec(FREQ_PAD, N_FFT),
                 _cspec(out_slabs, HOP)]

    y = pl.pallas_call(
        _vocos_kernel,
        grid=(B,),
        in_specs=in_specs,
        out_specs=_bspec(out_slabs, HOP),
        out_shape=jax.ShapeDtypeStruct((B, out_slabs, HOP), jnp.float32),
        scratch_shapes=[pltpu.VMEM((Lp, N_MELS), jnp.float32),
                        pltpu.VMEM((Lp, DIM), jnp.float32),
                        pltpu.VMEM((L + N_SLABS - 1, HOP), jnp.float32)],
        compiler_params=pltpu.CompilerParams(dimension_semantics=("parallel",)),
    )(*flat)
    return y.reshape(B, out_slabs * HOP)


# ----------------------------- constant bases (setup, trace-time constants) -----------------------------
def hann_window(n):
    # torch.hann_window default (periodic=True)
    k = jnp.arange(n, dtype=jnp.float32)
    return 0.5 * (1.0 - jnp.cos(2.0 * jnp.pi * k / n))


def dft_bases(win):
    n = jnp.arange(N_FFT, dtype=jnp.float32)[:, None]
    f = jnp.arange(N_FREQ, dtype=jnp.float32)[None, :]
    ang = 2.0 * jnp.pi * n * f / N_FFT
    cos_b = win[:, None] * jnp.cos(ang)                    # window folded into the forward DFT basis
    sin_b = -win[:, None] * jnp.sin(ang)
    padc = FREQ_PAD - N_FREQ
    return (jnp.pad(cos_b, ((0, 0), (0, padc))).astype(jnp.float32),
            jnp.pad(sin_b, ((0, 0), (0, padc))).astype(jnp.float32))


def idft_bases(win):
    f = jnp.arange(N_FREQ, dtype=jnp.float32)[:, None]
    n = jnp.arange(N_FFT, dtype=jnp.float32)[None, :]
    ang = 2.0 * jnp.pi * f * n / N_FFT
    coef = jnp.where((f == 0) | (f == N_FFT // 2), 1.0 / N_FFT, 2.0 / N_FFT)
    icos = coef * jnp.cos(ang) * win[None, :]              # irfft + synthesis window as matmul basis
    isin = -coef * jnp.sin(ang) * win[None, :]
    padr = FREQ_PAD - N_FREQ
    icos = jnp.pad(icos, ((0, padr), (0, 0)))              # padded freq rows are zero
    isin = jnp.pad(isin, ((0, padr), (0, 0)))
    return icos.astype(jnp.float32), isin.astype(jnp.float32)   # (FREQ_PAD, N_FFT) full frames


def mel_filterbank(n_freqs, n_mels, sample_rate, f_min=0.0, f_max=None):
    # torchaudio melscale_fbanks(norm=None, mel_scale="htk"), zero-padded to FREQ_PAD rows
    if f_max is None:
        f_max = sample_rate / 2.0
    all_freqs = jnp.linspace(0.0, sample_rate // 2, n_freqs)
    hz_to_mel = lambda freq: 2595.0 * jnp.log10(1.0 + freq / 700.0)
    mel_to_hz = lambda m: 700.0 * (10.0 ** (m / 2595.0) - 1.0)
    m_pts = jnp.linspace(hz_to_mel(jnp.float32(f_min)), hz_to_mel(jnp.float32(f_max)), n_mels + 2)
    f_pts = mel_to_hz(m_pts)
    f_diff = f_pts[1:] - f_pts[:-1]
    slopes = f_pts[None, :] - all_freqs[:, None]
    down = -slopes[:, :-2] / f_diff[:-1]
    up = slopes[:, 2:] / f_diff[1:]
    fb = jnp.maximum(0.0, jnp.minimum(down, up))
    return jnp.pad(fb, ((0, FREQ_PAD - N_FREQ), (0, 0))).astype(jnp.float32)


def inverse_envelope(win, L):
    # hann^2 overlap-add envelope (COLA for HOP = N_FFT/4), trimmed and inverted once at setup.
    total = N_FFT + (L - 1) * HOP
    w2 = win * win
    env = jnp.zeros((total,), jnp.float32)
    for l in range(L):
        env = env.at[l * HOP: l * HOP + N_FFT].add(w2)
    pad = N_FFT // 2
    env = env[pad: total - pad]
    # TODO(synk): torch.istft guards tiny envelope values with a threshold; with hann and
    # HOP = N_FFT/4 the trimmed envelope is >= 1.25 so a plain reciprocal is safe here.
    return (1.0 / env).reshape(L - 1, HOP)


# ----------------------------- parameters (deterministic synthetic init) -----------------------------
def init_params(key, T):
    assert T % HOP == 0 and (N_FFT // 2) % HOP == 0
    L = 1 + T // HOP
    keys = jax.random.split(key, 2 + 3 * N_LAYERS)
    ki = iter(range(len(keys)))
    nrm = lambda k, shape: 0.02 * jax.random.normal(keys[k], shape, jnp.float32)

    win = hann_window(N_FFT)
    cos_b, sin_b = dft_bases(win)
    icos, isin = idft_bases(win)

    # ISTFTHead Linear(dim, n_fft + 2): split into mag/phase halves and zero-pad 33 -> 64 columns.
    # The mag-bias pad columns get -30 so exp(m)=~0 for padded bins (robust against any future
    # change to the zero rows of icos/isin).
    head_w = nrm(next(ki), (DIM, N_FFT + 2))
    head_b = jnp.zeros((N_FFT + 2,), jnp.float32)
    padc = FREQ_PAD - N_FREQ
    head_bm = jnp.concatenate([head_b[:N_FREQ], jnp.full((padc,), -30.0, jnp.float32)])[None, :]
    p = {
        "cos_b": cos_b, "sin_b": sin_b,
        "mel_fb": mel_filterbank(N_FREQ, N_MELS, SR),
        "icos": icos, "isin": isin,
        "inv_env": inverse_envelope(win, L),
        # embed Conv1d(n_mels, dim, 7) stored tap-major as a single (7*N_MELS, DIM) matmul weight:
        # row k*N_MELS + c  <->  torch weight[d, c, k]
        "embed_w": nrm(next(ki), (KSZ * N_MELS, DIM)),
        "embed_b": jnp.zeros((1, DIM), jnp.float32),
        "norm_g": jnp.ones((1, DIM), jnp.float32),
        "norm_b": jnp.zeros((1, DIM), jnp.float32),
        "final_g": jnp.ones((1, DIM), jnp.float32),
        "final_b": jnp.zeros((1, DIM), jnp.float32),
        "head_wm": jnp.pad(head_w[:, :N_FREQ], ((0, 0), (0, padc))),
        "head_bm": head_bm,
        "head_wp": jnp.pad(head_w[:, N_FREQ:], ((0, 0), (0, padc))),
        "head_bp": jnp.pad(head_b[None, N_FREQ:], ((0, 0), (0, padc))),
        "blocks": [],
    }
    for _ in range(N_LAYERS):
        p["blocks"].append(dict(
            dw_w=nrm(next(ki), (KSZ, DIM)),                # depthwise Conv1d(dim, dim, 7, groups=dim)
            dw_b=jnp.zeros((1, DIM), jnp.float32),
            ln_g=jnp.ones((1, DIM), jnp.float32),
            ln_b=jnp.zeros((1, DIM), jnp.float32),
            pw1_w=nrm(next(ki), (DIM, INTER)),
            pw1_b=jnp.zeros((1, INTER), jnp.float32),
            pw2_w=nrm(next(ki), (INTER, DIM)),
            pw2_b=jnp.zeros((1, DIM), jnp.float32),
            gamma=jnp.full((1, DIM), 1.0 / N_LAYERS, jnp.float32),   # layer_scale_init = 1/num_layers
        ))
    return p


# ----------------------------- Vocos forward -----------------------------
def make_vocos_forward(p):
    def forward(audio_input):
        B, T = audio_input.shape
        pad = N_FFT // 2
        # center STFT padding (reflect) + free reshape to hop slabs; everything downstream
        # runs in exactly ONE fused Pallas kernel.
        xpad = jnp.pad(audio_input, ((0, 0), (pad, pad)), mode="reflect")
        xslab = xpad.reshape(B, (T + N_FFT) // HOP, HOP)
        L = 1 + T // HOP
        assert p["inv_env"].shape[0] == L - 1, "params were built for a different T"
        return vocos_fused(xslab, p)                        # (B, T)
    return forward


# ----------------------------- main -----------------------------
if __name__ == "__main__":
    key = jax.random.PRNGKey(0)
    k_audio, k_params = jax.random.split(key)
    B, T = 2, 256
    audio = 0.1 * jax.random.normal(k_audio, (B, T), jnp.float32)

    params = init_params(k_params, T)
    vocos_forward = jax.jit(make_vocos_forward(params))
    out = jax.block_until_ready(vocos_forward(audio))

    assert out.shape == (B, T), out.shape
    assert bool(jnp.all(jnp.isfinite(out)))
    print("KERNEL_OK")
</pallas_src>

<mosaic_0001>
module attributes {stable_mosaic.version = 11 : i64} {
  func.func @_vocos_kernel(%arg0: i32, %arg1: memref<1x20x16xf32, #tpu.memory_space<vmem>>, %arg2: memref<64x64xf32, #tpu.memory_space<vmem>>, %arg3: memref<64x64xf32, #tpu.memory_space<vmem>>, %arg4: memref<64x32xf32, #tpu.memory_space<vmem>>, %arg5: memref<224x64xf32, #tpu.memory_space<vmem>>, %arg6: memref<1x64xf32, #tpu.memory_space<vmem>>, %arg7: memref<1x64xf32, #tpu.memory_space<vmem>>, %arg8: memref<1x64xf32, #tpu.memory_space<vmem>>, %arg9: memref<7x64xf32, #tpu.memory_space<vmem>>, %arg10: memref<1x64xf32, #tpu.memory_space<vmem>>, %arg11: memref<1x64xf32, #tpu.memory_space<vmem>>, %arg12: memref<1x64xf32, #tpu.memory_space<vmem>>, %arg13: memref<64x128xf32, #tpu.memory_space<vmem>>, %arg14: memref<1x128xf32, #tpu.memory_space<vmem>>, %arg15: memref<128x64xf32, #tpu.memory_space<vmem>>, %arg16: memref<1x64xf32, #tpu.memory_space<vmem>>, %arg17: memref<1x64xf32, #tpu.memory_space<vmem>>, %arg18: memref<7x64xf32, #tpu.memory_space<vmem>>, %arg19: memref<1x64xf32, #tpu.memory_space<vmem>>, %arg20: memref<1x64xf32, #tpu.memory_space<vmem>>, %arg21: memref<1x64xf32, #tpu.memory_space<vmem>>, %arg22: memref<64x128xf32, #tpu.memory_space<vmem>>, %arg23: memref<1x128xf32, #tpu.memory_space<vmem>>, %arg24: memref<128x64xf32, #tpu.memory_space<vmem>>, %arg25: memref<1x64xf32, #tpu.memory_space<vmem>>, %arg26: memref<1x64xf32, #tpu.memory_space<vmem>>, %arg27: memref<1x64xf32, #tpu.memory_space<vmem>>, %arg28: memref<1x64xf32, #tpu.memory_space<vmem>>, %arg29: memref<64x64xf32, #tpu.memory_space<vmem>>, %arg30: memref<1x64xf32, #tpu.memory_space<vmem>>, %arg31: memref<64x64xf32, #tpu.memory_space<vmem>>, %arg32: memref<1x64xf32, #tpu.memory_space<vmem>>, %arg33: memref<64x64xf32, #tpu.memory_space<vmem>>, %arg34: memref<64x64xf32, #tpu.memory_space<vmem>>, %arg35: memref<16x16xf32, #tpu.memory_space<vmem>>, %arg36: memref<1x16x16xf32, #tpu.memory_space<vmem>>, %arg37: memref<24x32xf32, #tpu.memory_space<vmem>>, %arg38: memref<24x64xf32, #tpu.memory_space<vmem>>, %arg39: memref<20x16xf32, #tpu.memory_space<vmem>>) attributes {dimension_semantics = [#tpu.dimension_semantics<parallel>], iteration_bounds = array<i64: 2>, scalar_prefetch = 0 : i64, scratch_operands = 3 : i64, tpu.core_type = #tpu.core_type<tc>, window_params = [{transform_indices = @transform_0, window_bounds = array<i64: 1, 20, 16>}, {pipeline_mode = #tpu.pipeline_mode<synchronous>, transform_indices = @transform_1, window_bounds = array<i64: 64, 64>}, {pipeline_mode = #tpu.pipeline_mode<synchronous>, transform_indices = @transform_2, window_bounds = array<i64: 64, 64>}, {pipeline_mode = #tpu.pipeline_mode<synchronous>, transform_indices = @transform_3, window_bounds = array<i64: 64, 32>}, {pipeline_mode = #tpu.pipeline_mode<synchronous>, transform_indices = @transform_4, window_bounds = array<i64: 224, 64>}, {pipeline_mode = #tpu.pipeline_mode<synchronous>, transform_indices = @transform_5, window_bounds = array<i64: 1, 64>}, {pipeline_mode = #tpu.pipeline_mode<synchronous>, transform_indices = @transform_6, window_bounds = array<i64: 1, 64>}, {pipeline_mode = #tpu.pipeline_mode<synchronous>, transform_indices = @transform_7, window_bounds = array<i64: 1, 64>}, {pipeline_mode = #tpu.pipeline_mode<synchronous>, transform_indices = @transform_8, window_bounds = array<i64: 7, 64>}, {pipeline_mode = #tpu.pipeline_mode<synchronous>, transform_indices = @transform_9, window_bounds = array<i64: 1, 64>}, {pipeline_mode = #tpu.pipeline_mode<synchronous>, transform_indices = @transform_10, window_bounds = array<i64: 1, 64>}, {pipeline_mode = #tpu.pipeline_mode<synchronous>, transform_indices = @transform_11, window_bounds = array<i64: 1, 64>}, {pipeline_mode = #tpu.pipeline_mode<synchronous>, transform_indices = @transform_12, window_bounds = array<i64: 64, 128>}, {pipeline_mode = #tpu.pipeline_mode<synchronous>, transform_indices = @transform_13, window_bounds = array<i64: 1, 128>}, {pipeline_mode = #tpu.pipeline_mode<synchronous>, transform_indices = @transform_14, window_bounds = array<i64: 128, 64>}, {pipeline_mode = #tpu.pipeline_mode<synchronous>, transform_indices = @transform_15, window_bounds = array<i64: 1, 64>}, {pipeline_mode = #tpu.pipeline_mode<synchronous>, transform_indices = @transform_16, window_bounds = array<i64: 1, 64>}, {pipeline_mode = #tpu.pipeline_mode<synchronous>, transform_indices = @transform_17, window_bounds = array<i64: 7, 64>}, {pipeline_mode = #tpu.pipeline_mode<synchronous>, transform_indices = @transform_18, window_bounds = array<i64: 1, 64>}, {pipeline_mode = #tpu.pipeline_mode<synchronous>, transform_indices = @transform_19, window_bounds = array<i64: 1, 64>}, {pipeline_mode = #tpu.pipeline_mode<synchronous>, transform_indices = @transform_20, window_bounds = array<i64: 1, 64>}, {pipeline_mode = #tpu.pipeline_mode<synchronous>, transform_indices = @transform_21, window_bounds = array<i64: 64, 128>}, {pipeline_mode = #tpu.pipeline_mode<synchronous>, transform_indices = @transform_22, window_bounds = array<i64: 1, 128>}, {pipeline_mode = #tpu.pipeline_mode<synchronous>, transform_indices = @transform_23, window_bounds = array<i64: 128, 64>}, {pipeline_mode = #tpu.pipeline_mode<synchronous>, transform_indices = @transform_24, window_bounds = array<i64: 1, 64>}, {pipeline_mode = #tpu.pipeline_mode<synchronous>, transform_indices = @transform_25, window_bounds = array<i64: 1, 64>}, {pipeline_mode = #tpu.pipeline_mode<synchronous>, transform_indices = @transform_26, window_bounds = array<i64: 1, 64>}, {pipeline_mode = #tpu.pipeline_mode<synchronous>, transform_indices = @transform_27, window_bounds = array<i64: 1, 64>}, {pipeline_mode = #tpu.pipeline_mode<synchronous>, transform_indices = @transform_28, window_bounds = array<i64: 64, 64>}, {pipeline_mode = #tpu.pipeline_mode<synchronous>, transform_indices = @transform_29, window_bounds = array<i64: 1, 64>}, {pipeline_mode = #tpu.pipeline_mode<synchronous>, transform_indices = @transform_30, window_bounds = array<i64: 64, 64>}, {pipeline_mode = #tpu.pipeline_mode<synchronous>, transform_indices = @transform_31, window_bounds = array<i64: 1, 64>}, {pipeline_mode = #tpu.pipeline_mode<synchronous>, transform_indices = @transform_32, window_bounds = array<i64: 64, 64>}, {pipeline_mode = #tpu.pipeline_mode<synchronous>, transform_indices = @transform_33, window_bounds = array<i64: 64, 64>}, {pipeline_mode = #tpu.pipeline_mode<synchronous>, transform_indices = @transform_34, window_bounds = array<i64: 16, 16>}, {transform_indices = @transform_35, window_bounds = array<i64: 1, 16, 16>}]} {
    %c0 = arith.constant 0 : index
    %c0_0 = arith.constant 0 : index
    %c0_1 = arith.constant 0 : index
    %0 = vector.load %arg1[%c0, %c0_0, %c0_1] : memref<1x20x16xf32, #tpu.memory_space<vmem>>, vector<1x17x16xf32>
    %1 = vector.shape_cast %0 : vector<1x17x16xf32> to vector<17x16xf32>
    %c0_2 = arith.constant 0 : index
    %c1 = arith.constant 1 : index
    %c0_3 = arith.constant 0 : index
    %2 = vector.load %arg1[%c0_2, %c1, %c0_3] : memref<1x20x16xf32, #tpu.memory_space<vmem>>, vector<1x17x16xf32>
    %3 = vector.shape_cast %2 : vector<1x17x16xf32> to vector<17x16xf32>
    %c0_4 = arith.constant 0 : index
    %c2 = arith.constant 2 : index
    %c0_5 = arith.constant 0 : index
    %4 = vector.load %arg1[%c0_4, %c2, %c0_5] : memref<1x20x16xf32, #tpu.memory_space<vmem>>, vector<1x17x16xf32>
    %5 = vector.shape_cast %4 : vector<1x17x16xf32> to vector<17x16xf32>
    %c0_6 = arith.constant 0 : index
    %c3 = arith.constant 3 : index
    %c0_7 = arith.constant 0 : index
    %6 = vector.load %arg1[%c0_6, %c3, %c0_7] : memref<1x20x16xf32, #tpu.memory_space<vmem>>, vector<1x17x16xf32>
    %7 = vector.shape_cast %6 : vector<1x17x16xf32> to vector<17x16xf32>
    %8 = tpu.concatenate %1, %3, %5, %7 in 1 : vector<17x16xf32>, vector<17x16xf32>, vector<17x16xf32>, vector<17x16xf32> -> vector<17x64xf32>
    %c0_8 = arith.constant 0 : index
    %c0_9 = arith.constant 0 : index
    %9 = vector.load %arg2[%c0_8, %c0_9] : memref<64x64xf32, #tpu.memory_space<vmem>>, vector<64x64xf32>
    %cst = arith.constant dense<0.000000e+00> : vector<17x64xf32>
    %10 = tpu.matmul %8, %9, %cst {dimension_numbers = #tpu.dot_dimension_numbers<[1], [0], [0], [1], [0, 0, 1, 1], [], []>} : vector<17x64xf32>, vector<64x64xf32>, vector<17x64xf32> -> vector<17x64xf32>
    %c0_10 = arith.constant 0 : index
    %c0_11 = arith.constant 0 : index
    %11 = vector.load %arg3[%c0_10, %c0_11] : memref<64x64xf32, #tpu.memory_space<vmem>>, vector<64x64xf32>
    %cst_12 = arith.constant dense<0.000000e+00> : vector<17x64xf32>
    %12 = tpu.matmul %8, %11, %cst_12 {dimension_numbers = #tpu.dot_dimension_numbers<[1], [0], [0], [1], [0, 0, 1, 1], [], []>} : vector<17x64xf32>, vector<64x64xf32>, vector<17x64xf32> -> vector<17x64xf32>
    %13 = arith.mulf %10, %10 : vector<17x64xf32>
    %14 = arith.mulf %12, %12 : vector<17x64xf32>
    %15 = arith.addf %13, %14 : vector<17x64xf32>
    %16 = math.sqrt %15 : vector<17x64xf32>
    %c0_13 = arith.constant 0 : index
    %c0_14 = arith.constant 0 : index
    %17 = vector.load %arg4[%c0_13, %c0_14] : memref<64x32xf32, #tpu.memory_space<vmem>>, vector<64x32xf32>
    %cst_15 = arith.constant dense<0.000000e+00> : vector<17x32xf32>
    %18 = tpu.matmul %16, %17, %cst_15 {dimension_numbers = #tpu.dot_dimension_numbers<[1], [0], [0], [1], [0, 0, 1, 1], [], []>} : vector<17x64xf32>, vector<64x32xf32>, vector<17x32xf32> -> vector<17x32xf32>
    %cst_16 = arith.constant 1.000000e-07 : f32
    %19 = vector.broadcast %cst_16 : f32 to vector<17x32xf32>
    %20 = arith.maximumf %18, %19 : vector<17x32xf32>
    %21 = math.log %20 : vector<17x32xf32>
    %cst_17 = arith.constant 0.000000e+00 : f32
    %22 = vector.broadcast %cst_17 : f32 to vector<3x32xf32>
    %c0_18 = arith.constant 0 : index
    %c0_19 = arith.constant 0 : index
    %23 = vector.load %arg37[%c0_18, %c0_19] : memref<24x32xf32, #tpu.memory_space<vmem>>, vector<3x32xf32>
    tpu.vector_store %arg37[%c0_18, %c0_19], %22 {strides = array<i32>} : memref<24x32xf32, #tpu.memory_space<vmem>>, vector<3x32xf32>,
    %cst_20 = arith.constant 0.000000e+00 : f32
    %24 = vector.broadcast %cst_20 : f32 to vector<4x32xf32>
    %c20 = arith.constant 20 : index
    %c0_21 = arith.constant 0 : index
    %25 = vector.load %arg37[%c20, %c0_21] : memref<24x32xf32, #tpu.memory_space<vmem>>, vector<4x32xf32>
    tpu.vector_store %arg37[%c20, %c0_21], %24 {strides = array<i32>} : memref<24x32xf32, #tpu.memory_space<vmem>>, vector<4x32xf32>,
    %c3_22 = arith.constant 3 : index
    %c0_23 = arith.constant 0 : index
    %26 = vector.load %arg37[%c3_22, %c0_23] : memref<24x32xf32, #tpu.memory_space<vmem>>, vector<17x32xf32>
    tpu.vector_store %arg37[%c3_22, %c0_23], %21 {strides = array<i32>} : memref<24x32xf32, #tpu.memory_space<vmem>>, vector<17x32xf32>,
    %c0_24 = arith.constant 0 : index
    %c0_25 = arith.constant 0 : index
    %27 = vector.load %arg37[%c0_24, %c0_25] : memref<24x32xf32, #tpu.memory_space<vmem>>, vector<17x32xf32>
    %c1_26 = arith.constant 1 : index
    %c0_27 = arith.constant 0 : index
    %28 = vector.load %arg37[%c1_26, %c0_27] : memref<24x32xf32, #tpu.memory_space<vmem>>, vector<17x32xf32>
    %c2_28 = arith.constant 2 : index
    %c0_29 = arith.constant 0 : index
    %29 = vector.load %arg37[%c2_28, %c0_29] : memref<24x32xf32, #tpu.memory_space<vmem>>, vector<17x32xf32>
    %c3_30 = arith.constant 3 : index
    %c0_31 = arith.constant 0 : index
    %30 = vector.load %arg37[%c3_30, %c0_31] : memref<24x32xf32, #tpu.memory_space<vmem>>, vector<17x32xf32>
    %c4 = arith.constant 4 : index
    %c0_32 = arith.constant 0 : index
    %31 = vector.load %arg37[%c4, %c0_32] : memref<24x32xf32, #tpu.memory_space<vmem>>, vector<17x32xf32>
    %c5 = arith.constant 5 : index
    %c0_33 = arith.constant 0 : index
    %32 = vector.load %arg37[%c5, %c0_33] : memref<24x32xf32, #tpu.memory_space<vmem>>, vector<17x32xf32>
    %c6 = arith.constant 6 : index
    %c0_34 = arith.constant 0 : index
    %33 = vector.load %arg37[%c6, %c0_34] : memref<24x32xf32, #tpu.memory_space<vmem>>, vector<17x32xf32>
    %34 = tpu.concatenate %27, %28, %29, %30, %31, %32, %33 in 1 : vector<17x32xf32>, vector<17x32xf32>, vector<17x32xf32>, vector<17x32xf32>, vector<17x32xf32>, vector<17x32xf32>, vector<17x32xf32> -> vector<17x224xf32>
    %c0_35 = arith.constant 0 : index
    %c0_36 = arith.constant 0 : index
    %35 = vector.load %arg5[%c0_35, %c0_36] : memref<224x64xf32, #tpu.memory_space<vmem>>, vector<224x64xf32>
    %cst_37 = arith.constant dense<0.000000e+00> : vector<17x64xf32>
    %36 = tpu.matmul %34, %35, %cst_37 {dimension_numbers = #tpu.dot_dimension_numbers<[1], [0], [0], [1], [0, 0, 1, 1], [], []>} : vector<17x224xf32>, vector<224x64xf32>, vector<17x64xf32> -> vector<17x64xf32>
    %c0_38 = arith.constant 0 : index
    %c0_39 = arith.constant 0 : index
    %37 = vector.load %arg6[%c0_38, %c0_39] : memref<1x64xf32, #tpu.memory_space<vmem>>, vector<1x64xf32>
    %38 = vector.broadcast %37 : vector<1x64xf32> to vector<17x64xf32>
    %39 = arith.addf %36, %38 : vector<17x64xf32>
    %c0_40 = arith.constant 0 : index
    %c0_41 = arith.constant 0 : index
    %40 = vector.load %arg7[%c0_40, %c0_41] : memref<1x64xf32, #tpu.memory_space<vmem>>, vector<1x64xf32>
    %c0_42 = arith.constant 0 : index
    %c0_43 = arith.constant 0 : index
    %41 = vector.load %arg8[%c0_42, %c0_43] : memref<1x64xf32, #tpu.memory_space<vmem>>, vector<1x64xf32>
    %cst_44 = arith.constant dense<0.000000e+00> : vector<17xf32>
    %42 = vector.multi_reduction <add>, %39, %cst_44 [1] : vector<17x64xf32> to vector<17xf32>
    %43 = vector.shape_cast %42 : vector<17xf32> to vector<17x1xf32>
    %cst_45 = arith.constant 6.400000e+01 : f32
    %44 = vector.broadcast %cst_45 : f32 to vector<17x1xf32>
    %45 = arith.divf %43, %44 : vector<17x1xf32>
    %46 = vector.broadcast %45 : vector<17x1xf32> to vector<17x64xf32>
    %47 = arith.subf %39, %46 : vector<17x64xf32>
    %48 = arith.mulf %47, %47 : vector<17x64xf32>
    %cst_46 = arith.constant dense<0.000000e+00> : vector<17xf32>
    %49 = vector.multi_reduction <add>, %48, %cst_46 [1] : vector<17x64xf32> to vector<17xf32>
    %50 = vector.shape_cast %49 : vector<17xf32> to vector<17x1xf32>
    %cst_47 = arith.constant 6.400000e+01 : f32
    %51 = vector.broadcast %cst_47 : f32 to vector<17x1xf32>
    %52 = arith.divf %50, %51 : vector<17x1xf32>
    %cst_48 = arith.constant 9.99999997E-7 : f32
    %53 = vector.broadcast %cst_48 : f32 to vector<17x1xf32>
    %54 = arith.addf %52, %53 : vector<17x1xf32>
    %55 = math.rsqrt %54 : vector<17x1xf32>
    %56 = vector.broadcast %55 : vector<17x1xf32> to vector<17x64xf32>
    %57 = arith.mulf %47, %56 : vector<17x64xf32>
    %58 = vector.broadcast %40 : vector<1x64xf32> to vector<17x64xf32>
    %59 = arith.mulf %57, %58 : vector<17x64xf32>
    %60 = vector.broadcast %41 : vector<1x64xf32> to vector<17x64xf32>
    %61 = arith.addf %59, %60 : vector<17x64xf32>
    %cst_49 = arith.constant 0.000000e+00 : f32
    %62 = vector.broadcast %cst_49 : f32 to vector<3x64xf32>
    %c0_50 = arith.constant 0 : index
    %c0_51 = arith.constant 0 : index
    %63 = vector.load %arg38[%c0_50, %c0_51] : memref<24x64xf32, #tpu.memory_space<vmem>>, vector<3x64xf32>
    tpu.vector_store %arg38[%c0_50, %c0_51], %62 {strides = array<i32>} : memref<24x64xf32, #tpu.memory_space<vmem>>, vector<3x64xf32>,
    %cst_52 = arith.constant 0.000000e+00 : f32
    %64 = vector.broadcast %cst_52 : f32 to vector<4x64xf32>
    %c20_53 = arith.constant 20 : index
    %c0_54 = arith.constant 0 : index
    %65 = vector.load %arg38[%c20_53, %c0_54] : memref<24x64xf32, #tpu.memory_space<vmem>>, vector<4x64xf32>
    tpu.vector_store %arg38[%c20_53, %c0_54], %64 {strides = array<i32>} : memref<24x64xf32, #tpu.memory_space<vmem>>, vector<4x64xf32>,
    %c3_55 = arith.constant 3 : index
    %c0_56 = arith.constant 0 : index
    %66 = vector.load %arg38[%c3_55, %c0_56] : memref<24x64xf32, #tpu.memory_space<vmem>>, vector<17x64xf32>
    tpu.vector_store %arg38[%c3_55, %c0_56], %61 {strides = array<i32>} : memref<24x64xf32, #tpu.memory_space<vmem>>, vector<17x64xf32>,
    %cst_57 = arith.constant 0.000000e+00 : f32
    %67 = vector.broadcast %cst_57 : f32 to vector<17x64xf32>
    %c0_58 = arith.constant 0 : index
    %c0_59 = arith.constant 0 : index
    %68 = vector.load %arg10[%c0_58, %c0_59] : memref<1x64xf32, #tpu.memory_space<vmem>>, vector<1x64xf32>
    %69 = vector.broadcast %68 : vector<1x64xf32> to vector<17x64xf32>
    %70 = arith.addf %67, %69 : vector<17x64xf32>
    %c0_60 = arith.constant 0 : index
    %c0_61 = arith.constant 0 : index
    %71 = vector.load %arg38[%c0_60, %c0_61] : memref<24x64xf32, #tpu.memory_space<vmem>>, vector<17x64xf32>
    %c0_62 = arith.constant 0 : index
    %c0_63 = arith.constant 0 : index
    %72 = vector.load %arg9[%c0_62, %c0_63] : memref<7x64xf32, #tpu.memory_space<vmem>>, vector<1x64xf32>
    %73 = vector.broadcast %72 : vector<1x64xf32> to vector<17x64xf32>
    %74 = arith.mulf %71, %73 : vector<17x64xf32>
    %75 = arith.addf %70, %74 : vector<17x64xf32>
    %c1_64 = arith.constant 1 : index
    %c0_65 = arith.constant 0 : index
    %76 = vector.load %arg38[%c1_64, %c0_65] : memref<24x64xf32, #tpu.memory_space<vmem>>, vector<17x64xf32>
    %c1_66 = arith.constant 1 : index
    %c0_67 = arith.constant 0 : index
    %77 = vector.load %arg9[%c1_66, %c0_67] : memref<7x64xf32, #tpu.memory_space<vmem>>, vector<1x64xf32>
    %78 = vector.broadcast %77 : vector<1x64xf32> to vector<17x64xf32>
    %79 = arith.mulf %76, %78 : vector<17x64xf32>
    %80 = arith.addf %75, %79 : vector<17x64xf32>
    %c2_68 = arith.constant 2 : index
    %c0_69 = arith.constant 0 : index
    %81 = vector.load %arg38[%c2_68, %c0_69] : memref<24x64xf32, #tpu.memory_space<vmem>>, vector<17x64xf32>
    %c2_70 = arith.constant 2 : index
    %c0_71 = arith.constant 0 : index
    %82 = vector.load %arg9[%c2_70, %c0_71] : memref<7x64xf32, #tpu.memory_space<vmem>>, vector<1x64xf32>
    %83 = vector.broadcast %82 : vector<1x64xf32> to vector<17x64xf32>
    %84 = arith.mulf %81, %83 : vector<17x64xf32>
    %85 = arith.addf %80, %84 : vector<17x64xf32>
    %c3_72 = arith.constant 3 : index
    %c0_73 = arith.constant 0 : index
    %86 = vector.load %arg38[%c3_72, %c0_73] : memref<24x64xf32, #tpu.memory_space<vmem>>, vector<17x64xf32>
    %c3_74 = arith.constant 3 : index
    %c0_75 = arith.constant 0 : index
    %87 = vector.load %arg9[%c3_74, %c0_75] : memref<7x64xf32, #tpu.memory_space<vmem>>, vector<1x64xf32>
    %88 = vector.broadcast %87 : vector<1x64xf32> to vector<17x64xf32>
    %89 = arith.mulf %86, %88 : vector<17x64xf32>
    %90 = arith.addf %85, %89 : vector<17x64xf32>
    %c4_76 = arith.constant 4 : index
    %c0_77 = arith.constant 0 : index
    %91 = vector.load %arg38[%c4_76, %c0_77] : memref<24x64xf32, #tpu.memory_space<vmem>>, vector<17x64xf32>
    %c4_78 = arith.constant 4 : index
    %c0_79 = arith.constant 0 : index
    %92 = vector.load %arg9[%c4_78, %c0_79] : memref<7x64xf32, #tpu.memory_space<vmem>>, vector<1x64xf32>
    %93 = vector.broadcast %92 : vector<1x64xf32> to vector<17x64xf32>
    %94 = arith.mulf %91, %93 : vector<17x64xf32>
    %95 = arith.addf %90, %94 : vector<17x64xf32>
    %c5_80 = arith.constant 5 : index
    %c0_81 = arith.constant 0 : index
    %96 = vector.load %arg38[%c5_80, %c0_81] : memref<24x64xf32, #tpu.memory_space<vmem>>, vector<17x64xf32>
    %c5_82 = arith.constant 5 : index
    %c0_83 = arith.constant 0 : index
    %97 = vector.load %arg9[%c5_82, %c0_83] : memref<7x64xf32, #tpu.memory_space<vmem>>, vector<1x64xf32>
    %98 = vector.broadcast %97 : vector<1x64xf32> to vector<17x64xf32>
    %99 = arith.mulf %96, %98 : vector<17x64xf32>
    %100 = arith.addf %95, %99 : vector<17x64xf32>
    %c6_84 = arith.constant 6 : index
    %c0_85 = arith.constant 0 : index
    %101 = vector.load %arg38[%c6_84, %c0_85] : memref<24x64xf32, #tpu.memory_space<vmem>>, vector<17x64xf32>
    %c6_86 = arith.constant 6 : index
    %c0_87 = arith.constant 0 : index
    %102 = vector.load %arg9[%c6_86, %c0_87] : memref<7x64xf32, #tpu.memory_space<vmem>>, vector<1x64xf32>
    %103 = vector.broadcast %102 : vector<1x64xf32> to vector<17x64xf32>
    %104 = arith.mulf %101, %103 : vector<17x64xf32>
    %105 = arith.addf %100, %104 : vector<17x64xf32>
    %c0_88 = arith.constant 0 : index
    %c0_89 = arith.constant 0 : index
    %106 = vector.load %arg11[%c0_88, %c0_89] : memref<1x64xf32, #tpu.memory_space<vmem>>, vector<1x64xf32>
    %c0_90 = arith.constant 0 : index
    %c0_91 = arith.constant 0 : index
    %107 = vector.load %arg12[%c0_90, %c0_91] : memref<1x64xf32, #tpu.memory_space<vmem>>, vector<1x64xf32>
    %cst_92 = arith.constant dense<0.000000e+00> : vector<17xf32>
    %108 = vector.multi_reduction <add>, %105, %cst_92 [1] : vector<17x64xf32> to vector<17xf32>
    %109 = vector.shape_cast %108 : vector<17xf32> to vector<17x1xf32>
    %cst_93 = arith.constant 6.400000e+01 : f32
    %110 = vector.broadcast %cst_93 : f32 to vector<17x1xf32>
    %111 = arith.divf %109, %110 : vector<17x1xf32>
    %112 = vector.broadcast %111 : vector<17x1xf32> to vector<17x64xf32>
    %113 = arith.subf %105, %112 : vector<17x64xf32>
    %114 = arith.mulf %113, %113 : vector<17x64xf32>
    %cst_94 = arith.constant dense<0.000000e+00> : vector<17xf32>
    %115 = vector.multi_reduction <add>, %114, %cst_94 [1] : vector<17x64xf32> to vector<17xf32>
    %116 = vector.shape_cast %115 : vector<17xf32> to vector<17x1xf32>
    %cst_95 = arith.constant 6.400000e+01 : f32
    %117 = vector.broadcast %cst_95 : f32 to vector<17x1xf32>
    %118 = arith.divf %116, %117 : vector<17x1xf32>
    %cst_96 = arith.constant 9.99999997E-7 : f32
    %119 = vector.broadcast %cst_96 : f32 to vector<17x1xf32>
    %120 = arith.addf %118, %119 : vector<17x1xf32>
    %121 = math.rsqrt %120 : vector<17x1xf32>
    %122 = vector.broadcast %121 : vector<17x1xf32> to vector<17x64xf32>
    %123 = arith.mulf %113, %122 : vector<17x64xf32>
    %124 = vector.broadcast %106 : vector<1x64xf32> to vector<17x64xf32>
    %125 = arith.mulf %123, %124 : vector<17x64xf32>
    %126 = vector.broadcast %107 : vector<1x64xf32> to vector<17x64xf32>
    %127 = arith.addf %125, %126 : vector<17x64xf32>
    %c0_97 = arith.constant 0 : index
    %c0_98 = arith.constant 0 : index
    %128 = vector.load %arg13[%c0_97, %c0_98] : memref<64x128xf32, #tpu.memory_space<vmem>>, vector<64x128xf32>
    %cst_99 = arith.constant dense<0.000000e+00> : vector<17x128xf32>
    %129 = tpu.matmul %127, %128, %cst_99 {dimension_numbers = #tpu.dot_dimension_numbers<[1], [0], [0], [1], [0, 0, 1, 1], [], []>} : vector<17x64xf32>, vector<64x128xf32>, vector<17x128xf32> -> vector<17x128xf32>
    %c0_100 = arith.constant 0 : index
    %c0_101 = arith.constant 0 : index
    %130 = vector.load %arg14[%c0_100, %c0_101] : memref<1x128xf32, #tpu.memory_space<vmem>>, vector<1x128xf32>
    %131 = vector.broadcast %130 : vector<1x128xf32> to vector<17x128xf32>
    %132 = arith.addf %129, %131 : vector<17x128xf32>
    %cst_102 = arith.constant 5.000000e-01 : f32
    %133 = vector.broadcast %cst_102 : f32 to vector<17x128xf32>
    %134 = arith.mulf %133, %132 : vector<17x128xf32>
    %cst_103 = arith.constant 0.707106769 : f32
    %135 = vector.broadcast %cst_103 : f32 to vector<17x128xf32>
    %136 = arith.mulf %132, %135 : vector<17x128xf32>
    %cst_104 = arith.constant 0.000000e+00 : f32
    %137 = vector.broadcast %cst_104 : f32 to vector<17x128xf32>
    %138 = arith.cmpf olt, %136, %137 : vector<17x128xf32>
    %cst_105 = arith.constant -1.000000e+00 : f32
    %cst_106 = arith.constant 1.000000e+00 : f32
    %139 = vector.broadcast %cst_105 : f32 to vector<17x128xf32>
    %140 = vector.broadcast %cst_106 : f32 to vector<17x128xf32>
    %141 = arith.select %138, %139, %140 : vector<17x128xi1>, vector<17x128xf32>
    %142 = math.absf %136 : vector<17x128xf32>
    %cst_107 = arith.constant 0.327591091 : f32
    %143 = vector.broadcast %cst_107 : f32 to vector<17x128xf32>
    %144 = arith.mulf %143, %142 : vector<17x128xf32>
    %cst_108 = arith.constant 1.000000e+00 : f32
    %145 = vector.broadcast %cst_108 : f32 to vector<17x128xf32>
    %146 = arith.addf %145, %144 : vector<17x128xf32>
    %cst_109 = arith.constant 1.000000e+00 : f32
    %147 = vector.broadcast %cst_109 : f32 to vector<17x128xf32>
    %148 = arith.divf %147, %146 : vector<17x128xf32>
    %cst_110 = arith.constant 1.06140542 : f32
    %149 = vector.broadcast %cst_110 : f32 to vector<17x128xf32>
    %150 = arith.mulf %149, %148 : vector<17x128xf32>
    %cst_111 = arith.constant -1.45315206 : f32
    %151 = vector.broadcast %cst_111 : f32 to vector<17x128xf32>
    %152 = arith.addf %150, %151 : vector<17x128xf32>
    %153 = arith.mulf %152, %148 : vector<17x128xf32>
    %cst_112 = arith.constant 1.42141378 : f32
    %154 = vector.broadcast %cst_112 : f32 to vector<17x128xf32>
    %155 = arith.addf %153, %154 : vector<17x128xf32>
    %156 = arith.mulf %155, %148 : vector<17x128xf32>
    %cst_113 = arith.constant -0.284496725 : f32
    %157 = vector.broadcast %cst_113 : f32 to vector<17x128xf32>
    %158 = arith.addf %156, %157 : vector<17x128xf32>
    %159 = arith.mulf %158, %148 : vector<17x128xf32>
    %cst_114 = arith.constant 0.254829586 : f32
    %160 = vector.broadcast %cst_114 : f32 to vector<17x128xf32>
    %161 = arith.addf %159, %160 : vector<17x128xf32>
    %162 = arith.mulf %161, %148 : vector<17x128xf32>
    %cst_115 = arith.constant 0.000000e+00 : f32
    %163 = vector.broadcast %cst_115 : f32 to vector<17x128xf32>
    %164 = arith.subf %163, %142 : vector<17x128xf32>
    %165 = arith.mulf %164, %142 : vector<17x128xf32>
    %166 = math.exp %165 : vector<17x128xf32>
    %167 = arith.mulf %162, %166 : vector<17x128xf32>
    %cst_116 = arith.constant 1.000000e+00 : f32
    %168 = vector.broadcast %cst_116 : f32 to vector<17x128xf32>
    %169 = arith.subf %168, %167 : vector<17x128xf32>
    %170 = arith.mulf %141, %169 : vector<17x128xf32>
    %cst_117 = arith.constant 1.000000e+00 : f32
    %171 = vector.broadcast %cst_117 : f32 to vector<17x128xf32>
    %172 = arith.addf %171, %170 : vector<17x128xf32>
    %173 = arith.mulf %134, %172 : vector<17x128xf32>
    %c0_118 = arith.constant 0 : index
    %c0_119 = arith.constant 0 : index
    %174 = vector.load %arg15[%c0_118, %c0_119] : memref<128x64xf32, #tpu.memory_space<vmem>>, vector<128x64xf32>
    %cst_120 = arith.constant dense<0.000000e+00> : vector<17x64xf32>
    %175 = tpu.matmul %173, %174, %cst_120 {dimension_numbers = #tpu.dot_dimension_numbers<[1], [0], [0], [1], [0, 0, 1, 1], [], []>} : vector<17x128xf32>, vector<128x64xf32>, vector<17x64xf32> -> vector<17x64xf32>
    %c0_121 = arith.constant 0 : index
    %c0_122 = arith.constant 0 : index
    %176 = vector.load %arg16[%c0_121, %c0_122] : memref<1x64xf32, #tpu.memory_space<vmem>>, vector<1x64xf32>
    %177 = vector.broadcast %176 : vector<1x64xf32> to vector<17x64xf32>
    %178 = arith.addf %175, %177 : vector<17x64xf32>
    %c3_123 = arith.constant 3 : index
    %c0_124 = arith.constant 0 : index
    %179 = vector.load %arg38[%c3_123, %c0_124] : memref<24x64xf32, #tpu.memory_space<vmem>>, vector<17x64xf32>
    %c0_125 = arith.constant 0 : index
    %c0_126 = arith.constant 0 : index
    %180 = vector.load %arg17[%c0_125, %c0_126] : memref<1x64xf32, #tpu.memory_space<vmem>>, vector<1x64xf32>
    %181 = vector.broadcast %180 : vector<1x64xf32> to vector<17x64xf32>
    %182 = arith.mulf %181, %178 : vector<17x64xf32>
    %183 = arith.addf %179, %182 : vector<17x64xf32>
    %c3_127 = arith.constant 3 : index
    %c0_128 = arith.constant 0 : index
    %184 = vector.load %arg38[%c3_127, %c0_128] : memref<24x64xf32, #tpu.memory_space<vmem>>, vector<17x64xf32>
    tpu.vector_store %arg38[%c3_127, %c0_128], %183 {strides = array<i32>} : memref<24x64xf32, #tpu.memory_space<vmem>>, vector<17x64xf32>,
    %cst_129 = arith.constant 0.000000e+00 : f32
    %185 = vector.broadcast %cst_129 : f32 to vector<17x64xf32>
    %c0_130 = arith.constant 0 : index
    %c0_131 = arith.constant 0 : index
    %186 = vector.load %arg19[%c0_130, %c0_131] : memref<1x64xf32, #tpu.memory_space<vmem>>, vector<1x64xf32>
    %187 = vector.broadcast %186 : vector<1x64xf32> to vector<17x64xf32>
    %188 = arith.addf %185, %187 : vector<17x64xf32>
    %c0_132 = arith.constant 0 : index
    %c0_133 = arith.constant 0 : index
    %189 = vector.load %arg38[%c0_132, %c0_133] : memref<24x64xf32, #tpu.memory_space<vmem>>, vector<17x64xf32>
    %c0_134 = arith.constant 0 : index
    %c0_135 = arith.constant 0 : index
    %190 = vector.load %arg18[%c0_134, %c0_135] : memref<7x64xf32, #tpu.memory_space<vmem>>, vector<1x64xf32>
    %191 = vector.broadcast %190 : vector<1x64xf32> to vector<17x64xf32>
    %192 = arith.mulf %189, %191 : vector<17x64xf32>
    %193 = arith.addf %188, %192 : vector<17x64xf32>
    %c1_136 = arith.constant 1 : index
    %c0_137 = arith.constant 0 : index
    %194 = vector.load %arg38[%c1_136, %c0_137] : memref<24x64xf32, #tpu.memory_space<vmem>>, vector<17x64xf32>
    %c1_138 = arith.constant 1 : index
    %c0_139 = arith.constant 0 : index
    %195 = vector.load %arg18[%c1_138, %c0_139] : memref<7x64xf32, #tpu.memory_space<vmem>>, vector<1x64xf32>
    %196 = vector.broadcast %195 : vector<1x64xf32> to vector<17x64xf32>
    %197 = arith.mulf %194, %196 : vector<17x64xf32>
    %198 = arith.addf %193, %197 : vector<17x64xf32>
    %c2_140 = arith.constant 2 : index
    %c0_141 = arith.constant 0 : index
    %199 = vector.load %arg38[%c2_140, %c0_141] : memref<24x64xf32, #tpu.memory_space<vmem>>, vector<17x64xf32>
    %c2_142 = arith.constant 2 : index
    %c0_143 = arith.constant 0 : index
    %200 = vector.load %arg18[%c2_142, %c0_143] : memref<7x64xf32, #tpu.memory_space<vmem>>, vector<1x64xf32>
    %201 = vector.broadcast %200 : vector<1x64xf32> to vector<17x64xf32>
    %202 = arith.mulf %199, %201 : vector<17x64xf32>
    %203 = arith.addf %198, %202 : vector<17x64xf32>
    %c3_144 = arith.constant 3 : index
    %c0_145 = arith.constant 0 : index
    %204 = vector.load %arg38[%c3_144, %c0_145] : memref<24x64xf32, #tpu.memory_space<vmem>>, vector<17x64xf32>
    %c3_146 = arith.constant 3 : index
    %c0_147 = arith.constant 0 : index
    %205 = vector.load %arg18[%c3_146, %c0_147] : memref<7x64xf32, #tpu.memory_space<vmem>>, vector<1x64xf32>
    %206 = vector.broadcast %205 : vector<1x64xf32> to vector<17x64xf32>
    %207 = arith.mulf %204, %206 : vector<17x64xf32>
    %208 = arith.addf %203, %207 : vector<17x64xf32>
    %c4_148 = arith.constant 4 : index
    %c0_149 = arith.constant 0 : index
    %209 = vector.load %arg38[%c4_148, %c0_149] : memref<24x64xf32, #tpu.memory_space<vmem>>, vector<17x64xf32>
    %c4_150 = arith.constant 4 : index
    %c0_151 = arith.constant 0 : index
    %210 = vector.load %arg18[%c4_150, %c0_151] : memref<7x64xf32, #tpu.memory_space<vmem>>, vector<1x64xf32>
    %211 = vector.broadcast %210 : vector<1x64xf32> to vector<17x64xf32>
    %212 = arith.mulf %209, %211 : vector<17x64xf32>
    %213 = arith.addf %208, %212 : vector<17x64xf32>
    %c5_152 = arith.constant 5 : index
    %c0_153 = arith.constant 0 : index
    %214 = vector.load %arg38[%c5_152, %c0_153] : memref<24x64xf32, #tpu.memory_space<vmem>>, vector<17x64xf32>
    %c5_154 = arith.constant 5 : index
    %c0_155 = arith.constant 0 : index
    %215 = vector.load %arg18[%c5_154, %c0_155] : memref<7x64xf32, #tpu.memory_space<vmem>>, vector<1x64xf32>
    %216 = vector.broadcast %215 : vector<1x64xf32> to vector<17x64xf32>
    %217 = arith.mulf %214, %216 : vector<17x64xf32>
    %218 = arith.addf %213, %217 : vector<17x64xf32>
    %c6_156 = arith.constant 6 : index
    %c0_157 = arith.constant 0 : index
    %219 = vector.load %arg38[%c6_156, %c0_157] : memref<24x64xf32, #tpu.memory_space<vmem>>, vector<17x64xf32>
    %c6_158 = arith.constant 6 : index
    %c0_159 = arith.constant 0 : index
    %220 = vector.load %arg18[%c6_158, %c0_159] : memref<7x64xf32, #tpu.memory_space<vmem>>, vector<1x64xf32>
    %221 = vector.broadcast %220 : vector<1x64xf32> to vector<17x64xf32>
    %222 = arith.mulf %219, %221 : vector<17x64xf32>
    %223 = arith.addf %218, %222 : vector<17x64xf32>
    %c0_160 = arith.constant 0 : index
    %c0_161 = arith.constant 0 : index
    %224 = vector.load %arg20[%c0_160, %c0_161] : memref<1x64xf32, #tpu.memory_space<vmem>>, vector<1x64xf32>
    %c0_162 = arith.constant 0 : index
    %c0_163 = arith.constant 0 : index
    %225 = vector.load %arg21[%c0_162, %c0_163] : memref<1x64xf32, #tpu.memory_space<vmem>>, vector<1x64xf32>
    %cst_164 = arith.constant dense<0.000000e+00> : vector<17xf32>
    %226 = vector.multi_reduction <add>, %223, %cst_164 [1] : vector<17x64xf32> to vector<17xf32>
    %227 = vector.shape_cast %226 : vector<17xf32> to vector<17x1xf32>
    %cst_165 = arith.constant 6.400000e+01 : f32
    %228 = vector.broadcast %cst_165 : f32 to vector<17x1xf32>
    %229 = arith.divf %227, %228 : vector<17x1xf32>
    %230 = vector.broadcast %229 : vector<17x1xf32> to vector<17x64xf32>
    %231 = arith.subf %223, %230 : vector<17x64xf32>
    %232 = arith.mulf %231, %231 : vector<17x64xf32>
    %cst_166 = arith.constant dense<0.000000e+00> : vector<17xf32>
    %233 = vector.multi_reduction <add>, %232, %cst_166 [1] : vector<17x64xf32> to vector<17xf32>
    %234 = vector.shape_cast %233 : vector<17xf32> to vector<17x1xf32>
    %cst_167 = arith.constant 6.400000e+01 : f32
    %235 = vector.broadcast %cst_167 : f32 to vector<17x1xf32>
    %236 = arith.divf %234, %235 : vector<17x1xf32>
    %cst_168 = arith.constant 9.99999997E-7 : f32
    %237 = vector.broadcast %cst_168 : f32 to vector<17x1xf32>
    %238 = arith.addf %236, %237 : vector<17x1xf32>
    %239 = math.rsqrt %238 : vector<17x1xf32>
    %240 = vector.broadcast %239 : vector<17x1xf32> to vector<17x64xf32>
    %241 = arith.mulf %231, %240 : vector<17x64xf32>
    %242 = vector.broadcast %224 : vector<1x64xf32> to vector<17x64xf32>
    %243 = arith.mulf %241, %242 : vector<17x64xf32>
    %244 = vector.broadcast %225 : vector<1x64xf32> to vector<17x64xf32>
    %245 = arith.addf %243, %244 : vector<17x64xf32>
    %c0_169 = arith.constant 0 : index
    %c0_170 = arith.constant 0 : index
    %246 = vector.load %arg22[%c0_169, %c0_170] : memref<64x128xf32, #tpu.memory_space<vmem>>, vector<64x128xf32>
    %cst_171 = arith.constant dense<0.000000e+00> : vector<17x128xf32>
    %247 = tpu.matmul %245, %246, %cst_171 {dimension_numbers = #tpu.dot_dimension_numbers<[1], [0], [0], [1], [0, 0, 1, 1], [], []>} : vector<17x64xf32>, vector<64x128xf32>, vector<17x128xf32> -> vector<17x128xf32>
    %c0_172 = arith.constant 0 : index
    %c0_173 = arith.constant 0 : index
    %248 = vector.load %arg23[%c0_172, %c0_173] : memref<1x128xf32, #tpu.memory_space<vmem>>, vector<1x128xf32>
    %249 = vector.broadcast %248 : vector<1x128xf32> to vector<17x128xf32>
    %250 = arith.addf %247, %249 : vector<17x128xf32>
    %cst_174 = arith.constant 5.000000e-01 : f32
    %251 = vector.broadcast %cst_174 : f32 to vector<17x128xf32>
    %252 = arith.mulf %251, %250 : vector<17x128xf32>
    %cst_175 = arith.constant 0.707106769 : f32
    %253 = vector.broadcast %cst_175 : f32 to vector<17x128xf32>
    %254 = arith.mulf %250, %253 : vector<17x128xf32>
    %cst_176 = arith.constant 0.000000e+00 : f32
    %255 = vector.broadcast %cst_176 : f32 to vector<17x128xf32>
    %256 = arith.cmpf olt, %254, %255 : vector<17x128xf32>
    %cst_177 = arith.constant -1.000000e+00 : f32
    %cst_178 = arith.constant 1.000000e+00 : f32
    %257 = vector.broadcast %cst_177 : f32 to vector<17x128xf32>
    %258 = vector.broadcast %cst_178 : f32 to vector<17x128xf32>
    %259 = arith.select %256, %257, %258 : vector<17x128xi1>, vector<17x128xf32>
    %260 = math.absf %254 : vector<17x128xf32>
    %cst_179 = arith.constant 0.327591091 : f32
    %261 = vector.broadcast %cst_179 : f32 to vector<17x128xf32>
    %262 = arith.mulf %261, %260 : vector<17x128xf32>
    %cst_180 = arith.constant 1.000000e+00 : f32
    %263 = vector.broadcast %cst_180 : f32 to vector<17x128xf32>
    %264 = arith.addf %263, %262 : vector<17x128xf32>
    %cst_181 = arith.constant 1.000000e+00 : f32
    %265 = vector.broadcast %cst_181 : f32 to vector<17x128xf32>
    %266 = arith.divf %265, %264 : vector<17x128xf32>
    %cst_182 = arith.constant 1.06140542 : f32
    %267 = vector.broadcast %cst_182 : f32 to vector<17x128xf32>
    %268 = arith.mulf %267, %266 : vector<17x128xf32>
    %cst_183 = arith.constant -1.45315206 : f32
    %269 = vector.broadcast %cst_183 : f32 to vector<17x128xf32>
    %270 = arith.addf %268, %269 : vector<17x128xf32>
    %271 = arith.mulf %270, %266 : vector<17x128xf32>
    %cst_184 = arith.constant 1.42141378 : f32
    %272 = vector.broadcast %cst_184 : f32 to vector<17x128xf32>
    %273 = arith.addf %271, %272 : vector<17x128xf32>
    %274 = arith.mulf %273, %266 : vector<17x128xf32>
    %cst_185 = arith.constant -0.284496725 : f32
    %275 = vector.broadcast %cst_185 : f32 to vector<17x128xf32>
    %276 = arith.addf %274, %275 : vector<17x128xf32>
    %277 = arith.mulf %276, %266 : vector<17x128xf32>
    %cst_186 = arith.constant 0.254829586 : f32
    %278 = vector.broadcast %cst_186 : f32 to vector<17x128xf32>
    %279 = arith.addf %277, %278 : vector<17x128xf32>
    %280 = arith.mulf %279, %266 : vector<17x128xf32>
    %cst_187 = arith.constant 0.000000e+00 : f32
    %281 = vector.broadcast %cst_187 : f32 to vector<17x128xf32>
    %282 = arith.subf %281, %260 : vector<17x128xf32>
    %283 = arith.mulf %282, %260 : vector<17x128xf32>
    %284 = math.exp %283 : vector<17x128xf32>
    %285 = arith.mulf %280, %284 : vector<17x128xf32>
    %cst_188 = arith.constant 1.000000e+00 : f32
    %286 = vector.broadcast %cst_188 : f32 to vector<17x128xf32>
    %287 = arith.subf %286, %285 : vector<17x128xf32>
    %288 = arith.mulf %259, %287 : vector<17x128xf32>
    %cst_189 = arith.constant 1.000000e+00 : f32
    %289 = vector.broadcast %cst_189 : f32 to vector<17x128xf32>
    %290 = arith.addf %289, %288 : vector<17x128xf32>
    %291 = arith.mulf %252, %290 : vector<17x128xf32>
    %c0_190 = arith.constant 0 : index
    %c0_191 = arith.constant 0 : index
    %292 = vector.load %arg24[%c0_190, %c0_191] : memref<128x64xf32, #tpu.memory_space<vmem>>, vector<128x64xf32>
    %cst_192 = arith.constant dense<0.000000e+00> : vector<17x64xf32>
    %293 = tpu.matmul %291, %292, %cst_192 {dimension_numbers = #tpu.dot_dimension_numbers<[1], [0], [0], [1], [0, 0, 1, 1], [], []>} : vector<17x128xf32>, vector<128x64xf32>, vector<17x64xf32> -> vector<17x64xf32>
    %c0_193 = arith.constant 0 : index
    %c0_194 = arith.constant 0 : index
    %294 = vector.load %arg25[%c0_193, %c0_194] : memref<1x64xf32, #tpu.memory_space<vmem>>, vector<1x64xf32>
    %295 = vector.broadcast %294 : vector<1x64xf32> to vector<17x64xf32>
    %296 = arith.addf %293, %295 : vector<17x64xf32>
    %c3_195 = arith.constant 3 : index
    %c0_196 = arith.constant 0 : index
    %297 = vector.load %arg38[%c3_195, %c0_196] : memref<24x64xf32, #tpu.memory_space<vmem>>, vector<17x64xf32>
    %c0_197 = arith.constant 0 : index
    %c0_198 = arith.constant 0 : index
    %298 = vector.load %arg26[%c0_197, %c0_198] : memref<1x64xf32, #tpu.memory_space<vmem>>, vector<1x64xf32>
    %299 = vector.broadcast %298 : vector<1x64xf32> to vector<17x64xf32>
    %300 = arith.mulf %299, %296 : vector<17x64xf32>
    %301 = arith.addf %297, %300 : vector<17x64xf32>
    %c3_199 = arith.constant 3 : index
    %c0_200 = arith.constant 0 : index
    %302 = vector.load %arg38[%c3_199, %c0_200] : memref<24x64xf32, #tpu.memory_space<vmem>>, vector<17x64xf32>
    tpu.vector_store %arg38[%c3_199, %c0_200], %301 {strides = array<i32>} : memref<24x64xf32, #tpu.memory_space<vmem>>, vector<17x64xf32>,
    %c3_201 = arith.constant 3 : index
    %c0_202 = arith.constant 0 : index
    %303 = vector.load %arg38[%c3_201, %c0_202] : memref<24x64xf32, #tpu.memory_space<vmem>>, vector<17x64xf32>
    %c0_203 = arith.constant 0 : index
    %c0_204 = arith.constant 0 : index
    %304 = vector.load %arg27[%c0_203, %c0_204] : memref<1x64xf32, #tpu.memory_space<vmem>>, vector<1x64xf32>
    %c0_205 = arith.constant 0 : index
    %c0_206 = arith.constant 0 : index
    %305 = vector.load %arg28[%c0_205, %c0_206] : memref<1x64xf32, #tpu.memory_space<vmem>>, vector<1x64xf32>
    %cst_207 = arith.constant dense<0.000000e+00> : vector<17xf32>
    %306 = vector.multi_reduction <add>, %303, %cst_207 [1] : vector<17x64xf32> to vector<17xf32>
    %307 = vector.shape_cast %306 : vector<17xf32> to vector<17x1xf32>
    %cst_208 = arith.constant 6.400000e+01 : f32
    %308 = vector.broadcast %cst_208 : f32 to vector<17x1xf32>
    %309 = arith.divf %307, %308 : vector<17x1xf32>
    %310 = vector.broadcast %309 : vector<17x1xf32> to vector<17x64xf32>
    %311 = arith.subf %303, %310 : vector<17x64xf32>
    %312 = arith.mulf %311, %311 : vector<17x64xf32>
    %cst_209 = arith.constant dense<0.000000e+00> : vector<17xf32>
    %313 = vector.multi_reduction <add>, %312, %cst_209 [1] : vector<17x64xf32> to vector<17xf32>
    %314 = vector.shape_cast %313 : vector<17xf32> to vector<17x1xf32>
    %cst_210 = arith.constant 6.400000e+01 : f32
    %315 = vector.broadcast %cst_210 : f32 to vector<17x1xf32>
    %316 = arith.divf %314, %315 : vector<17x1xf32>
    %cst_211 = arith.constant 9.99999997E-7 : f32
    %317 = vector.broadcast %cst_211 : f32 to vector<17x1xf32>
    %318 = arith.addf %316, %317 : vector<17x1xf32>
    %319 = math.rsqrt %318 : vector<17x1xf32>
    %320 = vector.broadcast %319 : vector<17x1xf32> to vector<17x64xf32>
    %321 = arith.mulf %311, %320 : vector<17x64xf32>
    %322 = vector.broadcast %304 : vector<1x64xf32> to vector<17x64xf32>
    %323 = arith.mulf %321, %322 : vector<17x64xf32>
    %324 = vector.broadcast %305 : vector<1x64xf32> to vector<17x64xf32>
    %325 = arith.addf %323, %324 : vector<17x64xf32>
    %c0_212 = arith.constant 0 : index
    %c0_213 = arith.constant 0 : index
    %326 = vector.load %arg29[%c0_212, %c0_213] : memref<64x64xf32, #tpu.memory_space<vmem>>, vector<64x64xf32>
    %cst_214 = arith.constant dense<0.000000e+00> : vector<17x64xf32>
    %327 = tpu.matmul %325, %326, %cst_214 {dimension_numbers = #tpu.dot_dimension_numbers<[1], [0], [0], [1], [0, 0, 1, 1], [], []>} : vector<17x64xf32>, vector<64x64xf32>, vector<17x64xf32> -> vector<17x64xf32>
    %c0_215 = arith.constant 0 : index
    %c0_216 = arith.constant 0 : index
    %328 = vector.load %arg30[%c0_215, %c0_216] : memref<1x64xf32, #tpu.memory_space<vmem>>, vector<1x64xf32>
    %329 = vector.broadcast %328 : vector<1x64xf32> to vector<17x64xf32>
    %330 = arith.addf %327, %329 : vector<17x64xf32>
    %c0_217 = arith.constant 0 : index
    %c0_218 = arith.constant 0 : index
    %331 = vector.load %arg31[%c0_217, %c0_218] : memref<64x64xf32, #tpu.memory_space<vmem>>, vector<64x64xf32>
    %cst_219 = arith.constant dense<0.000000e+00> : vector<17x64xf32>
    %332 = tpu.matmul %325, %331, %cst_219 {dimension_numbers = #tpu.dot_dimension_numbers<[1], [0], [0], [1], [0, 0, 1, 1], [], []>} : vector<17x64xf32>, vector<64x64xf32>, vector<17x64xf32> -> vector<17x64xf32>
    %c0_220 = arith.constant 0 : index
    %c0_221 = arith.constant 0 : index
    %333 = vector.load %arg32[%c0_220, %c0_221] : memref<1x64xf32, #tpu.memory_space<vmem>>, vector<1x64xf32>
    %334 = vector.broadcast %333 : vector<1x64xf32> to vector<17x64xf32>
    %335 = arith.addf %332, %334 : vector<17x64xf32>
    %336 = math.exp %330 : vector<17x64xf32>
    %cst_222 = arith.constant 1.000000e+02 : f32
    %337 = vector.broadcast %cst_222 : f32 to vector<17x64xf32>
    %338 = arith.minimumf %336, %337 : vector<17x64xf32>
    %339 = math.cos %335 : vector<17x64xf32>
    %340 = arith.mulf %338, %339 : vector<17x64xf32>
    %341 = math.sin %335 : vector<17x64xf32>
    %342 = arith.mulf %338, %341 : vector<17x64xf32>
    %c0_223 = arith.constant 0 : index
    %c0_224 = arith.constant 0 : index
    %343 = vector.load %arg33[%c0_223, %c0_224] : memref<64x64xf32, #tpu.memory_space<vmem>>, vector<64x64xf32>
    %cst_225 = arith.constant dense<0.000000e+00> : vector<17x64xf32>
    %344 = tpu.matmul %340, %343, %cst_225 {dimension_numbers = #tpu.dot_dimension_numbers<[1], [0], [0], [1], [0, 0, 1, 1], [], []>} : vector<17x64xf32>, vector<64x64xf32>, vector<17x64xf32> -> vector<17x64xf32>
    %c0_226 = arith.constant 0 : index
    %c0_227 = arith.constant 0 : index
    %345 = vector.load %arg34[%c0_226, %c0_227] : memref<64x64xf32, #tpu.memory_space<vmem>>, vector<64x64xf32>
    %cst_228 = arith.constant dense<0.000000e+00> : vector<17x64xf32>
    %346 = tpu.matmul %342, %345, %cst_228 {dimension_numbers = #tpu.dot_dimension_numbers<[1], [0], [0], [1], [0, 0, 1, 1], [], []>} : vector<17x64xf32>, vector<64x64xf32>, vector<17x64xf32> -> vector<17x64xf32>
    %347 = arith.addf %344, %346 : vector<17x64xf32>
    %cst_229 = arith.constant 0.000000e+00 : f32
    %348 = vector.broadcast %cst_229 : f32 to vector<20x16xf32>
    %c0_230 = arith.constant 0 : index
    %c0_231 = arith.constant 0 : index
    %349 = vector.load %arg39[%c0_230, %c0_231] : memref<20x16xf32, #tpu.memory_space<vmem>>, vector<20x16xf32>
    tpu.vector_store %arg39[%c0_230, %c0_231], %348 {strides = array<i32>} : memref<20x16xf32, #tpu.memory_space<vmem>>, vector<20x16xf32>,
    %c0_232 = arith.constant 0 : index
    %c0_233 = arith.constant 0 : index
    %350 = vector.load %arg39[%c0_232, %c0_233] : memref<20x16xf32, #tpu.memory_space<vmem>>, vector<17x16xf32>
    %351 = vector.extract_strided_slice %347 {offsets = [0, 0], sizes = [17, 16], strides = [1, 1]} : vector<17x64xf32> to vector<17x16xf32>
    %352 = arith.addf %350, %351 : vector<17x16xf32>
    %c0_234 = arith.constant 0 : index
    %c0_235 = arith.constant 0 : index
    %353 = vector.load %arg39[%c0_234, %c0_235] : memref<20x16xf32, #tpu.memory_space<vmem>>, vector<17x16xf32>
    tpu.vector_store %arg39[%c0_234, %c0_235], %352 {strides = array<i32>} : memref<20x16xf32, #tpu.memory_space<vmem>>, vector<17x16xf32>,
    %c1_236 = arith.constant 1 : index
    %c0_237 = arith.constant 0 : index
    %354 = vector.load %arg39[%c1_236, %c0_237] : memref<20x16xf32, #tpu.memory_space<vmem>>, vector<17x16xf32>
    %355 = vector.extract_strided_slice %347 {offsets = [0, 16], sizes = [17, 16], strides = [1, 1]} : vector<17x64xf32> to vector<17x16xf32>
    %356 = arith.addf %354, %355 : vector<17x16xf32>
    %c1_238 = arith.constant 1 : index
    %c0_239 = arith.constant 0 : index
    %357 = vector.load %arg39[%c1_238, %c0_239] : memref<20x16xf32, #tpu.memory_space<vmem>>, vector<17x16xf32>
    tpu.vector_store %arg39[%c1_238, %c0_239], %356 {strides = array<i32>} : memref<20x16xf32, #tpu.memory_space<vmem>>, vector<17x16xf32>,
    %c2_240 = arith.constant 2 : index
    %c0_241 = arith.constant 0 : index
    %358 = vector.load %arg39[%c2_240, %c0_241] : memref<20x16xf32, #tpu.memory_space<vmem>>, vector<17x16xf32>
    %359 = vector.extract_strided_slice %347 {offsets = [0, 32], sizes = [17, 16], strides = [1, 1]} : vector<17x64xf32> to vector<17x16xf32>
    %360 = arith.addf %358, %359 : vector<17x16xf32>
    %c2_242 = arith.constant 2 : index
    %c0_243 = arith.constant 0 : index
    %361 = vector.load %arg39[%c2_242, %c0_243] : memref<20x16xf32, #tpu.memory_space<vmem>>, vector<17x16xf32>
    tpu.vector_store %arg39[%c2_242, %c0_243], %360 {strides = array<i32>} : memref<20x16xf32, #tpu.memory_space<vmem>>, vector<17x16xf32>,
    %c3_244 = arith.constant 3 : index
    %c0_245 = arith.constant 0 : index
    %362 = vector.load %arg39[%c3_244, %c0_245] : memref<20x16xf32, #tpu.memory_space<vmem>>, vector<17x16xf32>
    %363 = vector.extract_strided_slice %347 {offsets = [0, 48], sizes = [17, 16], strides = [1, 1]} : vector<17x64xf32> to vector<17x16xf32>
    %364 = arith.addf %362, %363 : vector<17x16xf32>
    %c3_246 = arith.constant 3 : index
    %c0_247 = arith.constant 0 : index
    %365 = vector.load %arg39[%c3_246, %c0_247] : memref<20x16xf32, #tpu.memory_space<vmem>>, vector<17x16xf32>
    tpu.vector_store %arg39[%c3_246, %c0_247], %364 {strides = array<i32>} : memref<20x16xf32, #tpu.memory_space<vmem>>, vector<17x16xf32>,
    %c2_248 = arith.constant 2 : index
    %c0_249 = arith.constant 0 : index
    %366 = vector.load %arg39[%c2_248, %c0_249] : memref<20x16xf32, #tpu.memory_space<vmem>>, vector<16x16xf32>
    %c0_250 = arith.constant 0 : index
    %c0_251 = arith.constant 0 : index
    %367 = vector.load %arg35[%c0_250, %c0_251] : memref<16x16xf32, #tpu.memory_space<vmem>>, vector<16x16xf32>
    %368 = arith.mulf %366, %367 : vector<16x16xf32>
    %c0_252 = arith.constant 0 : index
    %c0_253 = arith.constant 0 : index
    %c0_254 = arith.constant 0 : index
    %369 = vector.load %arg36[%c0_252, %c0_253, %c0_254] : memref<1x16x16xf32, #tpu.memory_space<vmem>>, vector<1x16x16xf32>
    %370 = vector.shape_cast %369 : vector<1x16x16xf32> to vector<16x16xf32>
    %371 = vector.shape_cast %368 : vector<16x16xf32> to vector<1x16x16xf32>
    tpu.vector_store %arg36[%c0_252, %c0_253, %c0_254], %371 {strides = array<i32>} : memref<1x16x16xf32, #tpu.memory_space<vmem>>, vector<1x16x16xf32>,
    return
  }
  func.func @transform_0(%arg0: i32) -> (i32, i32, i32) {
    %c0_i32 = arith.constant 0 : i32
    %c0_i32_0 = arith.constant 0 : i32
    %c0_i32_1 = arith.constant 0 : i32
    return %arg0, %c0_i32, %c0_i32_0 : i32, i32, i32
  }
  func.func @transform_1(%arg0: i32) -> (i32, i32) {
    %c0_i32 = arith.constant 0 : i32
    %c0_i32_0 = arith.constant 0 : i32
    %c0_i32_1 = arith.constant 0 : i32
    return %c0_i32, %c0_i32_0 : i32, i32
  }
  func.func @transform_2(%arg0: i32) -> (i32, i32) {
    %c0_i32 = arith.constant 0 : i32
    %c0_i32_0 = arith.constant 0 : i32
    %c0_i32_1 = arith.constant 0 : i32
    return %c0_i32, %c0_i32_0 : i32, i32
  }
  func.func @transform_3(%arg0: i32) -> (i32, i32) {
    %c0_i32 = arith.constant 0 : i32
    %c0_i32_0 = arith.constant 0 : i32
    %c0_i32_1 = arith.constant 0 : i32
    return %c0_i32, %c0_i32_0 : i32, i32
  }
  func.func @transform_4(%arg0: i32) -> (i32, i32) {
    %c0_i32 = arith.constant 0 : i32
    %c0_i32_0 = arith.constant 0 : i32
    %c0_i32_1 = arith.constant 0 : i32
    return %c0_i32, %c0_i32_0 : i32, i32
  }
  func.func @transform_5(%arg0: i32) -> (i32, i32) {
    %c0_i32 = arith.constant 0 : i32
    %c0_i32_0 = arith.constant 0 : i32
    %c0_i32_1 = arith.constant 0 : i32
    return %c0_i32, %c0_i32_0 : i32, i32
  }
  func.func @transform_6(%arg0: i32) -> (i32, i32) {
    %c0_i32 = arith.constant 0 : i32
    %c0_i32_0 = arith.constant 0 : i32
    %c0_i32_1 = arith.constant 0 : i32
    return %c0_i32, %c0_i32_0 : i32, i32
  }
  func.func @transform_7(%arg0: i32) -> (i32, i32) {
    %c0_i32 = arith.constant 0 : i32
    %c0_i32_0 = arith.constant 0 : i32
    %c0_i32_1 = arith.constant 0 : i32
    return %c0_i32, %c0_i32_0 : i32, i32
  }
  func.func @transform_8(%arg0: i32) -> (i32, i32) {
    %c0_i32 = arith.constant 0 : i32
    %c0_i32_0 = arith.constant 0 : i32
    %c0_i32_1 = arith.constant 0 : i32
    return %c0_i32, %c0_i32_0 : i32, i32
  }
  func.func @transform_9(%arg0: i32) -> (i32, i32) {
    %c0_i32 = arith.constant 0 : i32
    %c0_i32_0 = arith.constant 0 : i32
    %c0_i32_1 = arith.constant 0 : i32
    return %c0_i32, %c0_i32_0 : i32, i32
  }
  func.func @transform_10(%arg0: i32) -> (i32, i32) {
    %c0_i32 = arith.constant 0 : i32
    %c0_i32_0 = arith.constant 0 : i32
    %c0_i32_1 = arith.constant 0 : i32
    return %c0_i32, %c0_i32_0 : i32, i32
  }
  func.func @transform_11(%arg0: i32) -> (i32, i32) {
    %c0_i32 = arith.constant 0 : i32
    %c0_i32_0 = arith.constant 0 : i32
    %c0_i32_1 = arith.constant 0 : i32
    return %c0_i32, %c0_i32_0 : i32, i32
  }
  func.func @transform_12(%arg0: i32) -> (i32, i32) {
    %c0_i32 = arith.constant 0 : i32
    %c0_i32_0 = arith.constant 0 : i32
    %c0_i32_1 = arith.constant 0 : i32
    return %c0_i32, %c0_i32_0 : i32, i32
  }
  func.func @transform_13(%arg0: i32) -> (i32, i32) {
    %c0_i32 = arith.constant 0 : i32
    %c0_i32_0 = arith.constant 0 : i32
    %c0_i32_1 = arith.constant 0 : i32
    return %c0_i32, %c0_i32_0 : i32, i32
  }
  func.func @transform_14(%arg0: i32) -> (i32, i32) {
    %c0_i32 = arith.constant 0 : i32
    %c0_i32_0 = arith.constant 0 : i32
    %c0_i32_1 = arith.constant 0 : i32
    return %c0_i32, %c0_i32_0 : i32, i32
  }
  func.func @transform_15(%arg0: i32) -> (i32, i32) {
    %c0_i32 = arith.constant 0 : i32
    %c0_i32_0 = arith.constant 0 : i32
    %c0_i32_1 = arith.constant 0 : i32
    return %c0_i32, %c0_i32_0 : i32, i32
  }
  func.func @transform_16(%arg0: i32) -> (i32, i32) {
    %c0_i32 = arith.constant 0 : i32
    %c0_i32_0 = arith.constant 0 : i32
    %c0_i32_1 = arith.constant 0 : i32
    return %c0_i32, %c0_i32_0 : i32, i32
  }
  func.func @transform_17(%arg0: i32) -> (i32, i32) {
    %c0_i32 = arith.constant 0 : i32
    %c0_i32_0 = arith.constant 0 : i32
    %c0_i32_1 = arith.constant 0 : i32
    return %c0_i32, %c0_i32_0 : i32, i32
  }
  func.func @transform_18(%arg0: i32) -> (i32, i32) {
    %c0_i32 = arith.constant 0 : i32
    %c0_i32_0 = arith.constant 0 : i32
    %c0_i32_1 = arith.constant 0 : i32
    return %c0_i32, %c0_i32_0 : i32, i32
  }
  func.func @transform_19(%arg0: i32) -> (i32, i32) {
    %c0_i32 = arith.constant 0 : i32
    %c0_i32_0 = arith.constant 0 : i32
    %c0_i32_1 = arith.constant 0 : i32
    return %c0_i32, %c0_i32_0 : i32, i32
  }
  func.func @transform_20(%arg0: i32) -> (i32, i32) {
    %c0_i32 = arith.constant 0 : i32
    %c0_i32_0 = arith.constant 0 : i32
    %c0_i32_1 = arith.constant 0 : i32
    return %c0_i32, %c0_i32_0 : i32, i32
  }
  func.func @transform_21(%arg0: i32) -> (i32, i32) {
    %c0_i32 = arith.constant 0 : i32
    %c0_i32_0 = arith.constant 0 : i32
    %c0_i32_1 = arith.constant 0 : i32
    return %c0_i32, %c0_i32_0 : i32, i32
  }
  func.func @transform_22(%arg0: i32) -> (i32, i32) {
    %c0_i32 = arith.constant 0 : i32
    %c0_i32_0 = arith.constant 0 : i32
    %c0_i32_1 = arith.constant 0 : i32
    return %c0_i32, %c0_i32_0 : i32, i32
  }
  func.func @transform_23(%arg0: i32) -> (i32, i32) {
    %c0_i32 = arith.constant 0 : i32
    %c0_i32_0 = arith.constant 0 : i32
    %c0_i32_1 = arith.constant 0 : i32
    return %c0_i32, %c0_i32_0 : i32, i32
  }
  func.func @transform_24(%arg0: i32) -> (i32, i32) {
    %c0_i32 = arith.constant 0 : i32
    %c0_i32_0 = arith.constant 0 : i32
    %c0_i32_1 = arith.constant 0 : i32
    return %c0_i32, %c0_i32_0 : i32, i32
  }
  func.func @transform_25(%arg0: i32) -> (i32, i32) {
    %c0_i32 = arith.constant 0 : i32
    %c0_i32_0 = arith.constant 0 : i32
    %c0_i32_1 = arith.constant 0 : i32
    return %c0_i32, %c0_i32_0 : i32, i32
  }
  func.func @transform_26(%arg0: i32) -> (i32, i32) {
    %c0_i32 = arith.constant 0 : i32
    %c0_i32_0 = arith.constant 0 : i32
    %c0_i32_1 = arith.constant 0 : i32
    return %c0_i32, %c0_i32_0 : i32, i32
  }
  func.func @transform_27(%arg0: i32) -> (i32, i32) {
    %c0_i32 = arith.constant 0 : i32
    %c0_i32_0 = arith.constant 0 : i32
    %c0_i32_1 = arith.constant 0 : i32
    return %c0_i32, %c0_i32_0 : i32, i32
  }
  func.func @transform_28(%arg0: i32) -> (i32, i32) {
    %c0_i32 = arith.constant 0 : i32
    %c0_i32_0 = arith.constant 0 : i32
    %c0_i32_1 = arith.constant 0 : i32
    return %c0_i32, %c0_i32_0 : i32, i32
  }
  func.func @transform_29(%arg0: i32) -> (i32, i32) {
    %c0_i32 = arith.constant 0 : i32
    %c0_i32_0 = arith.constant 0 : i32
    %c0_i32_1 = arith.constant 0 : i32
    return %c0_i32, %c0_i32_0 : i32, i32
  }
  func.func @transform_30(%arg0: i32) -> (i32, i32) {
    %c0_i32 = arith.constant 0 : i32
    %c0_i32_0 = arith.constant 0 : i32
    %c0_i32_1 = arith.constant 0 : i32
    return %c0_i32, %c0_i32_0 : i32, i32
  }
  func.func @transform_31(%arg0: i32) -> (i32, i32) {
    %c0_i32 = arith.constant 0 : i32
    %c0_i32_0 = arith.constant 0 : i32
    %c0_i32_1 = arith.constant 0 : i32
    return %c0_i32, %c0_i32_0 : i32, i32
  }
  func.func @transform_32(%arg0: i32) -> (i32, i32) {
    %c0_i32 = arith.constant 0 : i32
    %c0_i32_0 = arith.constant 0 : i32
    %c0_i32_1 = arith.constant 0 : i32
    return %c0_i32, %c0_i32_0 : i32, i32
  }
  func.func @transform_33(%arg0: i32) -> (i32, i32) {
    %c0_i32 = arith.constant 0 : i32
    %c0_i32_0 = arith.constant 0 : i32
    %c0_i32_1 = arith.constant 0 : i32
    return %c0_i32, %c0_i32_0 : i32, i32
  }
  func.func @transform_34(%arg0: i32) -> (i32, i32) {
    %c0_i32 = arith.constant 0 : i32
    %c0_i32_0 = arith.constant 0 : i32
    %c0_i32_1 = arith.constant 0 : i32
    return %c0_i32, %c0_i32_0 : i32, i32
  }
  func.func @transform_35(%arg0: i32) -> (i32, i32, i32) {
    %c0_i32 = arith.constant 0 : i32
    %c0_i32_0 = arith.constant 0 : i32
    %c0_i32_1 = arith.constant 0 : i32
    return %arg0, %c0_i32, %c0_i32_0 : i32, i32, i32
  }
}

</mosaic_0001>

<llo_original>
// kernel: forward.1
$region0: #{forward.1}
  #allocation0 [shape = 'u32[]', space=smem, size = 0x4, offset = 0x4, fixed_abs, tag = 'smem constant byte address 0x4 - core index']
  #allocation1 [shape = 'u32[72,128]{1,0:T(1,128)}', space=vmem, size = 0x9000, scoped, tag = 'internal scratch']
  #allocation2 [shape = 'f32[24,32]{1,0:T(8,128)}', space=vmem, size = 0x3000, scoped, tag = 'scratch operand']
  #allocation3 [shape = 'f32[24,64]{1,0:T(8,128)}', space=vmem, size = 0x3000, scoped, tag = 'scratch operand']
  #allocation4 [shape = 'f32[20,16]{1,0:T(8,128)}', space=vmem, size = 0x3000, scoped, tag = 'scratch operand']
  %s0 = inlined_call_operand.smem [shape: u32[36], index: -1, kind: input, shape index: {}]
  %s1 = sld [smem:[%s0]]
  %s2 = scalar_lea.smem %s0, 1
  %s3 = sld [smem:[%s2]]
  %s4 = scalar_lea.smem %s0, 2
  %s5 = sld [smem:[%s4]]
  %s6 = scalar_lea.smem %s0, 3
  %s7 = sld [smem:[%s6]]
  %s8 = scalar_lea.smem %s0, 4
  %s9 = sld [smem:[%s8]]
  %s10 = scalar_lea.smem %s0, 5
  %s11 = sld [smem:[%s10]]
  %s12 = scalar_lea.smem %s0, 6
  %s13 = sld [smem:[%s12]]
  %s14 = scalar_lea.smem %s0, 7
  %s15 = sld [smem:[%s14]]
  %s16 = scalar_lea.smem %s0, 8
  %s17 = sld [smem:[%s16]]
  %s18 = scalar_lea.smem %s0, 9
  %s19 = sld [smem:[%s18]]
  %s20 = scalar_lea.smem %s0, 10
  %s21 = sld [smem:[%s20]]
  %s22 = scalar_lea.smem %s0, 11
  %s23 = sld [smem:[%s22]]
  %s24 = scalar_lea.smem %s0, 12
  %s25 = sld [smem:[%s24]]
  %s26 = scalar_lea.smem %s0, 13
  %s27 = sld [smem:[%s26]]
  %s28 = scalar_lea.smem %s0, 14
  %s29 = sld [smem:[%s28]]
  %s30 = scalar_lea.smem %s0, 15
  %s31 = sld [smem:[%s30]]
  %s32 = scalar_lea.smem %s0, 16
  %s33 = sld [smem:[%s32]]
  %s34 = scalar_lea.smem %s0, 17
  %s35 = sld [smem:[%s34]]
  %s36 = scalar_lea.smem %s0, 18
  %s37 = sld [smem:[%s36]]
  %s38 = scalar_lea.smem %s0, 19
  %s39 = sld [smem:[%s38]]
  %s40 = scalar_lea.smem %s0, 20
  %s41 = sld [smem:[%s40]]
  %s42 = scalar_lea.smem %s0, 21
  %s43 = sld [smem:[%s42]]
  %s44 = scalar_lea.smem %s0, 22
  %s45 = sld [smem:[%s44]]
  %s46 = scalar_lea.smem %s0, 23
  %s47 = sld [smem:[%s46]]
  %s48 = scalar_lea.smem %s0, 24
  %s49 = sld [smem:[%s48]]
  %s50 = scalar_lea.smem %s0, 25
  %s51 = sld [smem:[%s50]]
  %s52 = scalar_lea.smem %s0, 26
  %s53 = sld [smem:[%s52]]
  %s54 = scalar_lea.smem %s0, 27
  %s55 = sld [smem:[%s54]]
  %s56 = scalar_lea.smem %s0, 28
  %s57 = sld [smem:[%s56]]
  %s58 = scalar_lea.smem %s0, 29
  %s59 = sld [smem:[%s58]]
  %s60 = scalar_lea.smem %s0, 30
  %s61 = sld [smem:[%s60]]
  %s62 = scalar_lea.smem %s0, 31
  %s63 = sld [smem:[%s62]]
  %s64 = scalar_lea.smem %s0, 32
  %s65 = sld [smem:[%s64]]
  %s66 = scalar_lea.smem %s0, 33
  %s67 = sld [smem:[%s66]]
  %s68 = scalar_lea.smem %s0, 34
  %s69 = sld [smem:[%s68]]
  %s70 = scalar_lea.smem %s0, 35
  %s71 = sld [smem:[%s70]]
  %s72 = sld [smem:[#allocation0]]
  $region221: #{forward.1} parent=0
    _
  %s74 = ssub.s32 1, %s72
  %s75 = scalar_select 0, %s74, %s72
  $region1: #{forward.1} parent=0
    #allocation5 [shape = 'u8[32768]{0}', space=vmem, size = 0x8000, scoped, tag = 'input window, operand 1, single buffered']
    #allocation6 [shape = 's32[2]{0}', space=sflag, size = 0x8, scoped, tag = 'scoped memory for forward.1']
    #allocation7 [shape = 'u8[32768]{0}', space=vmem, size = 0x8000, scoped, tag = 'input window, operand 2, single buffered']
    #allocation8 [shape = 's32[1]{0}', space=sflag, size = 0x4, scoped, tag = 'scoped memory for forward.1']
    #allocation9 [shape = 'u8[32768]{0}', space=vmem, size = 0x8000, scoped, tag = 'input window, operand 3, single buffered']
    #allocation10 [shape = 'u8[114688]{0}', space=vmem, size = 0x1c000, scoped, tag = 'input window, operand 4, single buffered']
    #allocation11 [shape = 's32[1]{0}', space=sflag, size = 0x4, scoped, tag = 'scoped memory for forward.1']
    #allocation12 [shape = 'u8[4096]{0}', space=vmem, size = 0x1000, scoped, tag = 'input window, operand 8, single buffered']
    #allocation13 [shape = 'u8[32768]{0}', space=vmem, size = 0x8000, scoped, tag = 'input window, operand 12, single buffered']
    #allocation14 [shape = 's32[1]{0}', space=sflag, size = 0x4, scoped, tag = 'scoped memory for forward.1']
    #allocation15 [shape = 'u8[65536]{0}', space=vmem, size = 0x10000, scoped, tag = 'input window, operand 14, single buffered']
    #allocation16 [shape = 'u8[32768]{0}', space=vmem, size = 0x8000, scoped, tag = 'input window, operand 21, single buffered']
    #allocation17 [shape = 's32[1]{0}', space=sflag, size = 0x4, scoped, tag = 'scoped memory for forward.1']
    #allocation18 [shape = 'u8[65536]{0}', space=vmem, size = 0x10000, scoped, tag = 'input window, operand 23, single buffered']
    #allocation19 [shape = 'u8[32768]{0}', space=vmem, size = 0x8000, scoped, tag = 'input window, operand 28, single buffered']
    #allocation20 [shape = 's32[1]{0}', space=sflag, size = 0x4, scoped, tag = 'scoped memory for forward.1']
    #allocation21 [shape = 'u8[32768]{0}', space=vmem, size = 0x8000, scoped, tag = 'input window, operand 30, single buffered']
    #allocation22 [shape = 'u8[32768]{0}', space=vmem, size = 0x8000, scoped, tag = 'input window, operand 32, single buffered']
    #allocation23 [shape = 's32[1]{0}', space=sflag, size = 0x4, scoped, tag = 'scoped memory for forward.1']
    %76 = vsyncpa [#allocation6], 0
    %77 = vsyncpa [#allocation8], 0
    %78 = vsyncpa [#allocation11], 0
    %79 = vsyncpa [#allocation14], 0
    %80 = vsyncpa [#allocation17], 0
    %81 = vsyncpa [#allocation20], 0
    %82 = vsyncpa [#allocation23], 0
    loop: start=0, step=1, limit=4
    $region2: #{forward.1} parent=1 // loop_pre_header
      _
    $region3: #{forward.1} parent=1 // loop_header
      %s84 = sphi 0, %s88
      %p85 = scmp.ge.s32.totalorder %s84, 4
      %s94 = sphi 0, %s96
      %s97 = sphi 0, %s94
      %s98 = sphi 0, %s97
      %s114 = sphi 0, %s98
      %s118 = sphi 0, %s118
      %s120 = sphi 0, %s118
      %s121 = sphi 0, %s120
      %s135 = sphi 0, %s121
      %s139 = sphi 0, %s139
      %s141 = sphi 0, %s139
      %s142 = sphi 0, %s141
      %s156 = sphi 0, %s142
      %s160 = sphi 0, %s160
      %s162 = sphi 0, %s160
      %s163 = sphi 0, %s162
      %s177 = sphi 0, %s163
      %s181 = sphi 0, %s181
      %s183 = sphi 0, %s181
      %s184 = sphi 0, %s183
      %s198 = sphi 0, %s184
      %s202 = sphi 0, %s202
      %s204 = sphi 0, %s202
      %s205 = sphi 0, %s204
      %s219 = sphi 0, %s205
      %s223 = sphi 0, %s223
      %s225 = sphi 0, %s223
      %s226 = sphi 0, %s225
      %s240 = sphi 0, %s226
      %s244 = sphi 0, %s244
      %s246 = sphi 0, %s244
      %s247 = sphi 0, %s246
      %s261 = sphi 0, %s247
      %s265 = sphi 0, %s265
      %s267 = sphi 0, %s265
      %s268 = sphi 0, %s267
      %s282 = sphi 0, %s268
      %s286 = sphi 0, %s286
      %s288 = sphi 0, %s286
      %s289 = sphi 0, %s288
      %s303 = sphi 0, %s289
      %s307 = sphi 0, %s307
      %s309 = sphi 0, %s307
      %s310 = sphi 0, %s309
      %s324 = sphi 0, %s310
      %s328 = sphi 0, %s328
      %s330 = sphi 0, %s328
      %s331 = sphi 0, %s330
      %s345 = sphi 0, %s331
      %s349 = sphi 0, %s349
      %s351 = sphi 0, %s349
      %s352 = sphi 0, %s351
      %s366 = sphi 0, %s352
      %s370 = sphi 0, %s370
      %s372 = sphi 0, %s370
      %s373 = sphi 0, %s372
      %s387 = sphi 0, %s373
      %s391 = sphi 0, %s391
      %s393 = sphi 0, %s391
      %s394 = sphi 0, %s393
      %s408 = sphi 0, %s394
      %s412 = sphi 0, %s412
      %s414 = sphi 0, %s412
      %s415 = sphi 0, %s414
      %s429 = sphi 0, %s415
      %s433 = sphi 0, %s433
      %s435 = sphi 0, %s433
      %s436 = sphi 0, %s435
      %s450 = sphi 0, %s436
      %s454 = sphi 0, %s454
      %s456 = sphi 0, %s454
      %s457 = sphi 0, %s456
      %s471 = sphi 0, %s457
      %s475 = sphi 0, %s475
      %s477 = sphi 0, %s475
      %s478 = sphi 0, %s477
      %s492 = sphi 0, %s478
      %s496 = sphi 0, %s496
      %s498 = sphi 0, %s496
      %s499 = sphi 0, %s498
      %s513 = sphi 0, %s499
      %s517 = sphi 0, %s517
      %s519 = sphi 0, %s517
      %s520 = sphi 0, %s519
      %s534 = sphi 0, %s520
      %s538 = sphi 0, %s538
      %s540 = sphi 0, %s538
      %s541 = sphi 0, %s540
      %s555 = sphi 0, %s541
      %s559 = sphi 0, %s559
      %s561 = sphi 0, %s559
      %s562 = sphi 0, %s561
      %s576 = sphi 0, %s562
      %s580 = sphi 0, %s580
      %s582 = sphi 0, %s580
      %s583 = sphi 0, %s582
      %s597 = sphi 0, %s583
      %s601 = sphi 0, %s601
      %s603 = sphi 0, %s601
      %s604 = sphi 0, %s603
      %s618 = sphi 0, %s604
      %s622 = sphi 0, %s622
      %s624 = sphi 0, %s622
      %s625 = sphi 0, %s624
      %s639 = sphi 0, %s625
      %s643 = sphi 0, %s643
      %s645 = sphi 0, %s643
      %s646 = sphi 0, %s645
      %s660 = sphi 0, %s646
      %s664 = sphi 0, %s664
      %s666 = sphi 0, %s664
      %s667 = sphi 0, %s666
      %s681 = sphi 0, %s667
      %s685 = sphi 0, %s685
      %s687 = sphi 0, %s685
      %s688 = sphi 0, %s687
      %s702 = sphi 0, %s688
      %s706 = sphi 0, %s706
      %s708 = sphi 0, %s706
      %s709 = sphi 0, %s708
      %s723 = sphi 0, %s709
      %s727 = sphi 0, %s727
      %s729 = sphi 0, %s727
      %s730 = sphi 0, %s729
      %s744 = sphi 0, %s730
      %s748 = sphi 0, %s748
      %s750 = sphi 0, %s748
      %s751 = sphi 0, %s750
      %s765 = sphi 0, %s751
      %s769 = sphi 0, %s769
      %s771 = sphi 0, %s769
      %s772 = sphi 0, %s771
      %s786 = sphi 0, %s772
      %s790 = sphi 0, %s790
      %s792 = sphi 0, %s790
      %s793 = sphi 0, %s792
      %s807 = sphi 0, %s793
      %s811 = sphi 0, %s811
      %s813 = sphi 0, %s811
      %s814 = sphi 0, %s813
      %s828 = sphi 0, %s814
      %s834 = sphi 0, %s836
      %s837 = sphi 0, %s834
      %s838 = sphi 0, %s837
      %s854 = sphi 0, %s838
    $region4: #{forward.1} parent=1 // loop_header_branch
      %87 = sbr.rel (%p85) target = $region8
    $region5: #{forward.1} parent=1 // loop_body
      %s89 = ssub.s32 %s84, 1
      %s90 = ssub.s32 %s84, 2
      %s91 = sadd.s32 %s84, 1
      %s92 = ssub.s32 %s84, %s91
      %p93 = scmp.eq.s32.totalorder %s92, 0
      %s95 = sadd.s32 %s94, 1
      %s96 = scalar_select %p93, %s94, %s95
      %p99 = pneg %p93
      %p100 = scmp.eq.s32.totalorder %s84, 1
      %p101 = por %p99, %p100
      %p102 = scmp.ne.s32.totalorder %s94, %s97
      %p103 = scmp.eq.s32.totalorder %s84, 0
      %p104 = por %p102, %p103
      %p105 = scmp.ne.s32.totalorder %s94, %s97
      %p106 = scmp.eq.s32.totalorder %s89, 1
      %p107 = por %p105, %p106
      %p108 = scmp.ne.s32.totalorder %s97, %s98
      %p109 = scmp.eq.s32.totalorder %s89, 0
      %p110 = por %p108, %p109
      %p111 = scmp.ne.s32.totalorder %s97, %s98
      %p112 = scmp.eq.s32.totalorder %s90, 1
      %p113 = por %p111, %p112
      %p115 = scmp.ne.s32.totalorder %s98, %s114
      %p116 = scmp.eq.s32.totalorder %s90, 0
      %p117 = por %p115, %p116
      %s119 = sadd.s32 %s118, 1
      %p122 = scmp.eq.s32.totalorder %s84, 1
      %p123 = scmp.ne.s32.totalorder %s118, %s120
      %p124 = scmp.eq.s32.totalorder %s84, 0
      %p125 = por %p123, %p124
      %p126 = scmp.ne.s32.totalorder %s118, %s120
      %p127 = scmp.eq.s32.totalorder %s89, 1
      %p128 = por %p126, %p127
      %p129 = scmp.ne.s32.totalorder %s120, %s121
      %p130 = scmp.eq.s32.totalorder %s89, 0
      %p131 = por %p129, %p130
      %p132 = scmp.ne.s32.totalorder %s120, %s121
      %p133 = scmp.eq.s32.totalorder %s90, 1
      %p134 = por %p132, %p133
      %p136 = scmp.ne.s32.totalorder %s121, %s135
      %p137 = scmp.eq.s32.totalorder %s90, 0
      %p138 = por %p136, %p137
      %s140 = sadd.s32 %s139, 1
      %p143 = scmp.eq.s32.totalorder %s84, 1
      %p144 = scmp.ne.s32.totalorder %s139, %s141
      %p145 = scmp.eq.s32.totalorder %s84, 0
      %p146 = por %p144, %p145
      %p147 = scmp.ne.s32.totalorder %s139, %s141
      %p148 = scmp.eq.s32.totalorder %s89, 1
      %p149 = por %p147, %p148
      %p150 = scmp.ne.s32.totalorder %s141, %s142
      %p151 = scmp.eq.s32.totalorder %s89, 0
      %p152 = por %p150, %p151
      %p153 = scmp.ne.s32.totalorder %s141, %s142
      %p154 = scmp.eq.s32.totalorder %s90, 1
      %p155 = por %p153, %p154
      %p157 = scmp.ne.s32.totalorder %s142, %s156
      %p158 = scmp.eq.s32.totalorder %s90, 0
      %p159 = por %p157, %p158
      %s161 = sadd.s32 %s160, 1
      %p164 = scmp.eq.s32.totalorder %s84, 1
      %p165 = scmp.ne.s32.totalorder %s160, %s162
      %p166 = scmp.eq.s32.totalorder %s84, 0
      %p167 = por %p165, %p166
      %p168 = scmp.ne.s32.totalorder %s160, %s162
      %p169 = scmp.eq.s32.totalorder %s89, 1
      %p170 = por %p168, %p169
      %p171 = scmp.ne.s32.totalorder %s162, %s163
      %p172 = scmp.eq.s32.totalorder %s89, 0
      %p173 = por %p171, %p172
      %p174 = scmp.ne.s32.totalorder %s162, %s163
      %p175 = scmp.eq.s32.totalorder %s90, 1
      %p176 = por %p174, %p175
      %p178 = scmp.ne.s32.totalorder %s163, %s177
      %p179 = scmp.eq.s32.totalorder %s90, 0
      %p180 = por %p178, %p179
      %s182 = sadd.s32 %s181, 1
      %p185 = scmp.eq.s32.totalorder %s84, 1
      %p186 = scmp.ne.s32.totalorder %s181, %s183
      %p187 = scmp.eq.s32.totalorder %s84, 0
      %p188 = por %p186, %p187
      %p189 = scmp.ne.s32.totalorder %s181, %s183
      %p190 = scmp.eq.s32.totalorder %s89, 1
      %p191 = por %p189, %p190
      %p192 = scmp.ne.s32.totalorder %s183, %s184
      %p193 = scmp.eq.s32.totalorder %s89, 0
      %p194 = por %p192, %p193
      %p195 = scmp.ne.s32.totalorder %s183, %s184
      %p196 = scmp.eq.s32.totalorder %s90, 1
      %p197 = por %p195, %p196
      %p199 = scmp.ne.s32.totalorder %s184, %s198
      %p200 = scmp.eq.s32.totalorder %s90, 0
      %p201 = por %p199, %p200
      %s203 = sadd.s32 %s202, 1
      %p206 = scmp.eq.s32.totalorder %s84, 1
      %p207 = scmp.ne.s32.totalorder %s202, %s204
      %p208 = scmp.eq.s32.totalorder %s84, 0
      %p209 = por %p207, %p208
      %p210 = scmp.ne.s32.totalorder %s202, %s204
      %p211 = scmp.eq.s32.totalorder %s89, 1
      %p212 = por %p210, %p211
      %p213 = scmp.ne.s32.totalorder %s204, %s205
      %p214 = scmp.eq.s32.totalorder %s89, 0
      %p215 = por %p213, %p214
      %p216 = scmp.ne.s32.totalorder %s204, %s205
      %p217 = scmp.eq.s32.totalorder %s90, 1
      %p218 = por %p216, %p217
      %p220 = scmp.ne.s32.totalorder %s205, %s219
      %p221 = scmp.eq.s32.totalorder %s90, 0
      %p222 = por %p220, %p221
      %s224 = sadd.s32 %s223, 1
      %p227 = scmp.eq.s32.totalorder %s84, 1
      %p228 = scmp.ne.s32.totalorder %s223, %s225
      %p229 = scmp.eq.s32.totalorder %s84, 0
      %p230 = por %p228, %p229
      %p231 = scmp.ne.s32.totalorder %s223, %s225
      %p232 = scmp.eq.s32.totalorder %s89, 1
      %p233 = por %p231, %p232
      %p234 = scmp.ne.s32.totalorder %s225, %s226
      %p235 = scmp.eq.s32.totalorder %s89, 0
      %p236 = por %p234, %p235
      %p237 = scmp.ne.s32.totalorder %s225, %s226
      %p238 = scmp.eq.s32.totalorder %s90, 1
      %p239 = por %p237, %p238
      %p241 = scmp.ne.s32.totalorder %s226, %s240
      %p242 = scmp.eq.s32.totalorder %s90, 0
      %p243 = por %p241, %p242
      %s245 = sadd.s32 %s244, 1
      %p248 = scmp.eq.s32.totalorder %s84, 1
      %p249 = scmp.ne.s32.totalorder %s244, %s246
      %p250 = scmp.eq.s32.totalorder %s84, 0
      %p251 = por %p249, %p250
      %p252 = scmp.ne.s32.totalorder %s244, %s246
      %p253 = scmp.eq.s32.totalorder %s89, 1
      %p254 = por %p252, %p253
      %p255 = scmp.ne.s32.totalorder %s246, %s247
      %p256 = scmp.eq.s32.totalorder %s89, 0
      %p257 = por %p255, %p256
      %p258 = scmp.ne.s32.totalorder %s246, %s247
      %p259 = scmp.eq.s32.totalorder %s90, 1
      %p260 = por %p258, %p259
      %p262 = scmp.ne.s32.totalorder %s247, %s261
      %p263 = scmp.eq.s32.totalorder %s90, 0
      %p264 = por %p262, %p263
      %s266 = sadd.s32 %s265, 1
      %p269 = scmp.eq.s32.totalorder %s84, 1
      %p270 = scmp.ne.s32.totalorder %s265, %s267
      %p271 = scmp.eq.s32.totalorder %s84, 0
      %p272 = por %p270, %p271
      %p273 = scmp.ne.s32.totalorder %s265, %s267
      %p274 = scmp.eq.s32.totalorder %s89, 1
      %p275 = por %p273, %p274
      %p276 = scmp.ne.s32.totalorder %s267, %s268
      %p277 = scmp.eq.s32.totalorder %s89, 0
      %p278 = por %p276, %p277
      %p279 = scmp.ne.s32.totalorder %s267, %s268
      %p280 = scmp.eq.s32.totalorder %s90, 1
      %p281 = por %p279, %p280
      %p283 = scmp.ne.s32.totalorder %s268, %s282
      %p284 = scmp.eq.s32.totalorder %s90, 0
      %p285 = por %p283, %p284
      %s287 = sadd.s32 %s286, 1
      %p290 = scmp.eq.s32.totalorder %s84, 1
      %p291 = scmp.ne.s32.totalorder %s286, %s288
      %p292 = scmp.eq.s32.totalorder %s84, 0
      %p293 = por %p291, %p292
      %p294 = scmp.ne.s32.totalorder %s286, %s288
      %p295 = scmp.eq.s32.totalorder %s89, 1
      %p296 = por %p294, %p295
      %p297 = scmp.ne.s32.totalorder %s288, %s289
      %p298 = scmp.eq.s32.totalorder %s89, 0
      %p299 = por %p297, %p298
      %p300 = scmp.ne.s32.totalorder %s288, %s289
      %p301 = scmp.eq.s32.totalorder %s90, 1
      %p302 = por %p300, %p301
      %p304 = scmp.ne.s32.totalorder %s289, %s303
      %p305 = scmp.eq.s32.totalorder %s90, 0
      %p306 = por %p304, %p305
      %s308 = sadd.s32 %s307, 1
      %p311 = scmp.eq.s32.totalorder %s84, 1
      %p312 = scmp.ne.s32.totalorder %s307, %s309
      %p313 = scmp.eq.s32.totalorder %s84, 0
      %p314 = por %p312, %p313
      %p315 = scmp.ne.s32.totalorder %s307, %s309
      %p316 = scmp.eq.s32.totalorder %s89, 1
      %p317 = por %p315, %p316
      %p318 = scmp.ne.s32.totalorder %s309, %s310
      %p319 = scmp.eq.s32.totalorder %s89, 0
      %p320 = por %p318, %p319
      %p321 = scmp.ne.s32.totalorder %s309, %s310
      %p322 = scmp.eq.s32.totalorder %s90, 1
      %p323 = por %p321, %p322
      %p325 = scmp.ne.s32.totalorder %s310, %s324
      %p326 = scmp.eq.s32.totalorder %s90, 0
      %p327 = por %p325, %p326
      %s329 = sadd.s32 %s328, 1
      %p332 = scmp.eq.s32.totalorder %s84, 1
      %p333 = scmp.ne.s32.totalorder %s328, %s330
      %p334 = scmp.eq.s32.totalorder %s84, 0
      %p335 = por %p333, %p334
      %p336 = scmp.ne.s32.totalorder %s328, %s330
      %p337 = scmp.eq.s32.totalorder %s89, 1
      %p338 = por %p336, %p337
      %p339 = scmp.ne.s32.totalorder %s330, %s331
      %p340 = scmp.eq.s32.totalorder %s89, 0
      %p341 = por %p339, %p340
      %p342 = scmp.ne.s32.totalorder %s330, %s331
      %p343 = scmp.eq.s32.totalorder %s90, 1
      %p344 = por %p342, %p343
      %p346 = scmp.ne.s32.totalorder %s331, %s345
      %p347 = scmp.eq.s32.totalorder %s90, 0
      %p348 = por %p346, %p347
      %s350 = sadd.s32 %s349, 1
      %p353 = scmp.eq.s32.totalorder %s84, 1
      %p354 = scmp.ne.s32.totalorder %s349, %s351
      %p355 = scmp.eq.s32.totalorder %s84, 0
      %p356 = por %p354, %p355
      %p357 = scmp.ne.s32.totalorder %s349, %s351
      %p358 = scmp.eq.s32.totalorder %s89, 1
      %p359 = por %p357, %p358
      %p360 = scmp.ne.s32.totalorder %s351, %s352
      %p361 = scmp.eq.s32.totalorder %s89, 0
      %p362 = por %p360, %p361
      %p363 = scmp.ne.s32.totalorder %s351, %s352
      %p364 = scmp.eq.s32.totalorder %s90, 1
      %p365 = por %p363, %p364
      %p367 = scmp.ne.s32.totalorder %s352, %s366
      %p368 = scmp.eq.s32.totalorder %s90, 0
      %p369 = por %p367, %p368
      %s371 = sadd.s32 %s370, 1
      %p374 = scmp.eq.s32.totalorder %s84, 1
      %p375 = scmp.ne.s32.totalorder %s370, %s372
      %p376 = scmp.eq.s32.totalorder %s84, 0
      %p377 = por %p375, %p376
      %p378 = scmp.ne.s32.totalorder %s370, %s372
      %p379 = scmp.eq.s32.totalorder %s89, 1
      %p380 = por %p378, %p379
      %p381 = scmp.ne.s32.totalorder %s372, %s373
      %p382 = scmp.eq.s32.totalorder %s89, 0
      %p383 = por %p381, %p382
      %p384 = scmp.ne.s32.totalorder %s372, %s373
      %p385 = scmp.eq.s32.totalorder %s90, 1
      %p386 = por %p384, %p385
      %p388 = scmp.ne.s32.totalorder %s373, %s387
      %p389 = scmp.eq.s32.totalorder %s90, 0
      %p390 = por %p388, %p389
      %s392 = sadd.s32 %s391, 1
      %p395 = scmp.eq.s32.totalorder %s84, 1
      %p396 = scmp.ne.s32.totalorder %s391, %s393
      %p397 = scmp.eq.s32.totalorder %s84, 0
      %p398 = por %p396, %p397
      %p399 = scmp.ne.s32.totalorder %s391, %s393
      %p400 = scmp.eq.s32.totalorder %s89, 1
      %p401 = por %p399, %p400
      %p402 = scmp.ne.s32.totalorder %s393, %s394
      %p403 = scmp.eq.s32.totalorder %s89, 0
      %p404 = por %p402, %p403
      %p405 = scmp.ne.s32.totalorder %s393, %s394
      %p406 = scmp.eq.s32.totalorder %s90, 1
      %p407 = por %p405, %p406
      %p409 = scmp.ne.s32.totalorder %s394, %s408
      %p410 = scmp.eq.s32.totalorder %s90, 0
      %p411 = por %p409, %p410
      %s413 = sadd.s32 %s412, 1
      %p416 = scmp.eq.s32.totalorder %s84, 1
      %p417 = scmp.ne.s32.totalorder %s412, %s414
      %p418 = scmp.eq.s32.totalorder %s84, 0
      %p419 = por %p417, %p418
      %p420 = scmp.ne.s32.totalorder %s412, %s414
      %p421 = scmp.eq.s32.totalorder %s89, 1
      %p422 = por %p420, %p421
      %p423 = scmp.ne.s32.totalorder %s414, %s415
      %p424 = scmp.eq.s32.totalorder %s89, 0
      %p425 = por %p423, %p424
      %p426 = scmp.ne.s32.totalorder %s414, %s415
      %p427 = scmp.eq.s32.totalorder %s90, 1
      %p428 = por %p426, %p427
      %p430 = scmp.ne.s32.totalorder %s415, %s429
      %p431 = scmp.eq.s32.totalorder %s90, 0
      %p432 = por %p430, %p431
      %s434 = sadd.s32 %s433, 1
      %p437 = scmp.eq.s32.totalorder %s84, 1
      %p438 = scmp.ne.s32.totalorder %s433, %s435
      %p439 = scmp.eq.s32.totalorder %s84, 0
      %p440 = por %p438, %p439
      %p441 = scmp.ne.s32.totalorder %s433, %s435
      %p442 = scmp.eq.s32.totalorder %s89, 1
      %p443 = por %p441, %p442
      %p444 = scmp.ne.s32.totalorder %s435, %s436
      %p445 = scmp.eq.s32.totalorder %s89, 0
      %p446 = por %p444, %p445
      %p447 = scmp.ne.s32.totalorder %s435, %s436
      %p448 = scmp.eq.s32.totalorder %s90, 1
      %p449 = por %p447, %p448
      %p451 = scmp.ne.s32.totalorder %s436, %s450
      %p452 = scmp.eq.s32.totalorder %s90, 0
      %p453 = por %p451, %p452
      %s455 = sadd.s32 %s454, 1
      %p458 = scmp.eq.s32.totalorder %s84, 1
      %p459 = scmp.ne.s32.totalorder %s454, %s456
      %p460 = scmp.eq.s32.totalorder %s84, 0
      %p461 = por %p459, %p460
      %p462 = scmp.ne.s32.totalorder %s454, %s456
      %p463 = scmp.eq.s32.totalorder %s89, 1
      %p464 = por %p462, %p463
      %p465 = scmp.ne.s32.totalorder %s456, %s457
      %p466 = scmp.eq.s32.totalorder %s89, 0
      %p467 = por %p465, %p466
      %p468 = scmp.ne.s32.totalorder %s456, %s457
      %p469 = scmp.eq.s32.totalorder %s90, 1
      %p470 = por %p468, %p469
      %p472 = scmp.ne.s32.totalorder %s457, %s471
      %p473 = scmp.eq.s32.totalorder %s90, 0
      %p474 = por %p472, %p473
      %s476 = sadd.s32 %s475, 1
      %p479 = scmp.eq.s32.totalorder %s84, 1
      %p480 = scmp.ne.s32.totalorder %s475, %s477
      %p481 = scmp.eq.s32.totalorder %s84, 0
      %p482 = por %p480, %p481
      %p483 = scmp.ne.s32.totalorder %s475, %s477
      %p484 = scmp.eq.s32.totalorder %s89, 1
      %p485 = por %p483, %p484
      %p486 = scmp.ne.s32.totalorder %s477, %s478
      %p487 = scmp.eq.s32.totalorder %s89, 0
      %p488 = por %p486, %p487
      %p489 = scmp.ne.s32.totalorder %s477, %s478
      %p490 = scmp.eq.s32.totalorder %s90, 1
      %p491 = por %p489, %p490
      %p493 = scmp.ne.s32.totalorder %s478, %s492
      %p494 = scmp.eq.s32.totalorder %s90, 0
      %p495 = por %p493, %p494
      %s497 = sadd.s32 %s496, 1
      %p500 = scmp.eq.s32.totalorder %s84, 1
      %p501 = scmp.ne.s32.totalorder %s496, %s498
      %p502 = scmp.eq.s32.totalorder %s84, 0
      %p503 = por %p501, %p502
      %p504 = scmp.ne.s32.totalorder %s496, %s498
      %p505 = scmp.eq.s32.totalorder %s89, 1
      %p506 = por %p504, %p505
      %p507 = scmp.ne.s32.totalorder %s498, %s499
      %p508 = scmp.eq.s32.totalorder %s89, 0
      %p509 = por %p507, %p508
      %p510 = scmp.ne.s32.totalorder %s498, %s499
      %p511 = scmp.eq.s32.totalorder %s90, 1
      %p512 = por %p510, %p511
      %p514 = scmp.ne.s32.totalorder %s499, %s513
      %p515 = scmp.eq.s32.totalorder %s90, 0
      %p516 = por %p514, %p515
      %s518 = sadd.s32 %s517, 1
      %p521 = scmp.eq.s32.totalorder %s84, 1
      %p522 = scmp.ne.s32.totalorder %s517, %s519
      %p523 = scmp.eq.s32.totalorder %s84, 0
      %p524 = por %p522, %p523
      %p525 = scmp.ne.s32.totalorder %s517, %s519
      %p526 = scmp.eq.s32.totalorder %s89, 1
      %p527 = por %p525, %p526
      %p528 = scmp.ne.s32.totalorder %s519, %s520
      %p529 = scmp.eq.s32.totalorder %s89, 0
      %p530 = por %p528, %p529
      %p531 = scmp.ne.s32.totalorder %s519, %s520
      %p532 = scmp.eq.s32.totalorder %s90, 1
      %p533 = por %p531, %p532
      %p535 = scmp.ne.s32.totalorder %s520, %s534
      %p536 = scmp.eq.s32.totalorder %s90, 0
      %p537 = por %p535, %p536
      %s539 = sadd.s32 %s538, 1
      %p542 = scmp.eq.s32.totalorder %s84, 1
      %p543 = scmp.ne.s32.totalorder %s538, %s540
      %p544 = scmp.eq.s32.totalorder %s84, 0
      %p545 = por %p543, %p544
      %p546 = scmp.ne.s32.totalorder %s538, %s540
      %p547 = scmp.eq.s32.totalorder %s89, 1
      %p548 = por %p546, %p547
      %p549 = scmp.ne.s32.totalorder %s540, %s541
      %p550 = scmp.eq.s32.totalorder %s89, 0
      %p551 = por %p549, %p550
      %p552 = scmp.ne.s32.totalorder %s540, %s541
      %p553 = scmp.eq.s32.totalorder %s90, 1
      %p554 = por %p552, %p553
      %p556 = scmp.ne.s32.totalorder %s541, %s555
      %p557 = scmp.eq.s32.totalorder %s90, 0
      %p558 = por %p556, %p557
      %s560 = sadd.s32 %s559, 1
      %p563 = scmp.eq.s32.totalorder %s84, 1
      %p564 = scmp.ne.s32.totalorder %s559, %s561
      %p565 = scmp.eq.s32.totalorder %s84, 0
      %p566 = por %p564, %p565
      %p567 = scmp.ne.s32.totalorder %s559, %s561
      %p568 = scmp.eq.s32.totalorder %s89, 1
      %p569 = por %p567, %p568
      %p570 = scmp.ne.s32.totalorder %s561, %s562
      %p571 = scmp.eq.s32.totalorder %s89, 0
      %p572 = por %p570, %p571
      %p573 = scmp.ne.s32.totalorder %s561, %s562
      %p574 = scmp.eq.s32.totalorder %s90, 1
      %p575 = por %p573, %p574
      %p577 = scmp.ne.s32.totalorder %s562, %s576
      %p578 = scmp.eq.s32.totalorder %s90, 0
      %p579 = por %p577, %p578
      %s581 = sadd.s32 %s580, 1
      %p584 = scmp.eq.s32.totalorder %s84, 1
      %p585 = scmp.ne.s32.totalorder %s580, %s582
      %p586 = scmp.eq.s32.totalorder %s84, 0
      %p587 = por %p585, %p586
      %p588 = scmp.ne.s32.totalorder %s580, %s582
      %p589 = scmp.eq.s32.totalorder %s89, 1
      %p590 = por %p588, %p589
      %p591 = scmp.ne.s32.totalorder %s582, %s583
      %p592 = scmp.eq.s32.totalorder %s89, 0
      %p593 = por %p591, %p592
      %p594 = scmp.ne.s32.totalorder %s582, %s583
      %p595 = scmp.eq.s32.totalorder %s90, 1
      %p596 = por %p594, %p595
      %p598 = scmp.ne.s32.totalorder %s583, %s597
      %p599 = scmp.eq.s32.totalorder %s90, 0
      %p600 = por %p598, %p599
      %s602 = sadd.s32 %s601, 1
      %p605 = scmp.eq.s32.totalorder %s84, 1
      %p606 = scmp.ne.s32.totalorder %s601, %s603
      %p607 = scmp.eq.s32.totalorder %s84, 0
      %p608 = por %p606, %p607
      %p609 = scmp.ne.s32.totalorder %s601, %s603
      %p610 = scmp.eq.s32.totalorder %s89, 1
      %p611 = por %p609, %p610
      %p612 = scmp.ne.s32.totalorder %s603, %s604
      %p613 = scmp.eq.s32.totalorder %s89, 0
      %p614 = por %p612, %p613
      %p615 = scmp.ne.s32.totalorder %s603, %s604
      %p616 = scmp.eq.s32.totalorder %s90, 1
      %p617 = por %p615, %p616
      %p619 = scmp.ne.s32.totalorder %s604, %s618
      %p620 = scmp.eq.s32.totalorder %s90, 0
      %p621 = por %p619, %p620
      %s623 = sadd.s32 %s622, 1
      %p626 = scmp.eq.s32.totalorder %s84, 1
      %p627 = scmp.ne.s32.totalorder %s622, %s624
      %p628 = scmp.eq.s32.totalorder %s84, 0
      %p629 = por %p627, %p628
      %p630 = scmp.ne.s32.totalorder %s622, %s624
      %p631 = scmp.eq.s32.totalorder %s89, 1
      %p632 = por %p630, %p631
      %p633 = scmp.ne.s32.totalorder %s624, %s625
      %p634 = scmp.eq.s32.totalorder %s89, 0
      %p635 = por %p633, %p634
      %p636 = scmp.ne.s32.totalorder %s624, %s625
      %p637 = scmp.eq.s32.totalorder %s90, 1
      %p638 = por %p636, %p637
      %p640 = scmp.ne.s32.totalorder %s625, %s639
      %p641 = scmp.eq.s32.totalorder %s90, 0
      %p642 = por %p640, %p641
      %s644 = sadd.s32 %s643, 1
      %p647 = scmp.eq.s32.totalorder %s84, 1
      %p648 = scmp.ne.s32.totalorder %s643, %s645
      %p649 = scmp.eq.s32.totalorder %s84, 0
      %p650 = por %p648, %p649
      %p651 = scmp.ne.s32.totalorder %s643, %s645
      %p652 = scmp.eq.s32.totalorder %s89, 1
      %p653 = por %p651, %p652
      %p654 = scmp.ne.s32.totalorder %s645, %s646
      %p655 = scmp.eq.s32.totalorder %s89, 0
      %p656 = por %p654, %p655
      %p657 = scmp.ne.s32.totalorder %s645, %s646
      %p658 = scmp.eq.s32.totalorder %s90, 1
      %p659 = por %p657, %p658
      %p661 = scmp.ne.s32.totalorder %s646, %s660
      %p662 = scmp.eq.s32.totalorder %s90, 0
      %p663 = por %p661, %p662
      %s665 = sadd.s32 %s664, 1
      %p668 = scmp.eq.s32.totalorder %s84, 1
      %p669 = scmp.ne.s32.totalorder %s664, %s666
      %p670 = scmp.eq.s32.totalorder %s84, 0
      %p671 = por %p669, %p670
      %p672 = scmp.ne.s32.totalorder %s664, %s666
      %p673 = scmp.eq.s32.totalorder %s89, 1
      %p674 = por %p672, %p673
      %p675 = scmp.ne.s32.totalorder %s666, %s667
      %p676 = scmp.eq.s32.totalorder %s89, 0
      %p677 = por %p675, %p676
      %p678 = scmp.ne.s32.totalorder %s666, %s667
      %p679 = scmp.eq.s32.totalorder %s90, 1
      %p680 = por %p678, %p679
      %p682 = scmp.ne.s32.totalorder %s667, %s681
      %p683 = scmp.eq.s32.totalorder %s90, 0
      %p684 = por %p682, %p683
      %s686 = sadd.s32 %s685, 1
      %p689 = scmp.eq.s32.totalorder %s84, 1
      %p690 = scmp.ne.s32.totalorder %s685, %s687
      %p691 = scmp.eq.s32.totalorder %s84, 0
      %p692 = por %p690, %p691
      %p693 = scmp.ne.s32.totalorder %s685, %s687
      %p694 = scmp.eq.s32.totalorder %s89, 1
      %p695 = por %p693, %p694
      %p696 = scmp.ne.s32.totalorder %s687, %s688
      %p697 = scmp.eq.s32.totalorder %s89, 0
      %p698 = por %p696, %p697
      %p699 = scmp.ne.s32.totalorder %s687, %s688
      %p700 = scmp.eq.s32.totalorder %s90, 1
      %p701 = por %p699, %p700
      %p703 = scmp.ne.s32.totalorder %s688, %s702
      %p704 = scmp.eq.s32.totalorder %s90, 0
      %p705 = por %p703, %p704
      %s707 = sadd.s32 %s706, 1
      %p710 = scmp.eq.s32.totalorder %s84, 1
      %p711 = scmp.ne.s32.totalorder %s706, %s708
      %p712 = scmp.eq.s32.totalorder %s84, 0
      %p713 = por %p711, %p712
      %p714 = scmp.ne.s32.totalorder %s706, %s708
      %p715 = scmp.eq.s32.totalorder %s89, 1
      %p716 = por %p714, %p715
      %p717 = scmp.ne.s32.totalorder %s708, %s709
      %p718 = scmp.eq.s32.totalorder %s89, 0
      %p719 = por %p717, %p718
      %p720 = scmp.ne.s32.totalorder %s708, %s709
      %p721 = scmp.eq.s32.totalorder %s90, 1
      %p722 = por %p720, %p721
      %p724 = scmp.ne.s32.totalorder %s709, %s723
      %p725 = scmp.eq.s32.totalorder %s90, 0
      %p726 = por %p724, %p725
      %s728 = sadd.s32 %s727, 1
      %p731 = scmp.eq.s32.totalorder %s84, 1
      %p732 = scmp.ne.s32.totalorder %s727, %s729
      %p733 = scmp.eq.s32.totalorder %s84, 0
      %p734 = por %p732, %p733
      %p735 = scmp.ne.s32.totalorder %s727, %s729
      %p736 = scmp.eq.s32.totalorder %s89, 1
      %p737 = por %p735, %p736
      %p738 = scmp.ne.s32.totalorder %s729, %s730
      %p739 = scmp.eq.s32.totalorder %s89, 0
      %p740 = por %p738, %p739
      %p741 = scmp.ne.s32.totalorder %s729, %s730
      %p742 = scmp.eq.s32.totalorder %s90, 1
      %p743 = por %p741, %p742
      %p745 = scmp.ne.s32.totalorder %s730, %s744
      %p746 = scmp.eq.s32.totalorder %s90, 0
      %p747 = por %p745, %p746
      %s749 = sadd.s32 %s748, 1
      %p752 = scmp.eq.s32.totalorder %s84, 1
      %p753 = scmp.ne.s32.totalorder %s748, %s750
      %p754 = scmp.eq.s32.totalorder %s84, 0
      %p755 = por %p753, %p754
      %p756 = scmp.ne.s32.totalorder %s748, %s750
      %p757 = scmp.eq.s32.totalorder %s89, 1
      %p758 = por %p756, %p757
      %p759 = scmp.ne.s32.totalorder %s750, %s751
      %p760 = scmp.eq.s32.totalorder %s89, 0
      %p761 = por %p759, %p760
      %p762 = scmp.ne.s32.totalorder %s750, %s751
      %p763 = scmp.eq.s32.totalorder %s90, 1
      %p764 = por %p762, %p763
      %p766 = scmp.ne.s32.totalorder %s751, %s765
      %p767 = scmp.eq.s32.totalorder %s90, 0
      %p768 = por %p766, %p767
      %s770 = sadd.s32 %s769, 1
      %p773 = scmp.eq.s32.totalorder %s84, 1
      %p774 = scmp.ne.s32.totalorder %s769, %s771
      %p775 = scmp.eq.s32.totalorder %s84, 0
      %p776 = por %p774, %p775
      %p777 = scmp.ne.s32.totalorder %s769, %s771
      %p778 = scmp.eq.s32.totalorder %s89, 1
      %p779 = por %p777, %p778
      %p780 = scmp.ne.s32.totalorder %s771, %s772
      %p781 = scmp.eq.s32.totalorder %s89, 0
      %p782 = por %p780, %p781
      %p783 = scmp.ne.s32.totalorder %s771, %s772
      %p784 = scmp.eq.s32.totalorder %s90, 1
      %p785 = por %p783, %p784
      %p787 = scmp.ne.s32.totalorder %s772, %s786
      %p788 = scmp.eq.s32.totalorder %s90, 0
      %p789 = por %p787, %p788
      %s791 = sadd.s32 %s790, 1
      %p794 = scmp.eq.s32.totalorder %s84, 1
      %p795 = scmp.ne.s32.totalorder %s790, %s792
      %p796 = scmp.eq.s32.totalorder %s84, 0
      %p797 = por %p795, %p796
      %p798 = scmp.ne.s32.totalorder %s790, %s792
      %p799 = scmp.eq.s32.totalorder %s89, 1
      %p800 = por %p798, %p799
      %p801 = scmp.ne.s32.totalorder %s792, %s793
      %p802 = scmp.eq.s32.totalorder %s89, 0
      %p803 = por %p801, %p802
      %p804 = scmp.ne.s32.totalorder %s792, %s793
      %p805 = scmp.eq.s32.totalorder %s90, 1
      %p806 = por %p804, %p805
      %p808 = scmp.ne.s32.totalorder %s793, %s807
      %p809 = scmp.eq.s32.totalorder %s90, 0
      %p810 = por %p808, %p809
      %s812 = sadd.s32 %s811, 1
      %p815 = scmp.eq.s32.totalorder %s84, 1
      %p816 = scmp.ne.s32.totalorder %s811, %s813
      %p817 = scmp.eq.s32.totalorder %s84, 0
      %p818 = por %p816, %p817
      %p819 = scmp.ne.s32.totalorder %s811, %s813
      %p820 = scmp.eq.s32.totalorder %s89, 1
      %p821 = por %p819, %p820
      %p822 = scmp.ne.s32.totalorder %s813, %s814
      %p823 = scmp.eq.s32.totalorder %s89, 0
      %p824 = por %p822, %p823
      %p825 = scmp.ne.s32.totalorder %s813, %s814
      %p826 = scmp.eq.s32.totalorder %s90, 1
      %p827 = por %p825, %p826
      %p829 = scmp.ne.s32.totalorder %s814, %s828
      %p830 = scmp.eq.s32.totalorder %s90, 0
      %p831 = por %p829, %p830
      %s832 = ssub.s32 %s84, %s91
      %p833 = scmp.eq.s32.totalorder %s832, 0
      %s835 = sadd.s32 %s834, 1
      %s836 = scalar_select %p833, %s834, %s835
      %p839 = pneg %p833
      %p840 = scmp.eq.s32.totalorder %s84, 1
      %p841 = por %p839, %p840
      %p842 = scmp.ne.s32.totalorder %s834, %s837
      %p843 = scmp.eq.s32.totalorder %s84, 0
      %p844 = por %p842, %p843
      %p845 = scmp.ne.s32.totalorder %s834, %s837
      %p846 = scmp.eq.s32.totalorder %s89, 1
      %p847 = por %p845, %p846
      %p848 = scmp.ne.s32.totalorder %s837, %s838
      %p849 = scmp.eq.s32.totalorder %s89, 0
      %p850 = por %p848, %p849
      %p851 = scmp.ne.s32.totalorder %s837, %s838
      %p852 = scmp.eq.s32.totalorder %s90, 1
      %p853 = por %p851, %p852
      %p855 = scmp.ne.s32.totalorder %s838, %s854
      %p856 = scmp.eq.s32.totalorder %s90, 0
      %p857 = por %p855, %p856
      %p858 = scmp.le.s32.totalorder 1, %s84
      %p859 = scmp.lt.s32.totalorder %s84, 3
      %p860 = pnand %p858, %p859
      %p861 = pneg %p860
      // Predicated region
      $region9: #{forward.1} parent=5 // pred_check
        _
      $region10: #{forward.1} parent=5 // pred_check_branch
        %863 = sbr.rel (%p860) target = $region12
      $region11: #{forward.1} parent=5 // pred_region
        %s864 = ssub.s32 %s84, 1
        // Predicated region
        $region13: #{forward.1} parent=11 // pred_check
          %p865 = pneg %p131
        $region14: #{forward.1} parent=11 // pred_check_branch
          %867 = sbr.rel (%p865) target = $region16
        $region15: #{forward.1} parent=11 // pred_region
          %869 = vsyncadd [#allocation6], 0
          %s870 = sshll.u32 %s3, 4
          %s871 = int_to_ptr.hbm [resolvable:$true] %s870
          %s872 = sshll.u32 [#allocation5], 4
          %s873 = int_to_ptr.vmem [resolvable:$true] %s872
          %878 = dma.hbm_to_vmem [thread:$0]  %s871, 1024, %s873, [#allocation6], 128, 128, 8
        $region16: #{forward.1} parent=11 // pred_fallthru
          _
        // Predicated region
        $region17: #{forward.1} parent=11 // pred_check
          %p879 = pneg %p152
        $region18: #{forward.1} parent=11 // pred_check_branch
          %881 = sbr.rel (%p879) target = $region20
        $region19: #{forward.1} parent=11 // pred_region
          %883 = vsyncadd [#allocation8], 0
          %s884 = sshll.u32 %s5, 4
          %s885 = int_to_ptr.hbm [resolvable:$true] %s884
          %s886 = sshll.u32 [#allocation7], 4
          %s887 = int_to_ptr.vmem [resolvable:$true] %s886
          %892 = dma.hbm_to_vmem [thread:$0]  %s885, 1024, %s887, [#allocation8], 128, 128, 8
        $region20: #{forward.1} parent=11 // pred_fallthru
          _
        // Predicated region
        $region21: #{forward.1} parent=11 // pred_check
          %p893 = pneg %p173
        $region22: #{forward.1} parent=11 // pred_check_branch
          %895 = sbr.rel (%p893) target = $region24
        $region23: #{forward.1} parent=11 // pred_region
          %897 = vsyncadd [#allocation8], 0
          %s898 = sshll.u32 %s7, 4
          %s899 = int_to_ptr.hbm [resolvable:$true] %s898
          %s900 = sshll.u32 [#allocation9], 4
          %s901 = int_to_ptr.vmem [resolvable:$true] %s900
          %906 = dma.hbm_to_vmem [thread:$0]  %s899, 1024, %s901, [#allocation8], 128, 128, 8
        $region24: #{forward.1} parent=11 // pred_fallthru
          _
        // Predicated region
        $region25: #{forward.1} parent=11 // pred_check
          %p907 = pneg %p194
        $region26: #{forward.1} parent=11 // pred_check_branch
          %909 = sbr.rel (%p907) target = $region28
        $region27: #{forward.1} parent=11 // pred_region
          %911 = vsyncadd [#allocation11], 0
          %s912 = sshll.u32 %s9, 4
          %s913 = int_to_ptr.hbm [resolvable:$true] %s912
          %s914 = sshll.u32 [#allocation10], 4
          %s915 = int_to_ptr.vmem [resolvable:$true] %s914
          %920 = dma.hbm_to_vmem [thread:$0]  %s913, 3584, %s915, [#allocation11], 128, 128, 8
        $region28: #{forward.1} parent=11 // pred_fallthru
          _
        // Predicated region
        $region29: #{forward.1} parent=11 // pred_check
          %p921 = pneg %p215
        $region30: #{forward.1} parent=11 // pred_check_branch
          %923 = sbr.rel (%p921) target = $region32
        $region31: #{forward.1} parent=11 // pred_region
          _
        $region32: #{forward.1} parent=11 // pred_fallthru
          _
        // Predicated region
        $region33: #{forward.1} parent=11 // pred_check
          %p924 = pneg %p236
        $region34: #{forward.1} parent=11 // pred_check_branch
          %926 = sbr.rel (%p924) target = $region36
        $region35: #{forward.1} parent=11 // pred_region
          _
        $region36: #{forward.1} parent=11 // pred_fallthru
          _
        // Predicated region
        $region37: #{forward.1} parent=11 // pred_check
          %p927 = pneg %p257
        $region38: #{forward.1} parent=11 // pred_check_branch
          %929 = sbr.rel (%p927) target = $region40
        $region39: #{forward.1} parent=11 // pred_region
          _
        $region40: #{forward.1} parent=11 // pred_fallthru
          _
        // Predicated region
        $region41: #{forward.1} parent=11 // pred_check
          %p930 = pneg %p278
        $region42: #{forward.1} parent=11 // pred_check_branch
          %932 = sbr.rel (%p930) target = $region44
        $region43: #{forward.1} parent=11 // pred_region
          %934 = vsyncadd [#allocation11], 0
          %s936 = sshll.u32 %s17, 4
          %s937 = int_to_ptr.hbm [resolvable:$true] %s936
          %s938 = sshll.u32 [#allocation12], 4
          %s939 = int_to_ptr.vmem [resolvable:$true] %s938
          %941 = dma.hbm_to_vmem [thread:$0]  %s937, 128, %s939, [#allocation11]
        $region44: #{forward.1} parent=11 // pred_fallthru
          _
        // Predicated region
        $region45: #{forward.1} parent=11 // pred_check
          %p942 = pneg %p299
        $region46: #{forward.1} parent=11 // pred_check_branch
          %944 = sbr.rel (%p942) target = $region48
        $region47: #{forward.1} parent=11 // pred_region
          _
        $region48: #{forward.1} parent=11 // pred_fallthru
          _
        // Predicated region
        $region49: #{forward.1} parent=11 // pred_check
          %p945 = pneg %p320
        $region50: #{forward.1} parent=11 // pred_check_branch
          %947 = sbr.rel (%p945) target = $region52
        $region51: #{forward.1} parent=11 // pred_region
          _
        $region52: #{forward.1} parent=11 // pred_fallthru
          _
        // Predicated region
        $region53: #{forward.1} parent=11 // pred_check
          %p948 = pneg %p341
        $region54: #{forward.1} parent=11 // pred_check_branch
          %950 = sbr.rel (%p948) target = $region56
        $region55: #{forward.1} parent=11 // pred_region
          _
        $region56: #{forward.1} parent=11 // pred_fallthru
          _
        // Predicated region
        $region57: #{forward.1} parent=11 // pred_check
          %p951 = pneg %p362
        $region58: #{forward.1} parent=11 // pred_check_branch
          %953 = sbr.rel (%p951) target = $region60
        $region59: #{forward.1} parent=11 // pred_region
          %955 = vsyncadd [#allocation14], 0
          %s956 = sshll.u32 %s25, 4
          %s957 = int_to_ptr.hbm [resolvable:$true] %s956
          %s958 = sshll.u32 [#allocation13], 4
          %s959 = int_to_ptr.vmem [resolvable:$true] %s958
          %964 = dma.hbm_to_vmem [thread:$0]  %s957, 1024, %s959, [#allocation14], 128, 128, 8
        $region60: #{forward.1} parent=11 // pred_fallthru
          _
        // Predicated region
        $region61: #{forward.1} parent=11 // pred_check
          %p965 = pneg %p383
        $region62: #{forward.1} parent=11 // pred_check_branch
          %967 = sbr.rel (%p965) target = $region64
        $region63: #{forward.1} parent=11 // pred_region
          _
        $region64: #{forward.1} parent=11 // pred_fallthru
          _
        // Predicated region
        $region65: #{forward.1} parent=11 // pred_check
          %p968 = pneg %p404
        $region66: #{forward.1} parent=11 // pred_check_branch
          %970 = sbr.rel (%p968) target = $region68
        $region67: #{forward.1} parent=11 // pred_region
          %972 = vsyncadd [#allocation14], 0
          %s973 = sshll.u32 %s29, 4
          %s974 = int_to_ptr.hbm [resolvable:$true] %s973
          %s975 = sshll.u32 [#allocation15], 4
          %s976 = int_to_ptr.vmem [resolvable:$true] %s975
          %981 = dma.hbm_to_vmem [thread:$0]  %s974, 2048, %s976, [#allocation14], 128, 128, 8
        $region68: #{forward.1} parent=11 // pred_fallthru
          _
        // Predicated region
        $region69: #{forward.1} parent=11 // pred_check
          %p982 = pneg %p425
        $region70: #{forward.1} parent=11 // pred_check_branch
          %984 = sbr.rel (%p982) target = $region72
        $region71: #{forward.1} parent=11 // pred_region
          _
        $region72: #{forward.1} parent=11 // pred_fallthru
          _
        // Predicated region
        $region73: #{forward.1} parent=11 // pred_check
          %p985 = pneg %p446
        $region74: #{forward.1} parent=11 // pred_check_branch
          %987 = sbr.rel (%p985) target = $region76
        $region75: #{forward.1} parent=11 // pred_region
          _
        $region76: #{forward.1} parent=11 // pred_fallthru
          _
        // Predicated region
        $region77: #{forward.1} parent=11 // pred_check
          %p988 = pneg %p467
        $region78: #{forward.1} parent=11 // pred_check_branch
          %990 = sbr.rel (%p988) target = $region80
        $region79: #{forward.1} parent=11 // pred_region
          _
        $region80: #{forward.1} parent=11 // pred_fallthru
          _
        // Predicated region
        $region81: #{forward.1} parent=11 // pred_check
          %p991 = pneg %p488
        $region82: #{forward.1} parent=11 // pred_check_branch
          %993 = sbr.rel (%p991) target = $region84
        $region83: #{forward.1} parent=11 // pred_region
          _
        $region84: #{forward.1} parent=11 // pred_fallthru
          _
        // Predicated region
        $region85: #{forward.1} parent=11 // pred_check
          %p994 = pneg %p509
        $region86: #{forward.1} parent=11 // pred_check_branch
          %996 = sbr.rel (%p994) target = $region88
        $region87: #{forward.1} parent=11 // pred_region
          _
        $region88: #{forward.1} parent=11 // pred_fallthru
          _
        // Predicated region
        $region89: #{forward.1} parent=11 // pred_check
          %p997 = pneg %p530
        $region90: #{forward.1} parent=11 // pred_check_branch
          %999 = sbr.rel (%p997) target = $region92
        $region91: #{forward.1} parent=11 // pred_region
          _
        $region92: #{forward.1} parent=11 // pred_fallthru
          _
        // Predicated region
        $region93: #{forward.1} parent=11 // pred_check
          %p1000 = pneg %p551
        $region94: #{forward.1} parent=11 // pred_check_branch
          %1002 = sbr.rel (%p1000) target = $region96
        $region95: #{forward.1} parent=11 // pred_region
          %1004 = vsyncadd [#allocation17], 0
          %s1005 = sshll.u32 %s43, 4
          %s1006 = int_to_ptr.hbm [resolvable:$true] %s1005
          %s1007 = sshll.u32 [#allocation16], 4
          %s1008 = int_to_ptr.vmem [resolvable:$true] %s1007
          %1013 = dma.hbm_to_vmem [thread:$0]  %s1006, 1024, %s1008, [#allocation17], 128, 128, 8
        $region96: #{forward.1} parent=11 // pred_fallthru
          _
        // Predicated region
        $region97: #{forward.1} parent=11 // pred_check
          %p1014 = pneg %p572
        $region98: #{forward.1} parent=11 // pred_check_branch
          %1016 = sbr.rel (%p1014) target = $region100
        $region99: #{forward.1} parent=11 // pred_region
          _
        $region100: #{forward.1} parent=11 // pred_fallthru
          _
        // Predicated region
        $region101: #{forward.1} parent=11 // pred_check
          %p1017 = pneg %p593
        $region102: #{forward.1} parent=11 // pred_check_branch
          %1019 = sbr.rel (%p1017) target = $region104
        $region103: #{forward.1} parent=11 // pred_region
          %1021 = vsyncadd [#allocation17], 0
          %s1022 = sshll.u32 %s47, 4
          %s1023 = int_to_ptr.hbm [resolvable:$true] %s1022
          %s1024 = sshll.u32 [#allocation18], 4
          %s1025 = int_to_ptr.vmem [resolvable:$true] %s1024
          %1030 = dma.hbm_to_vmem [thread:$0]  %s1023, 2048, %s1025, [#allocation17], 128, 128, 8
        $region104: #{forward.1} parent=11 // pred_fallthru
          _
        // Predicated region
        $region105: #{forward.1} parent=11 // pred_check
          %p1031 = pneg %p614
        $region106: #{forward.1} parent=11 // pred_check_branch
          %1033 = sbr.rel (%p1031) target = $region108
        $region107: #{forward.1} parent=11 // pred_region
          _
        $region108: #{forward.1} parent=11 // pred_fallthru
          _
        // Predicated region
        $region109: #{forward.1} parent=11 // pred_check
          %p1034 = pneg %p635
        $region110: #{forward.1} parent=11 // pred_check_branch
          %1036 = sbr.rel (%p1034) target = $region112
        $region111: #{forward.1} parent=11 // pred_region
          _
        $region112: #{forward.1} parent=11 // pred_fallthru
          _
        // Predicated region
        $region113: #{forward.1} parent=11 // pred_check
          %p1037 = pneg %p656
        $region114: #{forward.1} parent=11 // pred_check_branch
          %1039 = sbr.rel (%p1037) target = $region116
        $region115: #{forward.1} parent=11 // pred_region
          _
        $region116: #{forward.1} parent=11 // pred_fallthru
          _
        // Predicated region
        $region117: #{forward.1} parent=11 // pred_check
          %p1040 = pneg %p677
        $region118: #{forward.1} parent=11 // pred_check_branch
          %1042 = sbr.rel (%p1040) target = $region120
        $region119: #{forward.1} parent=11 // pred_region
          _
        $region120: #{forward.1} parent=11 // pred_fallthru
          _
        // Predicated region
        $region121: #{forward.1} parent=11 // pred_check
          %p1043 = pneg %p698
        $region122: #{forward.1} parent=11 // pred_check_branch
          %1045 = sbr.rel (%p1043) target = $region124
        $region123: #{forward.1} parent=11 // pred_region
          %1047 = vsyncadd [#allocation20], 0
          %s1048 = sshll.u32 %s57, 4
          %s1049 = int_to_ptr.hbm [resolvable:$true] %s1048
          %s1050 = sshll.u32 [#allocation19], 4
          %s1051 = int_to_ptr.vmem [resolvable:$true] %s1050
          %1056 = dma.hbm_to_vmem [thread:$0]  %s1049, 1024, %s1051, [#allocation20], 128, 128, 8
        $region124: #{forward.1} parent=11 // pred_fallthru
          _
        // Predicated region
        $region125: #{forward.1} parent=11 // pred_check
          %p1057 = pneg %p719
        $region126: #{forward.1} parent=11 // pred_check_branch
          %1059 = sbr.rel (%p1057) target = $region128
        $region127: #{forward.1} parent=11 // pred_region
          _
        $region128: #{forward.1} parent=11 // pred_fallthru
          _
        // Predicated region
        $region129: #{forward.1} parent=11 // pred_check
          %p1060 = pneg %p740
        $region130: #{forward.1} parent=11 // pred_check_branch
          %1062 = sbr.rel (%p1060) target = $region132
        $region131: #{forward.1} parent=11 // pred_region
          %1064 = vsyncadd [#allocation20], 0
          %s1065 = sshll.u32 %s61, 4
          %s1066 = int_to_ptr.hbm [resolvable:$true] %s1065
          %s1067 = sshll.u32 [#allocation21], 4
          %s1068 = int_to_ptr.vmem [resolvable:$true] %s1067
          %1073 = dma.hbm_to_vmem [thread:$0]  %s1066, 1024, %s1068, [#allocation20], 128, 128, 8
        $region132: #{forward.1} parent=11 // pred_fallthru
          _
        // Predicated region
        $region133: #{forward.1} parent=11 // pred_check
          %p1074 = pneg %p761
        $region134: #{forward.1} parent=11 // pred_check_branch
          %1076 = sbr.rel (%p1074) target = $region136
        $region135: #{forward.1} parent=11 // pred_region
          _
        $region136: #{forward.1} parent=11 // pred_fallthru
          _
        // Predicated region
        $region137: #{forward.1} parent=11 // pred_check
          %p1077 = pneg %p782
        $region138: #{forward.1} parent=11 // pred_check_branch
          %1079 = sbr.rel (%p1077) target = $region140
        $region139: #{forward.1} parent=11 // pred_region
          %1081 = vsyncadd [#allocation23], 0
          %s1082 = sshll.u32 %s65, 4
          %s1083 = int_to_ptr.hbm [resolvable:$true] %s1082
          %s1084 = sshll.u32 [#allocation22], 4
          %s1085 = int_to_ptr.vmem [resolvable:$true] %s1084
          %1090 = dma.hbm_to_vmem [thread:$0]  %s1083, 1024, %s1085, [#allocation23], 128, 128, 8
        $region140: #{forward.1} parent=11 // pred_fallthru
          _
        // Predicated region
        $region141: #{forward.1} parent=11 // pred_check
          %p1091 = pneg %p803
        $region142: #{forward.1} parent=11 // pred_check_branch
          %1093 = sbr.rel (%p1091) target = $region144
        $region143: #{forward.1} parent=11 // pred_region
          _
        $region144: #{forward.1} parent=11 // pred_fallthru
          _
        // Predicated region
        $region145: #{forward.1} parent=11 // pred_check
          %p1094 = pneg %p824
        $region146: #{forward.1} parent=11 // pred_check_branch
          %1096 = sbr.rel (%p1094) target = $region148
        $region147: #{forward.1} parent=11 // pred_region
          _
        $region148: #{forward.1} parent=11 // pred_fallthru
          _
      $region12: #{forward.1} parent=5 // pred_fallthru
        _
      %p1097 = scmp.lt.s32.totalorder %s84, 2
      // Predicated region
      $region149: #{forward.1} parent=5 // pred_check
        %p1098 = pneg %p1097
      $region150: #{forward.1} parent=5 // pred_check_branch
        %1100 = sbr.rel (%p1098) target = $region152
      $region151: #{forward.1} parent=5 // pred_region
        // Predicated region
        $region153: #{forward.1} parent=151 // pred_check
          %p1101 = pneg %p104
        $region154: #{forward.1} parent=151 // pred_check_branch
          %1103 = sbr.rel (%p1101) target = $region156
        $region155: #{forward.1} parent=151 // pred_region
          %p1104 = scmp.lt.s32.totalorder %s84, 1
          %s1105 = scalar_select %p1104, %s84, 1
          %s1106 = smul.addr %s1105, 3
          %s1107 = smul.addr %s1106, 8
          %s1108 = scalar_lea.vmem %s1, %s1107
        $region156: #{forward.1} parent=151 // pred_fallthru
          _
      $region152: #{forward.1} parent=5 // pred_fallthru
        _
      %p1109 = scmp.le.s32.totalorder 1, %s84
      %p1110 = scmp.lt.s32.totalorder %s84, 3
      %p1111 = pnand %p1109, %p1110
      %p1112 = pneg %p1111
      // Predicated region
      $region157: #{forward.1} parent=5 // pred_check
        _
      $region158: #{forward.1} parent=5 // pred_check_branch
        %1114 = sbr.rel (%p1111) target = $region160
      $region159: #{forward.1} parent=5 // pred_region
        %s1115 = ssub.s32 %s84, 1
        // Predicated region
        $region161: #{forward.1} parent=159 // pred_check
          %p1116 = pneg %p131
        $region162: #{forward.1} parent=159 // pred_check_branch
          %1118 = sbr.rel (%p1116) target = $region164
        $region163: #{forward.1} parent=159 // pred_region
          %1120 = dma.done [#allocation6], 1024
        $region164: #{forward.1} parent=159 // pred_fallthru
          _
        // Predicated region
        $region165: #{forward.1} parent=159 // pred_check
          %p1121 = pneg %p152
        $region166: #{forward.1} parent=159 // pred_check_branch
          %1123 = sbr.rel (%p1121) target = $region168
        $region167: #{forward.1} parent=159 // pred_region
          %1125 = dma.done [#allocation8], 1024
        $region168: #{forward.1} parent=159 // pred_fallthru
          _
        // Predicated region
        $region169: #{forward.1} parent=159 // pred_check
          %p1126 = pneg %p173
        $region170: #{forward.1} parent=159 // pred_check_branch
          %1128 = sbr.rel (%p1126) target = $region172
        $region171: #{forward.1} parent=159 // pred_region
          %1130 = dma.done [#allocation8], 1024
        $region172: #{forward.1} parent=159 // pred_fallthru
          _
        // Predicated region
        $region173: #{forward.1} parent=159 // pred_check
          %p1131 = pneg %p194
        $region174: #{forward.1} parent=159 // pred_check_branch
          %1133 = sbr.rel (%p1131) target = $region176
        $region175: #{forward.1} parent=159 // pred_region
          %1135 = dma.done [#allocation11], 3584
        $region176: #{forward.1} parent=159 // pred_fallthru
          _
        // Predicated region
        $region177: #{forward.1} parent=159 // pred_check
          %p1136 = pneg %p278
        $region178: #{forward.1} parent=159 // pred_check_branch
          %1138 = sbr.rel (%p1136) target = $region180
        $region179: #{forward.1} parent=159 // pred_region
          %1140 = dma.done [#allocation11], 128
        $region180: #{forward.1} parent=159 // pred_fallthru
          _
        // Predicated region
        $region181: #{forward.1} parent=159 // pred_check
          %p1141 = pneg %p362
        $region182: #{forward.1} parent=159 // pred_check_branch
          %1143 = sbr.rel (%p1141) target = $region184
        $region183: #{forward.1} parent=159 // pred_region
          %1145 = dma.done [#allocation14], 1024
        $region184: #{forward.1} parent=159 // pred_fallthru
          _
        // Predicated region
        $region185: #{forward.1} parent=159 // pred_check
          %p1146 = pneg %p404
        $region186: #{forward.1} parent=159 // pred_check_branch
          %1148 = sbr.rel (%p1146) target = $region188
        $region187: #{forward.1} parent=159 // pred_region
          %1150 = dma.done [#allocation14], 2048
        $region188: #{forward.1} parent=159 // pred_fallthru
          _
        // Predicated region
        $region189: #{forward.1} parent=159 // pred_check
          %p1151 = pneg %p551
        $region190: #{forward.1} parent=159 // pred_check_branch
          %1153 = sbr.rel (%p1151) target = $region192
        $region191: #{forward.1} parent=159 // pred_region
          %1155 = dma.done [#allocation17], 1024
        $region192: #{forward.1} parent=159 // pred_fallthru
          _
        // Predicated region
        $region193: #{forward.1} parent=159 // pred_check
          %p1156 = pneg %p593
        $region194: #{forward.1} parent=159 // pred_check_branch
          %1158 = sbr.rel (%p1156) target = $region196
        $region195: #{forward.1} parent=159 // pred_region
          %1160 = dma.done [#allocation17], 2048
        $region196: #{forward.1} parent=159 // pred_fallthru
          _
        // Predicated region
        $region197: #{forward.1} parent=159 // pred_check
          %p1161 = pneg %p698
        $region198: #{forward.1} parent=159 // pred_check_branch
          %1163 = sbr.rel (%p1161) target = $region200
        $region199: #{forward.1} parent=159 // pred_region
          %1165 = dma.done [#allocation20], 1024
        $region200: #{forward.1} parent=159 // pred_fallthru
          _
        // Predicated region
        $region201: #{forward.1} parent=159 // pred_check
          %p1166 = pneg %p740
        $region202: #{forward.1} parent=159 // pred_check_branch
          %1168 = sbr.rel (%p1166) target = $region204
        $region203: #{forward.1} parent=159 // pred_region
          %1170 = dma.done [#allocation20], 1024
        $region204: #{forward.1} parent=159 // pred_fallthru
          _
        // Predicated region
        $region205: #{forward.1} parent=159 // pred_check
          %p1171 = pneg %p782
        $region206: #{forward.1} parent=159 // pred_check_branch
          %1173 = sbr.rel (%p1171) target = $region208
        $region207: #{forward.1} parent=159 // pred_region
          %1175 = dma.done [#allocation23], 1024
        $region208: #{forward.1} parent=159 // pred_fallthru
          _
        %p1176 = scmp.lt.s32.totalorder %s89, 1
        %s1177 = scalar_select %p1176, %s89, 1
        %s1178 = smul.addr %s1177, 3
        %s1179 = smul.addr %s1178, 8
        %s1180 = scalar_lea.vmem %s1, %s1179
        %p1181 = pneg %p110
        %p1182 = pneg %p107
        %p1183 = pneg %p131
        %p1184 = pneg %p128
        %p1185 = pneg %p152
        %p1186 = pneg %p149
        %p1187 = pneg %p173
        %p1188 = pneg %p170
        %p1189 = pneg %p194
        %p1190 = pneg %p191
        %p1191 = pneg %p215
        %p1192 = pneg %p212
        %p1193 = pneg %p236
        %p1194 = pneg %p233
        %p1195 = pneg %p257
        %p1196 = pneg %p254
        %p1197 = pneg %p278
        %p1198 = pneg %p275
        %p1199 = pneg %p299
        %p1200 = pneg %p296
        %p1201 = pneg %p320
        %p1202 = pneg %p317
        %p1203 = pneg %p341
        %p1204 = pneg %p338
        %p1205 = pneg %p362
        %p1206 = pneg %p359
        %p1207 = pneg %p383
        %p1208 = pneg %p380
        %p1209 = pneg %p404
        %p1210 = pneg %p401
        %p1211 = pneg %p425
        %p1212 = pneg %p422
        %p1213 = pneg %p446
        %p1214 = pneg %p443
        %p1215 = pneg %p467
        %p1216 = pneg %p464
        %p1217 = pneg %p488
        %p1218 = pneg %p485
        %p1219 = pneg %p509
        %p1220 = pneg %p506
        %p1221 = pneg %p530
        %p1222 = pneg %p527
        %p1223 = pneg %p551
        %p1224 = pneg %p548
        %p1225 = pneg %p572
        %p1226 = pneg %p569
        %p1227 = pneg %p593
        %p1228 = pneg %p590
        %p1229 = pneg %p614
        %p1230 = pneg %p611
        %p1231 = pneg %p635
        %p1232 = pneg %p632
        %p1233 = pneg %p656
        %p1234 = pneg %p653
        %p1235 = pneg %p677
        %p1236 = pneg %p674
        %p1237 = pneg %p698
        %p1238 = pneg %p695
        %p1239 = pneg %p719
        %p1240 = pneg %p716
        %p1241 = pneg %p740
        %p1242 = pneg %p737
        %p1243 = pneg %p761
        %p1244 = pneg %p758
        %p1245 = pneg %p782
        %p1246 = pneg %p779
        %p1247 = pneg %p803
        %p1248 = pneg %p800
        %p1249 = pneg %p824
        %p1250 = pneg %p821
        %p1251 = pneg %p850
        %p1252 = pneg %p847
        %p1253 = scmp.lt.s32.totalorder %s89, 1
        %s1254 = scalar_select %p1253, %s89, 1
        %s1255 = smul.addr %s1254, 2
        %s1256 = smul.addr %s1255, 8
        %s1257 = scalar_lea.vmem %s71, %s1256
        %p1258 = scmp.lt.s32.totalorder %s89, 1
        %s1259 = scalar_select %p1258, %s89, 1
        %s1260 = smul.addr %s1259, 3
        %s1261 = smul.addr %s1260, 8
        %s1262 = scalar_lea.vmem %s1, %s1261
        %p1263 = scmp.lt.s32.totalorder %s89, 1
        %s1264 = scalar_select %p1263, %s89, 1
        %s1265 = smul.addr %s1264, 2
        %s1266 = smul.addr %s1265, 8
        %s1267 = scalar_lea.vmem %s71, %s1266
        %v1268 = vld [vmem:[%s1262] sm:$0xff]
        %v1269 = vld [vmem:[%s1262 + $0x8] sm:$0xff]
        %v1270 = vld [vmem:[%s1262 + $0x10] sm:$0x1]
        %v1271 = vld [vmem:[%s1262 + $0x1] sm:$0xff]
        %v1272 = vld [vmem:[%s1262 + $0x9] sm:$0xff]
        %v1273 = vld [vmem:[%s1262 + $0x11] sm:$0x1]
        %v1274 = vld [vmem:[%s1262 + $0x2] sm:$0xff]
        %v1275 = vld [vmem:[%s1262 + $0xa] sm:$0xff]
        %v1276 = vld [vmem:[%s1262 + $0x12] sm:$0x1]
        %v1277 = vld [vmem:[%s1262 + $0x3] sm:$0xff]
        %v1278 = vld [vmem:[%s1262 + $0xb] sm:$0xff]
        %v1279 = vld [vmem:[%s1262 + $0x13] sm:$0x1]
        %1283 = vrot.lane.b32.xlu0 %v1271, 16
        %v1284 = vpop.permute.xlu0 %1283
        %1285 = vrot.lane.b32.xlu0 %v1272, 16
        %v1286 = vpop.permute.xlu0 %1285
        %1287 = vrot.lane.b32.xlu0 %v1273, 16
        %v1288 = vpop.permute.xlu0 %1287
        %1295 = vrot.lane.b32.xlu0 %v1274, 32
        %v1296 = vpop.permute.xlu0 %1295
        %1297 = vrot.lane.b32.xlu0 %v1275, 32
        %v1298 = vpop.permute.xlu0 %1297
        %1299 = vrot.lane.b32.xlu0 %v1276, 32
        %v1300 = vpop.permute.xlu0 %1299
        %1307 = vrot.lane.b32.xlu0 %v1277, 48
        %v1308 = vpop.permute.xlu0 %1307
        %1309 = vrot.lane.b32.xlu0 %v1278, 48
        %v1310 = vpop.permute.xlu0 %1309
        %1311 = vrot.lane.b32.xlu0 %v1279, 48
        %v1312 = vpop.permute.xlu0 %1311
        %vm1316 = vcmask 130048
        %v1317 = vsel %vm1316, %v1268, %v1284
        %v1318 = vsel %vm1316, %v1269, %v1286
        %v1319 = vsel %vm1316, %v1270, %v1288
        %vm1320 = vcmask 261120
        %v1321 = vsel %vm1320, %v1317, %v1296
        %v1322 = vsel %vm1320, %v1318, %v1298
        %v1323 = vsel %vm1320, %v1319, %v1300
        %vm1324 = vcmask 392192
        %v1325 = vsel %vm1324, %v1321, %v1308
        %v1326 = vsel %vm1324, %v1322, %v1310
        %v1327 = vsel %vm1324, %v1323, %v1312
        %v1328 = vld [vmem:[#allocation5] sm:$0xff]
        %v1329 = vld [vmem:[#allocation5 + $0x8] sm:$0xff]
        %v1330 = vld [vmem:[#allocation5 + $0x10] sm:$0xff]
        %v1331 = vld [vmem:[#allocation5 + $0x18] sm:$0xff]
        %v1332 = vld [vmem:[#allocation5 + $0x20] sm:$0xff]
        %v1333 = vld [vmem:[#allocation5 + $0x28] sm:$0xff]
        %v1334 = vld [vmem:[#allocation5 + $0x30] sm:$0xff]
        %v1335 = vld [vmem:[#allocation5 + $0x38] sm:$0xff]
        %vm1336 = vcmask 523264
        %v1338 = vsel %vm1336, %v1325, 0
        %v1341 = vsel %vm1336, %v1326, 0
        %v1344 = vsel %vm1336, %v1327, 0
        %1346 = vmatpush.msra.mxu0 0.0
        %1347 = vmatpush.msra.mxu0 0.0
        %1348 = vmatpush.msra.mxu0 0.0
        %1349 = vmatpush.msra.mxu0 0.0
        %1350 = vmatpush.msra.mxu0 0.0
        %1351 = vmatpush.msra.mxu0 0.0
        %1352 = vmatpush.msra.mxu0 0.0
        %1353 = vmatpush.msra.mxu0 0.0
        %1354 = vmatpush.msra.mxu0 %v1335
        %1355 = vmatpush.msra.mxu0 %v1334
        %1356 = vmatpush.msra.mxu0 %v1333
        %1357 = vmatpush.msra.mxu0 %v1332
        %1358 = vmatpush.msra.mxu0 %v1331
        %1359 = vmatpush.msra.mxu0 %v1330
        %1360 = vmatpush.msra.mxu0 %v1329
        %1361 = vmatpush.msra.mxu0 %v1328
        %1362 = vmatmul.f32.gmra.mxu0 %v1338
        %v1363 = vpop.f32.mrf.mxu0
        %v1364 = vadd.f32 0.0, %v1363
        %1365 = vmatmul.f32.gmra.mxu0 %v1341
        %v1366 = vpop.f32.mrf.mxu0
        %v1367 = vadd.f32 0.0, %v1366
        %1368 = vmatmul.f32.gmra.mxu0 %v1344
        %v1369 = vpop.f32.mrf.mxu0
        %v1370 = vadd.f32 0.0, %v1369
        %1371 = vdwg.mxu0
        %v1372 = vld [vmem:[#allocation7] sm:$0xff]
        %v1373 = vld [vmem:[#allocation7 + $0x8] sm:$0xff]
        %v1374 = vld [vmem:[#allocation7 + $0x10] sm:$0xff]
        %v1375 = vld [vmem:[#allocation7 + $0x18] sm:$0xff]
        %v1376 = vld [vmem:[#allocation7 + $0x20] sm:$0xff]
        %v1377 = vld [vmem:[#allocation7 + $0x28] sm:$0xff]
        %v1378 = vld [vmem:[#allocation7 + $0x30] sm:$0xff]
        %v1379 = vld [vmem:[#allocation7 + $0x38] sm:$0xff]
        %1380 = vmatpush.msra.mxu0 0.0
        %1381 = vmatpush.msra.mxu0 0.0
        %1382 = vmatpush.msra.mxu0 0.0
        %1383 = vmatpush.msra.mxu0 0.0
        %1384 = vmatpush.msra.mxu0 0.0
        %1385 = vmatpush.msra.mxu0 0.0
        %1386 = vmatpush.msra.mxu0 0.0
        %1387 = vmatpush.msra.mxu0 0.0
        %1388 = vmatpush.msra.mxu0 %v1379
        %1389 = vmatpush.msra.mxu0 %v1378
        %1390 = vmatpush.msra.mxu0 %v1377
        %1391 = vmatpush.msra.mxu0 %v1376
        %1392 = vmatpush.msra.mxu0 %v1375
        %1393 = vmatpush.msra.mxu0 %v1374
        %1394 = vmatpush.msra.mxu0 %v1373
        %1395 = vmatpush.msra.mxu0 %v1372
        %1396 = vmatmul.f32.gmra.mxu0 %v1338
        %v1397 = vpop.f32.mrf.mxu0
        %v1398 = vadd.f32 0.0, %v1397
        %1399 = vmatmul.f32.gmra.mxu0 %v1341
        %v1400 = vpop.f32.mrf.mxu0
        %v1401 = vadd.f32 0.0, %v1400
        %1402 = vmatmul.f32.gmra.mxu0 %v1344
        %v1403 = vpop.f32.mrf.mxu0
        %v1404 = vadd.f32 0.0, %v1403
        %1405 = vdwg.mxu0
        %v1406 = vmul.f32 %v1364, %v1364
        %v1407 = vmul.f32 %v1367, %v1367
        %v1408 = vmul.f32 %v1370, %v1370
        %v1409 = vmul.f32 %v1398, %v1398
        %v1410 = vmul.f32 %v1401, %v1401
        %v1411 = vmul.f32 %v1404, %v1404
        %v1412 = vadd.f32 %v1406, %v1409
        %v1413 = vadd.f32 %v1407, %v1410
        %v1414 = vadd.f32 %v1408, %v1411
        %v1415 = vrsqrt.pop %v1412
        %v1416 = vmul.f32 %v1415, %v1412
        %v1417 = vmul.f32 %v1416, %v1415
        %v1418 = vmul.f32 0.5, %v1417
        %v1419 = vsub.f32 1.5, %v1418
        %v1420 = vmul.f32 %v1415, %v1419
        %v1421 = vmul.f32 %v1412, %v1420
        %vm1422 = vcmp.eq.f32.partialorder %v1412, inf
        %v1423 = vsel %vm1422, %v1412, %v1421
        %vm1424 = vcmp.eq.f32.partialorder %v1412, 0.0
        %v1425 = vand.u32 %v1412, 2147483648
        %v1426 = vsel %vm1424, %v1425, %v1423
        %v1427 = vrsqrt.pop %v1413
        %v1428 = vmul.f32 %v1427, %v1413
        %v1429 = vmul.f32 %v1428, %v1427
        %v1430 = vmul.f32 0.5, %v1429
        %v1431 = vsub.f32 1.5, %v1430
        %v1432 = vmul.f32 %v1427, %v1431
        %v1433 = vmul.f32 %v1413, %v1432
        %vm1434 = vcmp.eq.f32.partialorder %v1413, inf
        %v1435 = vsel %vm1434, %v1413, %v1433
        %vm1436 = vcmp.eq.f32.partialorder %v1413, 0.0
        %v1437 = vand.u32 %v1413, 2147483648
        %v1438 = vsel %vm1436, %v1437, %v1435
        %v1439 = vrsqrt.pop %v1414
        %v1440 = vmul.f32 %v1439, %v1414
        %v1441 = vmul.f32 %v1440, %v1439
        %v1442 = vmul.f32 0.5, %v1441
        %v1443 = vsub.f32 1.5, %v1442
        %v1444 = vmul.f32 %v1439, %v1443
        %v1445 = vmul.f32 %v1414, %v1444
        %vm1446 = vcmp.eq.f32.partialorder %v1414, inf
        %v1447 = vsel %vm1446, %v1414, %v1445
        %vm1448 = vcmp.eq.f32.partialorder %v1414, 0.0
        %v1449 = vand.u32 %v1414, 2147483648
        %v1450 = vsel %vm1448, %v1449, %v1447
        %v1451 = vld [vmem:[#allocation9] sm:$0xff]
        %v1452 = vld [vmem:[#allocation9 + $0x8] sm:$0xff]
        %v1453 = vld [vmem:[#allocation9 + $0x10] sm:$0xff]
        %v1454 = vld [vmem:[#allocation9 + $0x18] sm:$0xff]
        %v1455 = vld [vmem:[#allocation9 + $0x20] sm:$0xff]
        %v1456 = vld [vmem:[#allocation9 + $0x28] sm:$0xff]
        %v1457 = vld [vmem:[#allocation9 + $0x30] sm:$0xff]
        %v1458 = vld [vmem:[#allocation9 + $0x38] sm:$0xff]
        %v1460 = vsel %vm1336, %v1426, 0
        %v1463 = vsel %vm1336, %v1438, 0
        %v1466 = vsel %vm1336, %v1450, 0
        %1468 = vmatpush.msra.mxu0 0.0
        %1469 = vmatpush.msra.mxu0 0.0
        %1470 = vmatpush.msra.mxu0 0.0
        %1471 = vmatpush.msra.mxu0 0.0
        %1472 = vmatpush.msra.mxu0 0.0
        %1473 = vmatpush.msra.mxu0 0.0
        %1474 = vmatpush.msra.mxu0 0.0
        %1475 = vmatpush.msra.mxu0 0.0
        %1476 = vmatpush.msra.mxu0 %v1458
        %1477 = vmatpush.msra.mxu0 %v1457
        %1478 = vmatpush.msra.mxu0 %v1456
        %1479 = vmatpush.msra.mxu0 %v1455
        %1480 = vmatpush.msra.mxu0 %v1454
        %1481 = vmatpush.msra.mxu0 %v1453
        %1482 = vmatpush.msra.mxu0 %v1452
        %1483 = vmatpush.msra.mxu0 %v1451
        %1484 = vmatmul.f32.gmra.mxu0 %v1460
        %v1485 = vpop.f32.mrf.mxu0
        %v1486 = vadd.f32 0.0, %v1485
        %1487 = vmatmul.f32.gmra.mxu0 %v1463
        %v1488 = vpop.f32.mrf.mxu0
        %v1489 = vadd.f32 0.0, %v1488
        %1490 = vmatmul.f32.gmra.mxu0 %v1466
        %v1491 = vpop.f32.mrf.mxu0
        %v1492 = vadd.f32 0.0, %v1491
        %1493 = vdwg.mxu0
        %v1494 = vmax.f32 %v1486, 1e-07
        %v1495 = vmax.f32 %v1489, 1e-07
        %v1496 = vmax.f32 %v1492, 1e-07
        %v1497 = vlog2.pop %v1494
        %v1498 = vmul.f32 %v1497, 0.6931472
        %v1499 = vlog2.pop %v1495
        %v1500 = vmul.f32 %v1499, 0.6931472
        %v1501 = vlog2.pop %v1496
        %v1502 = vmul.f32 %v1501, 0.6931472
        %vm1503 = vcmask 256000
        %1504 = vst.msk [vmem:[#allocation2] sm:$0x7] %vm1503, 0.0
        %vm1505 = vcmask 257024
        %1506 = vst.msk [vmem:[#allocation2 + $0x14] sm:$0xf] %vm1505, 0.0
        %1507 = vst.msk [vmem:[#allocation2 + $0x3] sm:$0xff] %vm1320, %v1498
        %1508 = vst.msk [vmem:[#allocation2 + $0xb] sm:$0xff] %vm1320, %v1500
        %vm1509 = vcmask 253952
        %1510 = vst.msk [vmem:[#allocation2 + $0x13] sm:$0x1] %vm1509, %v1502
        %v1511 = vld [vmem:[#allocation2] sm:$0xff]
        %v1512 = vld [vmem:[#allocation2 + $0x8] sm:$0xff]
        %v1513 = vld [vmem:[#allocation2 + $0x10] sm:$0x1]
        %v1514 = vld [vmem:[#allocation2 + $0x1] sm:$0xff]
        %v1515 = vld [vmem:[#allocation2 + $0x9] sm:$0xff]
        %v1516 = vld [vmem:[#allocation2 + $0x11] sm:$0x1]
        %v1517 = vld [vmem:[#allocation2 + $0x2] sm:$0xff]
        %v1518 = vld [vmem:[#allocation2 + $0xa] sm:$0xff]
        %v1519 = vld [vmem:[#allocation2 + $0x12] sm:$0x1]
        %v1520 = vld [vmem:[#allocation2 + $0x3] sm:$0xff]
        %v1521 = vld [vmem:[#allocation2 + $0xb] sm:$0xff]
        %v1522 = vld [vmem:[#allocation2 + $0x13] sm:$0x1]
        %v1523 = vld [vmem:[#allocation2 + $0x4] sm:$0xff]
        %v1524 = vld [vmem:[#allocation2 + $0xc] sm:$0xff]
        %v1525 = vld [vmem:[#allocation2 + $0x14] sm:$0x1]
        %v1526 = vld [vmem:[#allocation2 + $0x5] sm:$0xff]
        %v1527 = vld [vmem:[#allocation2 + $0xd] sm:$0xff]
        %v1528 = vld [vmem:[#allocation2 + $0x15] sm:$0x1]
        %v1529 = vld [vmem:[#allocation2 + $0x6] sm:$0xff]
        %v1530 = vld [vmem:[#allocation2 + $0xe] sm:$0xff]
        %v1531 = vld [vmem:[#allocation2 + $0x16] sm:$0x1]
        %1535 = vrot.lane.b32.xlu0 %v1514, 32
        %v1536 = vpop.permute.xlu0 %1535
        %1537 = vrot.lane.b32.xlu0 %v1515, 32
        %v1538 = vpop.permute.xlu0 %1537
        %1539 = vrot.lane.b32.xlu0 %v1516, 32
        %v1540 = vpop.permute.xlu0 %1539
        %1547 = vrot.lane.b32.xlu0 %v1517, 64
        %v1548 = vpop.permute.xlu0 %1547
        %1549 = vrot.lane.b32.xlu0 %v1518, 64
        %v1550 = vpop.permute.xlu0 %1549
        %1551 = vrot.lane.b32.xlu0 %v1519, 64
        %v1552 = vpop.permute.xlu0 %1551
        %1559 = vrot.lane.b32.xlu0 %v1520, 96
        %v1560 = vpop.permute.xlu0 %1559
        %1561 = vrot.lane.b32.xlu0 %v1521, 96
        %v1562 = vpop.permute.xlu0 %1561
        %1563 = vrot.lane.b32.xlu0 %v1522, 96
        %v1564 = vpop.permute.xlu0 %1563
        %1571 = vrot.lane.b32.xlu0 %v1526, 32
        %v1572 = vpop.permute.xlu0 %1571
        %1573 = vrot.lane.b32.xlu0 %v1527, 32
        %v1574 = vpop.permute.xlu0 %1573
        %1575 = vrot.lane.b32.xlu0 %v1528, 32
        %v1576 = vpop.permute.xlu0 %1575
        %1583 = vrot.lane.b32.xlu0 %v1529, 64
        %v1584 = vpop.permute.xlu0 %1583
        %1585 = vrot.lane.b32.xlu0 %v1530, 64
        %v1586 = vpop.permute.xlu0 %1585
        %1587 = vrot.lane.b32.xlu0 %v1531, 64
        %v1588 = vpop.permute.xlu0 %1587
        %v1592 = vsel %vm1320, %v1511, %v1536
        %v1593 = vsel %vm1320, %v1512, %v1538
        %v1594 = vsel %vm1320, %v1513, %v1540
        %v1595 = vsel %vm1336, %v1592, %v1548
        %v1596 = vsel %vm1336, %v1593, %v1550
        %v1597 = vsel %vm1336, %v1594, %v1552
        %vm1598 = vcmask 785408
        %v1599 = vsel %vm1598, %v1595, %v1560
        %v1600 = vsel %vm1598, %v1596, %v1562
        %v1601 = vsel %vm1598, %v1597, %v1564
        %v1602 = vsel %vm1320, %v1523, %v1572
        %v1603 = vsel %vm1320, %v1524, %v1574
        %v1604 = vsel %vm1320, %v1525, %v1576
        %v1605 = vsel %vm1336, %v1602, %v1584
        %v1606 = vsel %vm1336, %v1603, %v1586
        %v1607 = vsel %vm1336, %v1604, %v1588
        %v1608 = vld [vmem:[#allocation10] sm:$0xff]
        %v1609 = vld [vmem:[#allocation10 + $0x8] sm:$0xff]
        %v1610 = vld [vmem:[#allocation10 + $0x10] sm:$0xff]
        %v1611 = vld [vmem:[#allocation10 + $0x18] sm:$0xff]
        %v1612 = vld [vmem:[#allocation10 + $0x20] sm:$0xff]
        %v1613 = vld [vmem:[#allocation10 + $0x28] sm:$0xff]
        %v1614 = vld [vmem:[#allocation10 + $0x30] sm:$0xff]
        %v1615 = vld [vmem:[#allocation10 + $0x38] sm:$0xff]
        %v1616 = vld [vmem:[#allocation10 + $0x40] sm:$0xff]
        %v1617 = vld [vmem:[#allocation10 + $0x48] sm:$0xff]
        %v1618 = vld [vmem:[#allocation10 + $0x50] sm:$0xff]
        %v1619 = vld [vmem:[#allocation10 + $0x58] sm:$0xff]
        %v1620 = vld [vmem:[#allocation10 + $0x60] sm:$0xff]
        %v1621 = vld [vmem:[#allocation10 + $0x68] sm:$0xff]
        %v1622 = vld [vmem:[#allocation10 + $0x70] sm:$0xff]
        %v1623 = vld [vmem:[#allocation10 + $0x78] sm:$0xff]
        %v1624 = vld [vmem:[#allocation10 + $0x80] sm:$0xff]
        %v1625 = vld [vmem:[#allocation10 + $0x88] sm:$0xff]
        %v1626 = vld [vmem:[#allocation10 + $0x90] sm:$0xff]
        %v1627 = vld [vmem:[#allocation10 + $0x98] sm:$0xff]
        %v1628 = vld [vmem:[#allocation10 + $0xa0] sm:$0xff]
        %v1629 = vld [vmem:[#allocation10 + $0xa8] sm:$0xff]
        %v1630 = vld [vmem:[#allocation10 + $0xb0] sm:$0xff]
        %v1631 = vld [vmem:[#allocation10 + $0xb8] sm:$0xff]
        %v1632 = vld [vmem:[#allocation10 + $0xc0] sm:$0xff]
        %v1633 = vld [vmem:[#allocation10 + $0xc8] sm:$0xff]
        %v1634 = vld [vmem:[#allocation10 + $0xd0] sm:$0xff]
        %v1635 = vld [vmem:[#allocation10 + $0xd8] sm:$0xff]
        %v1636 = vld [vmem:[%s11] sm:$0x1]
        %v1638 = vperm.slane %v1636, 0
        %v1641 = vsel %vm1598, %v1605, 0
        %v1644 = vsel %vm1598, %v1606, 0
        %v1647 = vsel %vm1598, %v1607, 0
        %1649 = vmatpush.msra.mxu0 %v1623
        %1650 = vmatpush.msra.mxu0 %v1622
        %1651 = vmatpush.msra.mxu0 %v1621
        %1652 = vmatpush.msra.mxu0 %v1620
        %1653 = vmatpush.msra.mxu0 %v1619
        %1654 = vmatpush.msra.mxu0 %v1618
        %1655 = vmatpush.msra.mxu0 %v1617
        %1656 = vmatpush.msra.mxu0 %v1616
        %1657 = vmatpush.msra.mxu0 %v1615
        %1658 = vmatpush.msra.mxu0 %v1614
        %1659 = vmatpush.msra.mxu0 %v1613
        %1660 = vmatpush.msra.mxu0 %v1612
        %1661 = vmatpush.msra.mxu0 %v1611
        %1662 = vmatpush.msra.mxu0 %v1610
        %1663 = vmatpush.msra.mxu0 %v1609
        %1664 = vmatpush.msra.mxu0 %v1608
        %1665 = vmatmul.f32.gmra.mxu0 %v1599
        %v1666 = vpop.f32.mrf.mxu0
        %v1667 = vadd.f32 %v1638, %v1666
        %1668 = vmatmul.f32.gmra.mxu0 %v1600
        %v1669 = vpop.f32.mrf.mxu0
        %v1670 = vadd.f32 %v1638, %v1669
        %1671 = vmatmul.f32.gmra.mxu0 %v1601
        %v1672 = vpop.f32.mrf.mxu0
        %v1673 = vadd.f32 %v1638, %v1672
        %1674 = vdwg.mxu0
        %1675 = vmatpush.msra.mxu0 0.0
        %1676 = vmatpush.msra.mxu0 0.0
        %1677 = vmatpush.msra.mxu0 0.0
        %1678 = vmatpush.msra.mxu0 0.0
        %1679 = vmatpush.msra.mxu0 %v1635
        %1680 = vmatpush.msra.mxu0 %v1634
        %1681 = vmatpush.msra.mxu0 %v1633
        %1682 = vmatpush.msra.mxu0 %v1632
        %1683 = vmatpush.msra.mxu0 %v1631
        %1684 = vmatpush.msra.mxu0 %v1630
        %1685 = vmatpush.msra.mxu0 %v1629
        %1686 = vmatpush.msra.mxu0 %v1628
        %1687 = vmatpush.msra.mxu0 %v1627
        %1688 = vmatpush.msra.mxu0 %v1626
        %1689 = vmatpush.msra.mxu0 %v1625
        %1690 = vmatpush.msra.mxu0 %v1624
        %1691 = vmatmul.f32.gmra.mxu0 %v1641
        %v1692 = vpop.f32.mrf.mxu0
        %v1693 = vadd.f32 %v1667, %v1692
        %1694 = vmatmul.f32.gmra.mxu0 %v1644
        %v1695 = vpop.f32.mrf.mxu0
        %v1696 = vadd.f32 %v1670, %v1695
        %1697 = vmatmul.f32.gmra.mxu0 %v1647
        %v1698 = vpop.f32.mrf.mxu0
        %v1699 = vadd.f32 %v1673, %v1698
        %1700 = vdwg.mxu0
        %v1701 = vld [vmem:[%s13] sm:$0x1]
        %v1702 = vld [vmem:[%s15] sm:$0x1]
        %v1703 = vsel %vm1336, %v1693, 0.0
        %1704 = vadd.xlane.f32.xlu0 %v1703
        %v1705 = vpop.xlane.xlu0 %1704
        %v1706 = vsel %vm1336, %v1696, 0.0
        %1707 = vadd.xlane.f32.xlu0 %v1706
        %v1708 = vpop.xlane.xlu0 %1707
        %vm1709 = vcmask 516096
        %v1710 = vsel %vm1709, %v1699, 0.0
        %1711 = vadd.xlane.f32.xlu0 %v1710
        %v1712 = vpop.xlane.xlu0 %1711
        %v1713 = vrcp.pop 64.0
        %v1714 = vmul.f32 64.0, %v1713
        %v1715 = vsub.f32 1.0, %v1714
        %v1716 = vmul.f32 %v1713, %v1715
        %v1717 = vadd.f32 %v1713, %v1716
        %vm1718 = vweird.f32 %v1713
        %v1719 = vsel %vm1718, %v1713, %v1717
        %v1720 = vmul.f32 %v1705, %v1719
        %v1721 = vmul.f32 %v1708, %v1719
        %v1722 = vmul.f32 %v1712, %v1719
        %v1723 = vsub.f32 %v1693, %v1720
        %v1724 = vsub.f32 %v1696, %v1721
        %v1725 = vsub.f32 %v1699, %v1722
        %v1726 = vmul.f32 %v1723, %v1723
        %v1727 = vmul.f32 %v1724, %v1724
        %v1728 = vmul.f32 %v1725, %v1725
        %v1729 = vsel %vm1336, %v1726, 0.0
        %1730 = vadd.xlane.f32.xlu0 %v1729
        %v1731 = vpop.xlane.xlu0 %1730
        %v1732 = vsel %vm1336, %v1727, 0.0
        %1733 = vadd.xlane.f32.xlu0 %v1732
        %v1734 = vpop.xlane.xlu0 %1733
        %v1735 = vsel %vm1709, %v1728, 0.0
        %1736 = vadd.xlane.f32.xlu0 %v1735
        %v1737 = vpop.xlane.xlu0 %1736
        %v1738 = vmul.f32 %v1731, %v1719
        %v1739 = vmul.f32 %v1734, %v1719
        %v1740 = vmul.f32 %v1737, %v1719
        %v1741 = vadd.f32 %v1738, 1e-06
        %v1742 = vadd.f32 %v1739, 1e-06
        %v1743 = vadd.f32 %v1740, 1e-06
        %v1744 = vrsqrt.pop %v1741
        %v1745 = vmul.f32 %v1744, %v1741
        %v1746 = vmul.f32 %v1745, %v1744
        %v1747 = vmul.f32 0.5, %v1746
        %v1748 = vsub.f32 1.5, %v1747
        %v1749 = vmul.f32 %v1744, %v1748
        %vm1750 = vweird.f32 %v1741
        %vm1751 = vweird.f32 %v1744
        %vm1752 = vmor %vm1750, %vm1751
        %v1753 = vsel %vm1752, %v1744, %v1749
        %v1754 = vrsqrt.pop %v1742
        %v1755 = vmul.f32 %v1754, %v1742
        %v1756 = vmul.f32 %v1755, %v1754
        %v1757 = vmul.f32 0.5, %v1756
        %v1758 = vsub.f32 1.5, %v1757
        %v1759 = vmul.f32 %v1754, %v1758
        %vm1760 = vweird.f32 %v1742
        %vm1761 = vweird.f32 %v1754
        %vm1762 = vmor %vm1760, %vm1761
        %v1763 = vsel %vm1762, %v1754, %v1759
        %v1764 = vrsqrt.pop %v1743
        %v1765 = vmul.f32 %v1764, %v1743
        %v1766 = vmul.f32 %v1765, %v1764
        %v1767 = vmul.f32 0.5, %v1766
        %v1768 = vsub.f32 1.5, %v1767
        %v1769 = vmul.f32 %v1764, %v1768
        %vm1770 = vweird.f32 %v1743
        %vm1771 = vweird.f32 %v1764
        %vm1772 = vmor %vm1770, %vm1771
        %v1773 = vsel %vm1772, %v1764, %v1769
        %v1774 = vmul.f32 %v1723, %v1753
        %v1775 = vmul.f32 %v1724, %v1763
        %v1776 = vmul.f32 %v1725, %v1773
        %v1778 = vperm.slane %v1701, 0
        %v1780 = vmul.f32 %v1774, %v1778
        %v1781 = vmul.f32 %v1775, %v1778
        %v1782 = vmul.f32 %v1776, %v1778
        %v1784 = vperm.slane %v1702, 0
        %v1786 = vadd.f32 %v1780, %v1784
        %v1787 = vadd.f32 %v1781, %v1784
        %v1788 = vadd.f32 %v1782, %v1784
        %vm1789 = vcmask 518144
        %1790 = vst.msk [vmem:[#allocation3] sm:$0x7] %vm1789, 0.0
        %vm1791 = vcmask 519168
        %1792 = vst.msk [vmem:[#allocation3 + $0x14] sm:$0xf] %vm1791, 0.0
        %1793 = vst.msk [vmem:[#allocation3 + $0x3] sm:$0xff] %vm1336, %v1786
        %1794 = vst.msk [vmem:[#allocation3 + $0xb] sm:$0xff] %vm1336, %v1787
        %1795 = vst.msk [vmem:[#allocation3 + $0x13] sm:$0x1] %vm1709, %v1788
        %v1796 = vld [vmem:[%s19] sm:$0x1]
        %v1798 = vperm.slane %v1796, 0
        %v1800 = vadd.f32 %v1798, 0.0
        %v1801 = vld [vmem:[#allocation3] sm:$0xff]
        %v1802 = vld [vmem:[#allocation3 + $0x8] sm:$0xff]
        %v1803 = vld [vmem:[#allocation3 + $0x10] sm:$0x1]
        %v1804 = vld [vmem:[#allocation12] sm:$0x1]
        %v1805 = vperm.slane %v1804, 0
        %v1806 = vmul.f32 %v1801, %v1805
        %v1807 = vmul.f32 %v1802, %v1805
        %v1808 = vmul.f32 %v1803, %v1805
        %v1809 = vadd.f32 %v1800, %v1806
        %v1810 = vadd.f32 %v1800, %v1807
        %v1811 = vadd.f32 %v1800, %v1808
        %v1812 = vld [vmem:[#allocation3 + $0x1] sm:$0xff]
        %v1813 = vld [vmem:[#allocation3 + $0x9] sm:$0xff]
        %v1814 = vld [vmem:[#allocation3 + $0x11] sm:$0x1]
        %v1815 = vld [vmem:[#allocation12 + $0x1] sm:$0x1]
        %v1816 = vperm.slane %v1815, 0
        %v1817 = vmul.f32 %v1812, %v1816
        %v1818 = vmul.f32 %v1813, %v1816
        %v1819 = vmul.f32 %v1814, %v1816
        %v1820 = vadd.f32 %v1809, %v1817
        %v1821 = vadd.f32 %v1810, %v1818
        %v1822 = vadd.f32 %v1811, %v1819
        %v1823 = vld [vmem:[#allocation3 + $0x2] sm:$0xff]
        %v1824 = vld [vmem:[#allocation3 + $0xa] sm:$0xff]
        %v1825 = vld [vmem:[#allocation3 + $0x12] sm:$0x1]
        %v1826 = vld [vmem:[#allocation12 + $0x2] sm:$0x1]
        %v1827 = vperm.slane %v1826, 0
        %v1828 = vmul.f32 %v1823, %v1827
        %v1829 = vmul.f32 %v1824, %v1827
        %v1830 = vmul.f32 %v1825, %v1827
        %v1831 = vadd.f32 %v1820, %v1828
        %v1832 = vadd.f32 %v1821, %v1829
        %v1833 = vadd.f32 %v1822, %v1830
        %v1834 = vld [vmem:[#allocation3 + $0x3] sm:$0xff]
        %v1835 = vld [vmem:[#allocation3 + $0xb] sm:$0xff]
        %v1836 = vld [vmem:[#allocation3 + $0x13] sm:$0x1]
        %v1837 = vld [vmem:[#allocation12 + $0x3] sm:$0x1]
        %v1838 = vperm.slane %v1837, 0
        %v1839 = vmul.f32 %v1834, %v1838
        %v1840 = vmul.f32 %v1835, %v1838
        %v1841 = vmul.f32 %v1836, %v1838
        %v1842 = vadd.f32 %v1831, %v1839
        %v1843 = vadd.f32 %v1832, %v1840
        %v1844 = vadd.f32 %v1833, %v1841
        %v1845 = vld [vmem:[#allocation3 + $0x4] sm:$0xff]
        %v1846 = vld [vmem:[#allocation3 + $0xc] sm:$0xff]
        %v1847 = vld [vmem:[#allocation3 + $0x14] sm:$0x1]
        %v1848 = vld [vmem:[#allocation12 + $0x4] sm:$0x1]
        %v1849 = vperm.slane %v1848, 0
        %v1850 = vmul.f32 %v1845, %v1849
        %v1851 = vmul.f32 %v1846, %v1849
        %v1852 = vmul.f32 %v1847, %v1849
        %v1853 = vadd.f32 %v1842, %v1850
        %v1854 = vadd.f32 %v1843, %v1851
        %v1855 = vadd.f32 %v1844, %v1852
        %v1856 = vld [vmem:[#allocation3 + $0x5] sm:$0xff]
        %v1857 = vld [vmem:[#allocation3 + $0xd] sm:$0xff]
        %v1858 = vld [vmem:[#allocation3 + $0x15] sm:$0x1]
        %v1859 = vld [vmem:[#allocation12 + $0x5] sm:$0x1]
        %v1860 = vperm.slane %v1859, 0
        %v1861 = vmul.f32 %v1856, %v1860
        %v1862 = vmul.f32 %v1857, %v1860
        %v1863 = vmul.f32 %v1858, %v1860
        %v1864 = vadd.f32 %v1853, %v1861
        %v1865 = vadd.f32 %v1854, %v1862
        %v1866 = vadd.f32 %v1855, %v1863
        %v1867 = vld [vmem:[#allocation3 + $0x6] sm:$0xff]
        %v1868 = vld [vmem:[#allocation3 + $0xe] sm:$0xff]
        %v1869 = vld [vmem:[#allocation3 + $0x16] sm:$0x1]
        %v1870 = vld [vmem:[#allocation12 + $0x6] sm:$0x1]
        %v1871 = vperm.slane %v1870, 0
        %v1872 = vmul.f32 %v1867, %v1871
        %v1873 = vmul.f32 %v1868, %v1871
        %v1874 = vmul.f32 %v1869, %v1871
        %v1875 = vadd.f32 %v1864, %v1872
        %v1876 = vadd.f32 %v1865, %v1873
        %v1877 = vadd.f32 %v1866, %v1874
        %v1878 = vld [vmem:[%s21] sm:$0x1]
        %v1879 = vld [vmem:[%s23] sm:$0x1]
        %v1880 = vsel %vm1336, %v1875, 0.0
        %1881 = vadd.xlane.f32.xlu0 %v1880
        %v1882 = vpop.xlane.xlu0 %1881
        %v1883 = vsel %vm1336, %v1876, 0.0
        %1884 = vadd.xlane.f32.xlu0 %v1883
        %v1885 = vpop.xlane.xlu0 %1884
        %v1886 = vsel %vm1709, %v1877, 0.0
        %1887 = vadd.xlane.f32.xlu0 %v1886
        %v1888 = vpop.xlane.xlu0 %1887
        %v1889 = vmul.f32 %v1882, %v1719
        %v1890 = vmul.f32 %v1885, %v1719
        %v1891 = vmul.f32 %v1888, %v1719
        %v1892 = vsub.f32 %v1875, %v1889
        %v1893 = vsub.f32 %v1876, %v1890
        %v1894 = vsub.f32 %v1877, %v1891
        %v1895 = vmul.f32 %v1892, %v1892
        %v1896 = vmul.f32 %v1893, %v1893
        %v1897 = vmul.f32 %v1894, %v1894
        %v1898 = vsel %vm1336, %v1895, 0.0
        %1899 = vadd.xlane.f32.xlu0 %v1898
        %v1900 = vpop.xlane.xlu0 %1899
        %v1901 = vsel %vm1336, %v1896, 0.0
        %1902 = vadd.xlane.f32.xlu0 %v1901
        %v1903 = vpop.xlane.xlu0 %1902
        %v1904 = vsel %vm1709, %v1897, 0.0
        %1905 = vadd.xlane.f32.xlu0 %v1904
        %v1906 = vpop.xlane.xlu0 %1905
        %v1907 = vmul.f32 %v1900, %v1719
        %v1908 = vmul.f32 %v1903, %v1719
        %v1909 = vmul.f32 %v1906, %v1719
        %v1910 = vadd.f32 %v1907, 1e-06
        %v1911 = vadd.f32 %v1908, 1e-06
        %v1912 = vadd.f32 %v1909, 1e-06
        %v1913 = vrsqrt.pop %v1910
        %v1914 = vmul.f32 %v1913, %v1910
        %v1915 = vmul.f32 %v1914, %v1913
        %v1916 = vmul.f32 0.5, %v1915
        %v1917 = vsub.f32 1.5, %v1916
        %v1918 = vmul.f32 %v1913, %v1917
        %vm1919 = vweird.f32 %v1910
        %vm1920 = vweird.f32 %v1913
        %vm1921 = vmor %vm1919, %vm1920
        %v1922 = vsel %vm1921, %v1913, %v1918
        %v1923 = vrsqrt.pop %v1911
        %v1924 = vmul.f32 %v1923, %v1911
        %v1925 = vmul.f32 %v1924, %v1923
        %v1926 = vmul.f32 0.5, %v1925
        %v1927 = vsub.f32 1.5, %v1926
        %v1928 = vmul.f32 %v1923, %v1927
        %vm1929 = vweird.f32 %v1911
        %vm1930 = vweird.f32 %v1923
        %vm1931 = vmor %vm1929, %vm1930
        %v1932 = vsel %vm1931, %v1923, %v1928
        %v1933 = vrsqrt.pop %v1912
        %v1934 = vmul.f32 %v1933, %v1912
        %v1935 = vmul.f32 %v1934, %v1933
        %v1936 = vmul.f32 0.5, %v1935
        %v1937 = vsub.f32 1.5, %v1936
        %v1938 = vmul.f32 %v1933, %v1937
        %vm1939 = vweird.f32 %v1912
        %vm1940 = vweird.f32 %v1933
        %vm1941 = vmor %vm1939, %vm1940
        %v1942 = vsel %vm1941, %v1933, %v1938
        %v1943 = vmul.f32 %v1892, %v1922
        %v1944 = vmul.f32 %v1893, %v1932
        %v1945 = vmul.f32 %v1894, %v1942
        %v1947 = vperm.slane %v1878, 0
        %v1949 = vmul.f32 %v1943, %v1947
        %v1950 = vmul.f32 %v1944, %v1947
        %v1951 = vmul.f32 %v1945, %v1947
        %v1953 = vperm.slane %v1879, 0
        %v1955 = vadd.f32 %v1949, %v1953
        %v1956 = vadd.f32 %v1950, %v1953
        %v1957 = vadd.f32 %v1951, %v1953
        %v1958 = vld [vmem:[#allocation13] sm:$0xff]
        %v1959 = vld [vmem:[#allocation13 + $0x8] sm:$0xff]
        %v1960 = vld [vmem:[#allocation13 + $0x10] sm:$0xff]
        %v1961 = vld [vmem:[#allocation13 + $0x18] sm:$0xff]
        %v1962 = vld [vmem:[#allocation13 + $0x20] sm:$0xff]
        %v1963 = vld [vmem:[#allocation13 + $0x28] sm:$0xff]
        %v1964 = vld [vmem:[#allocation13 + $0x30] sm:$0xff]
        %v1965 = vld [vmem:[#allocation13 + $0x38] sm:$0xff]
        %v1966 = vld [vmem:[%s27] sm:$0x1]
        %v1968 = vperm.slane %v1966, 0
        %v1971 = vsel %vm1336, %v1955, 0
        %v1974 = vsel %vm1336, %v1956, 0
        %v1977 = vsel %vm1336, %v1957, 0
        %1979 = vmatpush.msra.mxu0 0.0
        %1980 = vmatpush.msra.mxu0 0.0
        %1981 = vmatpush.msra.mxu0 0.0
        %1982 = vmatpush.msra.mxu0 0.0
        %1983 = vmatpush.msra.mxu0 0.0
        %1984 = vmatpush.msra.mxu0 0.0
        %1985 = vmatpush.msra.mxu0 0.0
        %1986 = vmatpush.msra.mxu0 0.0
        %1987 = vmatpush.msra.mxu0 %v1965
        %1988 = vmatpush.msra.mxu0 %v1964
        %1989 = vmatpush.msra.mxu0 %v1963
        %1990 = vmatpush.msra.mxu0 %v1962
        %1991 = vmatpush.msra.mxu0 %v1961
        %1992 = vmatpush.msra.mxu0 %v1960
        %1993 = vmatpush.msra.mxu0 %v1959
        %1994 = vmatpush.msra.mxu0 %v1958
        %1995 = vmatmul.f32.gmra.mxu0 %v1971
        %v1996 = vpop.f32.mrf.mxu0
        %v1997 = vadd.f32 %v1968, %v1996
        %1998 = vmatmul.f32.gmra.mxu0 %v1974
        %v1999 = vpop.f32.mrf.mxu0
        %v2000 = vadd.f32 %v1968, %v1999
        %2001 = vmatmul.f32.gmra.mxu0 %v1977
        %v2002 = vpop.f32.mrf.mxu0
        %v2003 = vadd.f32 %v1968, %v2002
        %2004 = vdwg.mxu0
        %v2005 = vmul.f32 %v1997, 0.5
        %v2006 = vmul.f32 %v2000, 0.5
        %v2007 = vmul.f32 %v2003, 0.5
        %v2008 = vmul.f32 %v1997, 0.70710677
        %v2009 = vmul.f32 %v2000, 0.70710677
        %v2010 = vmul.f32 %v2003, 0.70710677
        %vm2011 = vcmp.lt.f32.partialorder %v2008, 0.0
        %vm2012 = vcmp.lt.f32.partialorder %v2009, 0.0
        %vm2013 = vcmp.lt.f32.partialorder %v2010, 0.0
        %v2014 = vsel %vm2011, -1.0, 1.0
        %v2015 = vsel %vm2012, -1.0, 1.0
        %v2016 = vsel %vm2013, -1.0, 1.0
        %v2017 = vand.u32 2147483647, %v2008
        %v2018 = vand.u32 2147483647, %v2009
        %v2019 = vand.u32 2147483647, %v2010
        %v2020 = vmul.f32 %v2017, 0.3275911
        %v2021 = vmul.f32 %v2018, 0.3275911
        %v2022 = vmul.f32 %v2019, 0.3275911
        %v2023 = vadd.f32 %v2020, 1.0
        %v2024 = vadd.f32 %v2021, 1.0
        %v2025 = vadd.f32 %v2022, 1.0
        %v2026 = vrcp.pop %v2023
        %v2027 = vmul.f32 %v2023, %v2026
        %v2028 = vsub.f32 1.0, %v2027
        %v2029 = vmul.f32 %v2026, %v2028
        %v2030 = vadd.f32 %v2026, %v2029
        %vm2031 = vweird.f32 %v2023
        %vm2032 = vweird.f32 %v2026
        %vm2033 = vmor %vm2031, %vm2032
        %v2034 = vsel %vm2033, %v2026, %v2030
        %v2035 = vand.u32 2147483647, %v2023
        %vm2036 = vcmp.eq.f32.partialorder %v2035, 8.507059e+37
        %v2037 = vand.u32 %v2023, 2147483648
        %v2038 = vor.u32 1.1754944e-38, %v2037
        %v2039 = vsel %vm2036, %v2038, %v2034
        %v2040 = vmul.f32 1.0, %v2039
        %v2041 = vrcp.pop %v2024
        %v2042 = vmul.f32 %v2024, %v2041
        %v2043 = vsub.f32 1.0, %v2042
        %v2044 = vmul.f32 %v2041, %v2043
        %v2045 = vadd.f32 %v2041, %v2044
        %vm2046 = vweird.f32 %v2024
        %vm2047 = vweird.f32 %v2041
        %vm2048 = vmor %vm2046, %vm2047
        %v2049 = vsel %vm2048, %v2041, %v2045
        %v2050 = vand.u32 2147483647, %v2024
        %vm2051 = vcmp.eq.f32.partialorder %v2050, 8.507059e+37
        %v2052 = vand.u32 %v2024, 2147483648
        %v2053 = vor.u32 1.1754944e-38, %v2052
        %v2054 = vsel %vm2051, %v2053, %v2049
        %v2055 = vmul.f32 1.0, %v2054
        %v2056 = vrcp.pop %v2025
        %v2057 = vmul.f32 %v2025, %v2056
        %v2058 = vsub.f32 1.0, %v2057
        %v2059 = vmul.f32 %v2056, %v2058
        %v2060 = vadd.f32 %v2056, %v2059
        %vm2061 = vweird.f32 %v2025
        %vm2062 = vweird.f32 %v2056
        %vm2063 = vmor %vm2061, %vm2062
        %v2064 = vsel %vm2063, %v2056, %v2060
        %v2065 = vand.u32 2147483647, %v2025
        %vm2066 = vcmp.eq.f32.partialorder %v2065, 8.507059e+37
        %v2067 = vand.u32 %v2025, 2147483648
        %v2068 = vor.u32 1.1754944e-38, %v2067
        %v2069 = vsel %vm2066, %v2068, %v2064
        %v2070 = vmul.f32 1.0, %v2069
        %v2071 = vmul.f32 %v2040, 1.0614054
        %v2072 = vmul.f32 %v2055, 1.0614054
        %v2073 = vmul.f32 %v2070, 1.0614054
        %v2074 = vadd.f32 %v2071, -1.4531521
        %v2075 = vadd.f32 %v2072, -1.4531521
        %v2076 = vadd.f32 %v2073, -1.4531521
        %v2077 = vmul.f32 %v2074, %v2040
        %v2078 = vmul.f32 %v2075, %v2055
        %v2079 = vmul.f32 %v2076, %v2070
        %v2080 = vadd.f32 %v2077, 1.4214138
        %v2081 = vadd.f32 %v2078, 1.4214138
        %v2082 = vadd.f32 %v2079, 1.4214138
        %v2083 = vmul.f32 %v2080, %v2040
        %v2084 = vmul.f32 %v2081, %v2055
        %v2085 = vmul.f32 %v2082, %v2070
        %v2086 = vadd.f32 %v2083, -0.28449672
        %v2087 = vadd.f32 %v2084, -0.28449672
        %v2088 = vadd.f32 %v2085, -0.28449672
        %v2089 = vmul.f32 %v2086, %v2040
        %v2090 = vmul.f32 %v2087, %v2055
        %v2091 = vmul.f32 %v2088, %v2070
        %v2092 = vadd.f32 %v2089, 0.2548296
        %v2093 = vadd.f32 %v2090, 0.2548296
        %v2094 = vadd.f32 %v2091, 0.2548296
        %v2095 = vmul.f32 %v2092, %v2040
        %v2096 = vmul.f32 %v2093, %v2055
        %v2097 = vmul.f32 %v2094, %v2070
        %v2098 = vsub.f32 0.0, %v2017
        %v2099 = vsub.f32 0.0, %v2018
        %v2100 = vsub.f32 0.0, %v2019
        %v2101 = vmul.f32 %v2098, %v2017
        %v2102 = vmul.f32 %v2099, %v2018
        %v2103 = vmul.f32 %v2100, %v2019
        %v2104 = vmul.f32 %v2101, 1.442695
        %v2105 = vpow.pop %v2104
        %v2106 = vmul.f32 %v2102, 1.442695
        %v2107 = vpow.pop %v2106
        %v2108 = vmul.f32 %v2103, 1.442695
        %v2109 = vpow.pop %v2108
        %v2110 = vmul.f32 %v2095, %v2105
        %v2111 = vmul.f32 %v2096, %v2107
        %v2112 = vmul.f32 %v2097, %v2109
        %v2113 = vsub.f32 1.0, %v2110
        %v2114 = vsub.f32 1.0, %v2111
        %v2115 = vsub.f32 1.0, %v2112
        %v2116 = vmul.f32 %v2014, %v2113
        %v2117 = vmul.f32 %v2015, %v2114
        %v2118 = vmul.f32 %v2016, %v2115
        %v2119 = vadd.f32 %v2116, 1.0
        %v2120 = vadd.f32 %v2117, 1.0
        %v2121 = vadd.f32 %v2118, 1.0
        %v2122 = vmul.f32 %v2005, %v2119
        %v2123 = vmul.f32 %v2006, %v2120
        %v2124 = vmul.f32 %v2007, %v2121
        %v2125 = vld [vmem:[#allocation15] sm:$0xff]
        %v2126 = vld [vmem:[#allocation15 + $0x8] sm:$0xff]
        %v2127 = vld [vmem:[#allocation15 + $0x10] sm:$0xff]
        %v2128 = vld [vmem:[#allocation15 + $0x18] sm:$0xff]
        %v2129 = vld [vmem:[#allocation15 + $0x20] sm:$0xff]
        %v2130 = vld [vmem:[#allocation15 + $0x28] sm:$0xff]
        %v2131 = vld [vmem:[#allocation15 + $0x30] sm:$0xff]
        %v2132 = vld [vmem:[#allocation15 + $0x38] sm:$0xff]
        %v2133 = vld [vmem:[#allocation15 + $0x40] sm:$0xff]
        %v2134 = vld [vmem:[#allocation15 + $0x48] sm:$0xff]
        %v2135 = vld [vmem:[#allocation15 + $0x50] sm:$0xff]
        %v2136 = vld [vmem:[#allocation15 + $0x58] sm:$0xff]
        %v2137 = vld [vmem:[#allocation15 + $0x60] sm:$0xff]
        %v2138 = vld [vmem:[#allocation15 + $0x68] sm:$0xff]
        %v2139 = vld [vmem:[#allocation15 + $0x70] sm:$0xff]
        %v2140 = vld [vmem:[#allocation15 + $0x78] sm:$0xff]
        %v2141 = vld [vmem:[%s31] sm:$0x1]
        %v2143 = vperm.slane %v2141, 0
        %2145 = vmatpush.msra.mxu0 %v2140
        %2146 = vmatpush.msra.mxu0 %v2139
        %2147 = vmatpush.msra.mxu0 %v2138
        %2148 = vmatpush.msra.mxu0 %v2137
        %2149 = vmatpush.msra.mxu0 %v2136
        %2150 = vmatpush.msra.mxu0 %v2135
        %2151 = vmatpush.msra.mxu0 %v2134
        %2152 = vmatpush.msra.mxu0 %v2133
        %2153 = vmatpush.msra.mxu0 %v2132
        %2154 = vmatpush.msra.mxu0 %v2131
        %2155 = vmatpush.msra.mxu0 %v2130
        %2156 = vmatpush.msra.mxu0 %v2129
        %2157 = vmatpush.msra.mxu0 %v2128
        %2158 = vmatpush.msra.mxu0 %v2127
        %2159 = vmatpush.msra.mxu0 %v2126
        %2160 = vmatpush.msra.mxu0 %v2125
        %2161 = vmatmul.f32.gmra.mxu0 %v2122
        %v2162 = vpop.f32.mrf.mxu0
        %v2163 = vadd.f32 %v2143, %v2162
        %2164 = vmatmul.f32.gmra.mxu0 %v2123
        %v2165 = vpop.f32.mrf.mxu0
        %v2166 = vadd.f32 %v2143, %v2165
        %2167 = vmatmul.f32.gmra.mxu0 %v2124
        %v2168 = vpop.f32.mrf.mxu0
        %v2169 = vadd.f32 %v2143, %v2168
        %2170 = vdwg.mxu0
        %v2171 = vld [vmem:[%s33] sm:$0x1]
        %v2173 = vperm.slane %v2171, 0
        %v2175 = vmul.f32 %v2173, %v2163
        %v2176 = vmul.f32 %v2173, %v2166
        %v2177 = vmul.f32 %v2173, %v2169
        %v2178 = vadd.f32 %v1834, %v2175
        %v2179 = vadd.f32 %v1835, %v2176
        %v2180 = vadd.f32 %v1836, %v2177
        %2181 = vst.msk [vmem:[#allocation3 + $0x3] sm:$0xff] %vm1336, %v2178
        %2182 = vst.msk [vmem:[#allocation3 + $0xb] sm:$0xff] %vm1336, %v2179
        %2183 = vst.msk [vmem:[#allocation3 + $0x13] sm:$0x1] %vm1709, %v2180
        %v2184 = vld [vmem:[%s37] sm:$0x1]
        %v2186 = vperm.slane %v2184, 0
        %v2188 = vadd.f32 %v2186, 0.0
        %v2189 = vld [vmem:[#allocation3] sm:$0xff]
        %v2190 = vld [vmem:[#allocation3 + $0x8] sm:$0xff]
        %v2191 = vld [vmem:[#allocation3 + $0x10] sm:$0x1]
        %v2192 = vld [vmem:[%s35] sm:$0x1]
        %v2193 = vperm.slane %v2192, 0
        %v2194 = vmul.f32 %v2189, %v2193
        %v2195 = vmul.f32 %v2190, %v2193
        %v2196 = vmul.f32 %v2191, %v2193
        %v2197 = vadd.f32 %v2188, %v2194
        %v2198 = vadd.f32 %v2188, %v2195
        %v2199 = vadd.f32 %v2188, %v2196
        %v2200 = vld [vmem:[#allocation3 + $0x1] sm:$0xff]
        %v2201 = vld [vmem:[#allocation3 + $0x9] sm:$0xff]
        %v2202 = vld [vmem:[#allocation3 + $0x11] sm:$0x1]
        %v2203 = vld [vmem:[%s35 + $0x1] sm:$0x1]
        %v2204 = vperm.slane %v2203, 0
        %v2205 = vmul.f32 %v2200, %v2204
        %v2206 = vmul.f32 %v2201, %v2204
        %v2207 = vmul.f32 %v2202, %v2204
        %v2208 = vadd.f32 %v2197, %v2205
        %v2209 = vadd.f32 %v2198, %v2206
        %v2210 = vadd.f32 %v2199, %v2207
        %v2211 = vld [vmem:[#allocation3 + $0x2] sm:$0xff]
        %v2212 = vld [vmem:[#allocation3 + $0xa] sm:$0xff]
        %v2213 = vld [vmem:[#allocation3 + $0x12] sm:$0x1]
        %v2214 = vld [vmem:[%s35 + $0x2] sm:$0x1]
        %v2215 = vperm.slane %v2214, 0
        %v2216 = vmul.f32 %v2211, %v2215
        %v2217 = vmul.f32 %v2212, %v2215
        %v2218 = vmul.f32 %v2213, %v2215
        %v2219 = vadd.f32 %v2208, %v2216
        %v2220 = vadd.f32 %v2209, %v2217
        %v2221 = vadd.f32 %v2210, %v2218
        %v2222 = vld [vmem:[#allocation3 + $0x3] sm:$0xff]
        %v2223 = vld [vmem:[#allocation3 + $0xb] sm:$0xff]
        %v2224 = vld [vmem:[#allocation3 + $0x13] sm:$0x1]
        %v2225 = vld [vmem:[%s35 + $0x3] sm:$0x1]
        %v2226 = vperm.slane %v2225, 0
        %v2227 = vmul.f32 %v2222, %v2226
        %v2228 = vmul.f32 %v2223, %v2226
        %v2229 = vmul.f32 %v2224, %v2226
        %v2230 = vadd.f32 %v2219, %v2227
        %v2231 = vadd.f32 %v2220, %v2228
        %v2232 = vadd.f32 %v2221, %v2229
        %v2233 = vld [vmem:[#allocation3 + $0x4] sm:$0xff]
        %v2234 = vld [vmem:[#allocation3 + $0xc] sm:$0xff]
        %v2235 = vld [vmem:[#allocation3 + $0x14] sm:$0x1]
        %v2236 = vld [vmem:[%s35 + $0x4] sm:$0x1]
        %v2237 = vperm.slane %v2236, 0
        %v2238 = vmul.f32 %v2233, %v2237
        %v2239 = vmul.f32 %v2234, %v2237
        %v2240 = vmul.f32 %v2235, %v2237
        %v2241 = vadd.f32 %v2230, %v2238
        %v2242 = vadd.f32 %v2231, %v2239
        %v2243 = vadd.f32 %v2232, %v2240
        %v2244 = vld [vmem:[#allocation3 + $0x5] sm:$0xff]
        %v2245 = vld [vmem:[#allocation3 + $0xd] sm:$0xff]
        %v2246 = vld [vmem:[#allocation3 + $0x15] sm:$0x1]
        %v2247 = vld [vmem:[%s35 + $0x5] sm:$0x1]
        %v2248 = vperm.slane %v2247, 0
        %v2249 = vmul.f32 %v2244, %v2248
        %v2250 = vmul.f32 %v2245, %v2248
        %v2251 = vmul.f32 %v2246, %v2248
        %v2252 = vadd.f32 %v2241, %v2249
        %v2253 = vadd.f32 %v2242, %v2250
        %v2254 = vadd.f32 %v2243, %v2251
        %v2255 = vld [vmem:[#allocation3 + $0x6] sm:$0xff]
        %v2256 = vld [vmem:[#allocation3 + $0xe] sm:$0xff]
        %v2257 = vld [vmem:[#allocation3 + $0x16] sm:$0x1]
        %v2258 = vld [vmem:[%s35 + $0x6] sm:$0x1]
        %v2259 = vperm.slane %v2258, 0
        %v2260 = vmul.f32 %v2255, %v2259
        %v2261 = vmul.f32 %v2256, %v2259
        %v2262 = vmul.f32 %v2257, %v2259
        %v2263 = vadd.f32 %v2252, %v2260
        %v2264 = vadd.f32 %v2253, %v2261
        %v2265 = vadd.f32 %v2254, %v2262
        %v2266 = vld [vmem:[%s39] sm:$0x1]
        %v2267 = vld [vmem:[%s41] sm:$0x1]
        %v2268 = vsel %vm1336, %v2263, 0.0
        %2269 = vadd.xlane.f32.xlu0 %v2268
        %v2270 = vpop.xlane.xlu0 %2269
        %v2271 = vsel %vm1336, %v2264, 0.0
        %2272 = vadd.xlane.f32.xlu0 %v2271
        %v2273 = vpop.xlane.xlu0 %2272
        %v2274 = vsel %vm1709, %v2265, 0.0
        %2275 = vadd.xlane.f32.xlu0 %v2274
        %v2276 = vpop.xlane.xlu0 %2275
        %v2277 = vmul.f32 %v2270, %v1719
        %v2278 = vmul.f32 %v2273, %v1719
        %v2279 = vmul.f32 %v2276, %v1719
        %v2280 = vsub.f32 %v2263, %v2277
        %v2281 = vsub.f32 %v2264, %v2278
        %v2282 = vsub.f32 %v2265, %v2279
        %v2283 = vmul.f32 %v2280, %v2280
        %v2284 = vmul.f32 %v2281, %v2281
        %v2285 = vmul.f32 %v2282, %v2282
        %v2286 = vsel %vm1336, %v2283, 0.0
        %2287 = vadd.xlane.f32.xlu0 %v2286
        %v2288 = vpop.xlane.xlu0 %2287
        %v2289 = vsel %vm1336, %v2284, 0.0
        %2290 = vadd.xlane.f32.xlu0 %v2289
        %v2291 = vpop.xlane.xlu0 %2290
        %v2292 = vsel %vm1709, %v2285, 0.0
        %2293 = vadd.xlane.f32.xlu0 %v2292
        %v2294 = vpop.xlane.xlu0 %2293
        %v2295 = vmul.f32 %v2288, %v1719
        %v2296 = vmul.f32 %v2291, %v1719
        %v2297 = vmul.f32 %v2294, %v1719
        %v2298 = vadd.f32 %v2295, 1e-06
        %v2299 = vadd.f32 %v2296, 1e-06
        %v2300 = vadd.f32 %v2297, 1e-06
        %v2301 = vrsqrt.pop %v2298
        %v2302 = vmul.f32 %v2301, %v2298
        %v2303 = vmul.f32 %v2302, %v2301
        %v2304 = vmul.f32 0.5, %v2303
        %v2305 = vsub.f32 1.5, %v2304
        %v2306 = vmul.f32 %v2301, %v2305
        %vm2307 = vweird.f32 %v2298
        %vm2308 = vweird.f32 %v2301
        %vm2309 = vmor %vm2307, %vm2308
        %v2310 = vsel %vm2309, %v2301, %v2306
        %v2311 = vrsqrt.pop %v2299
        %v2312 = vmul.f32 %v2311, %v2299
        %v2313 = vmul.f32 %v2312, %v2311
        %v2314 = vmul.f32 0.5, %v2313
        %v2315 = vsub.f32 1.5, %v2314
        %v2316 = vmul.f32 %v2311, %v2315
        %vm2317 = vweird.f32 %v2299
        %vm2318 = vweird.f32 %v2311
        %vm2319 = vmor %vm2317, %vm2318
        %v2320 = vsel %vm2319, %v2311, %v2316
        %v2321 = vrsqrt.pop %v2300
        %v2322 = vmul.f32 %v2321, %v2300
        %v2323 = vmul.f32 %v2322, %v2321
        %v2324 = vmul.f32 0.5, %v2323
        %v2325 = vsub.f32 1.5, %v2324
        %v2326 = vmul.f32 %v2321, %v2325
        %vm2327 = vweird.f32 %v2300
        %vm2328 = vweird.f32 %v2321
        %vm2329 = vmor %vm2327, %vm2328
        %v2330 = vsel %vm2329, %v2321, %v2326
        %v2331 = vmul.f32 %v2280, %v2310
        %v2332 = vmul.f32 %v2281, %v2320
        %v2333 = vmul.f32 %v2282, %v2330
        %v2335 = vperm.slane %v2266, 0
        %v2337 = vmul.f32 %v2331, %v2335
        %v2338 = vmul.f32 %v2332, %v2335
        %v2339 = vmul.f32 %v2333, %v2335
        %v2341 = vperm.slane %v2267, 0
        %v2343 = vadd.f32 %v2337, %v2341
        %v2344 = vadd.f32 %v2338, %v2341
        %v2345 = vadd.f32 %v2339, %v2341
        %v2346 = vld [vmem:[#allocation16] sm:$0xff]
        %v2347 = vld [vmem:[#allocation16 + $0x8] sm:$0xff]
        %v2348 = vld [vmem:[#allocation16 + $0x10] sm:$0xff]
        %v2349 = vld [vmem:[#allocation16 + $0x18] sm:$0xff]
        %v2350 = vld [vmem:[#allocation16 + $0x20] sm:$0xff]
        %v2351 = vld [vmem:[#allocation16 + $0x28] sm:$0xff]
        %v2352 = vld [vmem:[#allocation16 + $0x30] sm:$0xff]
        %v2353 = vld [vmem:[#allocation16 + $0x38] sm:$0xff]
        %v2354 = vld [vmem:[%s45] sm:$0x1]
        %v2356 = vperm.slane %v2354, 0
        %v2359 = vsel %vm1336, %v2343, 0
        %v2362 = vsel %vm1336, %v2344, 0
        %v2365 = vsel %vm1336, %v2345, 0
        %2367 = vmatpush.msra.mxu0 0.0
        %2368 = vmatpush.msra.mxu0 0.0
        %2369 = vmatpush.msra.mxu0 0.0
        %2370 = vmatpush.msra.mxu0 0.0
        %2371 = vmatpush.msra.mxu0 0.0
        %2372 = vmatpush.msra.mxu0 0.0
        %2373 = vmatpush.msra.mxu0 0.0
        %2374 = vmatpush.msra.mxu0 0.0
        %2375 = vmatpush.msra.mxu0 %v2353
        %2376 = vmatpush.msra.mxu0 %v2352
        %2377 = vmatpush.msra.mxu0 %v2351
        %2378 = vmatpush.msra.mxu0 %v2350
        %2379 = vmatpush.msra.mxu0 %v2349
        %2380 = vmatpush.msra.mxu0 %v2348
        %2381 = vmatpush.msra.mxu0 %v2347
        %2382 = vmatpush.msra.mxu0 %v2346
        %2383 = vmatmul.f32.gmra.mxu0 %v2359
        %v2384 = vpop.f32.mrf.mxu0
        %v2385 = vadd.f32 %v2356, %v2384
        %2386 = vmatmul.f32.gmra.mxu0 %v2362
        %v2387 = vpop.f32.mrf.mxu0
        %v2388 = vadd.f32 %v2356, %v2387
        %2389 = vmatmul.f32.gmra.mxu0 %v2365
        %v2390 = vpop.f32.mrf.mxu0
        %v2391 = vadd.f32 %v2356, %v2390
        %2392 = vdwg.mxu0
        %v2393 = vmul.f32 %v2385, 0.5
        %v2394 = vmul.f32 %v2388, 0.5
        %v2395 = vmul.f32 %v2391, 0.5
        %v2396 = vmul.f32 %v2385, 0.70710677
        %v2397 = vmul.f32 %v2388, 0.70710677
        %v2398 = vmul.f32 %v2391, 0.70710677
        %vm2399 = vcmp.lt.f32.partialorder %v2396, 0.0
        %vm2400 = vcmp.lt.f32.partialorder %v2397, 0.0
        %vm2401 = vcmp.lt.f32.partialorder %v2398, 0.0
        %v2402 = vsel %vm2399, -1.0, 1.0
        %v2403 = vsel %vm2400, -1.0, 1.0
        %v2404 = vsel %vm2401, -1.0, 1.0
        %v2405 = vand.u32 2147483647, %v2396
        %v2406 = vand.u32 2147483647, %v2397
        %v2407 = vand.u32 2147483647, %v2398
        %v2408 = vmul.f32 %v2405, 0.3275911
        %v2409 = vmul.f32 %v2406, 0.3275911
        %v2410 = vmul.f32 %v2407, 0.3275911
        %v2411 = vadd.f32 %v2408, 1.0
        %v2412 = vadd.f32 %v2409, 1.0
        %v2413 = vadd.f32 %v2410, 1.0
        %v2414 = vrcp.pop %v2411
        %v2415 = vmul.f32 %v2411, %v2414
        %v2416 = vsub.f32 1.0, %v2415
        %v2417 = vmul.f32 %v2414, %v2416
        %v2418 = vadd.f32 %v2414, %v2417
        %vm2419 = vweird.f32 %v2411
        %vm2420 = vweird.f32 %v2414
        %vm2421 = vmor %vm2419, %vm2420
        %v2422 = vsel %vm2421, %v2414, %v2418
        %v2423 = vand.u32 2147483647, %v2411
        %vm2424 = vcmp.eq.f32.partialorder %v2423, 8.507059e+37
        %v2425 = vand.u32 %v2411, 2147483648
        %v2426 = vor.u32 1.1754944e-38, %v2425
        %v2427 = vsel %vm2424, %v2426, %v2422
        %v2428 = vmul.f32 1.0, %v2427
        %v2429 = vrcp.pop %v2412
        %v2430 = vmul.f32 %v2412, %v2429
        %v2431 = vsub.f32 1.0, %v2430
        %v2432 = vmul.f32 %v2429, %v2431
        %v2433 = vadd.f32 %v2429, %v2432
        %vm2434 = vweird.f32 %v2412
        %vm2435 = vweird.f32 %v2429
        %vm2436 = vmor %vm2434, %vm2435
        %v2437 = vsel %vm2436, %v2429, %v2433
        %v2438 = vand.u32 2147483647, %v2412
        %vm2439 = vcmp.eq.f32.partialorder %v2438, 8.507059e+37
        %v2440 = vand.u32 %v2412, 2147483648
        %v2441 = vor.u32 1.1754944e-38, %v2440
        %v2442 = vsel %vm2439, %v2441, %v2437
        %v2443 = vmul.f32 1.0, %v2442
        %v2444 = vrcp.pop %v2413
        %v2445 = vmul.f32 %v2413, %v2444
        %v2446 = vsub.f32 1.0, %v2445
        %v2447 = vmul.f32 %v2444, %v2446
        %v2448 = vadd.f32 %v2444, %v2447
        %vm2449 = vweird.f32 %v2413
        %vm2450 = vweird.f32 %v2444
        %vm2451 = vmor %vm2449, %vm2450
        %v2452 = vsel %vm2451, %v2444, %v2448
        %v2453 = vand.u32 2147483647, %v2413
        %vm2454 = vcmp.eq.f32.partialorder %v2453, 8.507059e+37
        %v2455 = vand.u32 %v2413, 2147483648
        %v2456 = vor.u32 1.1754944e-38, %v2455
        %v2457 = vsel %vm2454, %v2456, %v2452
        %v2458 = vmul.f32 1.0, %v2457
        %v2459 = vmul.f32 %v2428, 1.0614054
        %v2460 = vmul.f32 %v2443, 1.0614054
        %v2461 = vmul.f32 %v2458, 1.0614054
        %v2462 = vadd.f32 %v2459, -1.4531521
        %v2463 = vadd.f32 %v2460, -1.4531521
        %v2464 = vadd.f32 %v2461, -1.4531521
        %v2465 = vmul.f32 %v2462, %v2428
        %v2466 = vmul.f32 %v2463, %v2443
        %v2467 = vmul.f32 %v2464, %v2458
        %v2468 = vadd.f32 %v2465, 1.4214138
        %v2469 = vadd.f32 %v2466, 1.4214138
        %v2470 = vadd.f32 %v2467, 1.4214138
        %v2471 = vmul.f32 %v2468, %v2428
        %v2472 = vmul.f32 %v2469, %v2443
        %v2473 = vmul.f32 %v2470, %v2458
        %v2474 = vadd.f32 %v2471, -0.28449672
        %v2475 = vadd.f32 %v2472, -0.28449672
        %v2476 = vadd.f32 %v2473, -0.28449672
        %v2477 = vmul.f32 %v2474, %v2428
        %v2478 = vmul.f32 %v2475, %v2443
        %v2479 = vmul.f32 %v2476, %v2458
        %v2480 = vadd.f32 %v2477, 0.2548296
        %v2481 = vadd.f32 %v2478, 0.2548296
        %v2482 = vadd.f32 %v2479, 0.2548296
        %v2483 = vmul.f32 %v2480, %v2428
        %v2484 = vmul.f32 %v2481, %v2443
        %v2485 = vmul.f32 %v2482, %v2458
        %v2486 = vsub.f32 0.0, %v2405
        %v2487 = vsub.f32 0.0, %v2406
        %v2488 = vsub.f32 0.0, %v2407
        %v2489 = vmul.f32 %v2486, %v2405
        %v2490 = vmul.f32 %v2487, %v2406
        %v2491 = vmul.f32 %v2488, %v2407
        %v2492 = vmul.f32 %v2489, 1.442695
        %v2493 = vpow.pop %v2492
        %v2494 = vmul.f32 %v2490, 1.442695
        %v2495 = vpow.pop %v2494
        %v2496 = vmul.f32 %v2491, 1.442695
        %v2497 = vpow.pop %v2496
        %v2498 = vmul.f32 %v2483, %v2493
        %v2499 = vmul.f32 %v2484, %v2495
        %v2500 = vmul.f32 %v2485, %v2497
        %v2501 = vsub.f32 1.0, %v2498
        %v2502 = vsub.f32 1.0, %v2499
        %v2503 = vsub.f32 1.0, %v2500
        %v2504 = vmul.f32 %v2402, %v2501
        %v2505 = vmul.f32 %v2403, %v2502
        %v2506 = vmul.f32 %v2404, %v2503
        %v2507 = vadd.f32 %v2504, 1.0
        %v2508 = vadd.f32 %v2505, 1.0
        %v2509 = vadd.f32 %v2506, 1.0
        %v2510 = vmul.f32 %v2393, %v2507
        %v2511 = vmul.f32 %v2394, %v2508
        %v2512 = vmul.f32 %v2395, %v2509
        %v2513 = vld [vmem:[#allocation18] sm:$0xff]
        %v2514 = vld [vmem:[#allocation18 + $0x8] sm:$0xff]
        %v2515 = vld [vmem:[#allocation18 + $0x10] sm:$0xff]
        %v2516 = vld [vmem:[#allocation18 + $0x18] sm:$0xff]
        %v2517 = vld [vmem:[#allocation18 + $0x20] sm:$0xff]
        %v2518 = vld [vmem:[#allocation18 + $0x28] sm:$0xff]
        %v2519 = vld [vmem:[#allocation18 + $0x30] sm:$0xff]
        %v2520 = vld [vmem:[#allocation18 + $0x38] sm:$0xff]
        %v2521 = vld [vmem:[#allocation18 + $0x40] sm:$0xff]
        %v2522 = vld [vmem:[#allocation18 + $0x48] sm:$0xff]
        %v2523 = vld [vmem:[#allocation18 + $0x50] sm:$0xff]
        %v2524 = vld [vmem:[#allocation18 + $0x58] sm:$0xff]
        %v2525 = vld [vmem:[#allocation18 + $0x60] sm:$0xff]
        %v2526 = vld [vmem:[#allocation18 + $0x68] sm:$0xff]
        %v2527 = vld [vmem:[#allocation18 + $0x70] sm:$0xff]
        %v2528 = vld [vmem:[#allocation18 + $0x78] sm:$0xff]
        %v2529 = vld [vmem:[%s49] sm:$0x1]
        %v2531 = vperm.slane %v2529, 0
        %2533 = vmatpush.msra.mxu0 %v2528
        %2534 = vmatpush.msra.mxu0 %v2527
        %2535 = vmatpush.msra.mxu0 %v2526
        %2536 = vmatpush.msra.mxu0 %v2525
        %2537 = vmatpush.msra.mxu0 %v2524
        %2538 = vmatpush.msra.mxu0 %v2523
        %2539 = vmatpush.msra.mxu0 %v2522
        %2540 = vmatpush.msra.mxu0 %v2521
        %2541 = vmatpush.msra.mxu0 %v2520
        %2542 = vmatpush.msra.mxu0 %v2519
        %2543 = vmatpush.msra.mxu0 %v2518
        %2544 = vmatpush.msra.mxu0 %v2517
        %2545 = vmatpush.msra.mxu0 %v2516
        %2546 = vmatpush.msra.mxu0 %v2515
        %2547 = vmatpush.msra.mxu0 %v2514
        %2548 = vmatpush.msra.mxu0 %v2513
        %2549 = vmatmul.f32.gmra.mxu0 %v2510
        %v2550 = vpop.f32.mrf.mxu0
        %v2551 = vadd.f32 %v2531, %v2550
        %2552 = vmatmul.f32.gmra.mxu0 %v2511
        %v2553 = vpop.f32.mrf.mxu0
        %v2554 = vadd.f32 %v2531, %v2553
        %2555 = vmatmul.f32.gmra.mxu0 %v2512
        %v2556 = vpop.f32.mrf.mxu0
        %v2557 = vadd.f32 %v2531, %v2556
        %2558 = vdwg.mxu0
        %v2559 = vld [vmem:[%s51] sm:$0x1]
        %v2561 = vperm.slane %v2559, 0
        %v2563 = vmul.f32 %v2561, %v2551
        %v2564 = vmul.f32 %v2561, %v2554
        %v2565 = vmul.f32 %v2561, %v2557
        %v2566 = vadd.f32 %v2222, %v2563
        %v2567 = vadd.f32 %v2223, %v2564
        %v2568 = vadd.f32 %v2224, %v2565
        %2569 = vst.msk [vmem:[#allocation3 + $0x3] sm:$0xff] %vm1336, %v2566
        %2570 = vst.msk [vmem:[#allocation3 + $0xb] sm:$0xff] %vm1336, %v2567
        %2571 = vst.msk [vmem:[#allocation3 + $0x13] sm:$0x1] %vm1709, %v2568
        %v2572 = vld [vmem:[#allocation3 + $0x3] sm:$0xff]
        %v2573 = vld [vmem:[#allocation3 + $0xb] sm:$0xff]
        %v2574 = vld [vmem:[#allocation3 + $0x13] sm:$0x1]
        %v2575 = vld [vmem:[%s53] sm:$0x1]
        %v2576 = vld [vmem:[%s55] sm:$0x1]
        %v2577 = vsel %vm1336, %v2572, 0.0
        %2578 = vadd.xlane.f32.xlu0 %v2577
        %v2579 = vpop.xlane.xlu0 %2578
        %v2580 = vsel %vm1336, %v2573, 0.0
        %2581 = vadd.xlane.f32.xlu0 %v2580
        %v2582 = vpop.xlane.xlu0 %2581
        %v2583 = vsel %vm1709, %v2574, 0.0
        %2584 = vadd.xlane.f32.xlu0 %v2583
        %v2585 = vpop.xlane.xlu0 %2584
        %v2586 = vmul.f32 %v2579, %v1719
        %v2587 = vmul.f32 %v2582, %v1719
        %v2588 = vmul.f32 %v2585, %v1719
        %v2589 = vsub.f32 %v2572, %v2586
        %v2590 = vsub.f32 %v2573, %v2587
        %v2591 = vsub.f32 %v2574, %v2588
        %v2592 = vmul.f32 %v2589, %v2589
        %v2593 = vmul.f32 %v2590, %v2590
        %v2594 = vmul.f32 %v2591, %v2591
        %v2595 = vsel %vm1336, %v2592, 0.0
        %2596 = vadd.xlane.f32.xlu0 %v2595
        %v2597 = vpop.xlane.xlu0 %2596
        %v2598 = vsel %vm1336, %v2593, 0.0
        %2599 = vadd.xlane.f32.xlu0 %v2598
        %v2600 = vpop.xlane.xlu0 %2599
        %v2601 = vsel %vm1709, %v2594, 0.0
        %2602 = vadd.xlane.f32.xlu0 %v2601
        %v2603 = vpop.xlane.xlu0 %2602
        %v2604 = vmul.f32 %v2597, %v1719
        %v2605 = vmul.f32 %v2600, %v1719
        %v2606 = vmul.f32 %v2603, %v1719
        %v2607 = vadd.f32 %v2604, 1e-06
        %v2608 = vadd.f32 %v2605, 1e-06
        %v2609 = vadd.f32 %v2606, 1e-06
        %v2610 = vrsqrt.pop %v2607
        %v2611 = vmul.f32 %v2610, %v2607
        %v2612 = vmul.f32 %v2611, %v2610
        %v2613 = vmul.f32 0.5, %v2612
        %v2614 = vsub.f32 1.5, %v2613
        %v2615 = vmul.f32 %v2610, %v2614
        %vm2616 = vweird.f32 %v2607
        %vm2617 = vweird.f32 %v2610
        %vm2618 = vmor %vm2616, %vm2617
        %v2619 = vsel %vm2618, %v2610, %v2615
        %v2620 = vrsqrt.pop %v2608
        %v2621 = vmul.f32 %v2620, %v2608
        %v2622 = vmul.f32 %v2621, %v2620
        %v2623 = vmul.f32 0.5, %v2622
        %v2624 = vsub.f32 1.5, %v2623
        %v2625 = vmul.f32 %v2620, %v2624
        %vm2626 = vweird.f32 %v2608
        %vm2627 = vweird.f32 %v2620
        %vm2628 = vmor %vm2626, %vm2627
        %v2629 = vsel %vm2628, %v2620, %v2625
        %v2630 = vrsqrt.pop %v2609
        %v2631 = vmul.f32 %v2630, %v2609
        %v2632 = vmul.f32 %v2631, %v2630
        %v2633 = vmul.f32 0.5, %v2632
        %v2634 = vsub.f32 1.5, %v2633
        %v2635 = vmul.f32 %v2630, %v2634
        %vm2636 = vweird.f32 %v2609
        %vm2637 = vweird.f32 %v2630
        %vm2638 = vmor %vm2636, %vm2637
        %v2639 = vsel %vm2638, %v2630, %v2635
        %v2640 = vmul.f32 %v2589, %v2619
        %v2641 = vmul.f32 %v2590, %v2629
        %v2642 = vmul.f32 %v2591, %v2639
        %v2644 = vperm.slane %v2575, 0
        %v2646 = vmul.f32 %v2640, %v2644
        %v2647 = vmul.f32 %v2641, %v2644
        %v2648 = vmul.f32 %v2642, %v2644
        %v2650 = vperm.slane %v2576, 0
        %v2652 = vadd.f32 %v2646, %v2650
        %v2653 = vadd.f32 %v2647, %v2650
        %v2654 = vadd.f32 %v2648, %v2650
        %v2655 = vld [vmem:[#allocation19] sm:$0xff]
        %v2656 = vld [vmem:[#allocation19 + $0x8] sm:$0xff]
        %v2657 = vld [vmem:[#allocation19 + $0x10] sm:$0xff]
        %v2658 = vld [vmem:[#allocation19 + $0x18] sm:$0xff]
        %v2659 = vld [vmem:[#allocation19 + $0x20] sm:$0xff]
        %v2660 = vld [vmem:[#allocation19 + $0x28] sm:$0xff]
        %v2661 = vld [vmem:[#allocation19 + $0x30] sm:$0xff]
        %v2662 = vld [vmem:[#allocation19 + $0x38] sm:$0xff]
        %v2663 = vld [vmem:[%s59] sm:$0x1]
        %v2665 = vperm.slane %v2663, 0
        %v2668 = vsel %vm1336, %v2652, 0
        %v2671 = vsel %vm1336, %v2653, 0
        %v2674 = vsel %vm1336, %v2654, 0
        %2676 = vmatpush.msra.mxu0 0.0
        %2677 = vmatpush.msra.mxu0 0.0
        %2678 = vmatpush.msra.mxu0 0.0
        %2679 = vmatpush.msra.mxu0 0.0
        %2680 = vmatpush.msra.mxu0 0.0
        %2681 = vmatpush.msra.mxu0 0.0
        %2682 = vmatpush.msra.mxu0 0.0
        %2683 = vmatpush.msra.mxu0 0.0
        %2684 = vmatpush.msra.mxu0 %v2662
        %2685 = vmatpush.msra.mxu0 %v2661
        %2686 = vmatpush.msra.mxu0 %v2660
        %2687 = vmatpush.msra.mxu0 %v2659
        %2688 = vmatpush.msra.mxu0 %v2658
        %2689 = vmatpush.msra.mxu0 %v2657
        %2690 = vmatpush.msra.mxu0 %v2656
        %2691 = vmatpush.msra.mxu0 %v2655
        %2692 = vmatmul.f32.gmra.mxu0 %v2668
        %v2693 = vpop.f32.mrf.mxu0
        %v2694 = vadd.f32 %v2665, %v2693
        %2695 = vmatmul.f32.gmra.mxu0 %v2671
        %v2696 = vpop.f32.mrf.mxu0
        %v2697 = vadd.f32 %v2665, %v2696
        %2698 = vmatmul.f32.gmra.mxu0 %v2674
        %v2699 = vpop.f32.mrf.mxu0
        %v2700 = vadd.f32 %v2665, %v2699
        %2701 = vdwg.mxu0
        %v2702 = vld [vmem:[#allocation21] sm:$0xff]
        %v2703 = vld [vmem:[#allocation21 + $0x8] sm:$0xff]
        %v2704 = vld [vmem:[#allocation21 + $0x10] sm:$0xff]
        %v2705 = vld [vmem:[#allocation21 + $0x18] sm:$0xff]
        %v2706 = vld [vmem:[#allocation21 + $0x20] sm:$0xff]
        %v2707 = vld [vmem:[#allocation21 + $0x28] sm:$0xff]
        %v2708 = vld [vmem:[#allocation21 + $0x30] sm:$0xff]
        %v2709 = vld [vmem:[#allocation21 + $0x38] sm:$0xff]
        %v2710 = vld [vmem:[%s63] sm:$0x1]
        %v2712 = vperm.slane %v2710, 0
        %2714 = vmatpush.msra.mxu0 0.0
        %2715 = vmatpush.msra.mxu0 0.0
        %2716 = vmatpush.msra.mxu0 0.0
        %2717 = vmatpush.msra.mxu0 0.0
        %2718 = vmatpush.msra.mxu0 0.0
        %2719 = vmatpush.msra.mxu0 0.0
        %2720 = vmatpush.msra.mxu0 0.0
        %2721 = vmatpush.msra.mxu0 0.0
        %2722 = vmatpush.msra.mxu0 %v2709
        %2723 = vmatpush.msra.mxu0 %v2708
        %2724 = vmatpush.msra.mxu0 %v2707
        %2725 = vmatpush.msra.mxu0 %v2706
        %2726 = vmatpush.msra.mxu0 %v2705
        %2727 = vmatpush.msra.mxu0 %v2704
        %2728 = vmatpush.msra.mxu0 %v2703
        %2729 = vmatpush.msra.mxu0 %v2702
        %2730 = vmatmul.f32.gmra.mxu0 %v2668
        %v2731 = vpop.f32.mrf.mxu0
        %v2732 = vadd.f32 %v2712, %v2731
        %2733 = vmatmul.f32.gmra.mxu0 %v2671
        %v2734 = vpop.f32.mrf.mxu0
        %v2735 = vadd.f32 %v2712, %v2734
        %2736 = vmatmul.f32.gmra.mxu0 %v2674
        %v2737 = vpop.f32.mrf.mxu0
        %v2738 = vadd.f32 %v2712, %v2737
        %2739 = vdwg.mxu0
        %v2740 = vmul.f32 %v2694, 1.442695
        %v2741 = vpow.pop %v2740
        %v2742 = vmul.f32 %v2697, 1.442695
        %v2743 = vpow.pop %v2742
        %v2744 = vmul.f32 %v2700, 1.442695
        %v2745 = vpow.pop %v2744
        %v2746 = vmin.f32 %v2741, 100.0
        %v2747 = vmin.f32 %v2743, 100.0
        %v2748 = vmin.f32 %v2745, 100.0
        %v2749 = vand.u32 2147483647, %v2732
        %vm2750 = vcmp.le.f32.partialorder %v2749, 0.7853982
        %vm2751 = vcmp.lt.s32.totalorder %v2732, 0
        %v2752 = vand.u32 %v2732, 2139095040
        %v2753 = vshrl.u32 %v2752, 23
        %v2754 = vsub.s32 %v2753, 127
        %v2755 = vand.u32 2147483647, %v2732
        %v2756 = vand.u32 %v2755, 8388607
        %v2757 = vor.u32 %v2756, 8388608
        %v2758 = vsub.s32 0, %v2757
        %v2759 = vadd.s32 %v2754, 1
        %vm2760 = vcmp.gt.s32.totalorder %v2759, 0
        %v2761 = vsel %vm2760, %v2759, 0
        %v2762 = vshrl.u32 %v2761, 5
        %v2763 = vand.u32 %v2761, 31
        %v2764 = vsub.s32 32, %v2763
        %v2765 = vshrl.u32 683565275, %v2764
        %v2766 = vshll.u32 683565275, %v2763
        %v2767 = vshrl.u32 2475754826, %v2764
        %v2768 = vor.u32 %v2766, %v2767
        %v2769 = vshll.u32 2475754826, %v2763
        %v2770 = vshrl.u32 2131351028, %v2764
        %v2771 = vor.u32 %v2769, %v2770
        %v2772 = vshll.u32 2131351028, %v2763
        %v2773 = vshrl.u32 2102212464, %v2764
        %v2774 = vor.u32 %v2772, %v2773
        %v2775 = vshll.u32 2102212464, %v2763
        %v2776 = vshrl.u32 920167782, %v2764
        %v2777 = vor.u32 %v2775, %v2776
        %v2778 = vshll.u32 920167782, %v2763
        %v2779 = vshrl.u32 1326507024, %v2764
        %v2780 = vor.u32 %v2778, %v2779
        %vm2781 = vcmp.lt.s32.totalorder %v2762, 1
        %vm2782 = vcmp.lt.s32.totalorder %v2762, 2
        %vm2783 = vcmp.lt.s32.totalorder %v2762, 3
        %vm2784 = vcmp.lt.s32.totalorder %v2762, 4
        %v2785 = vsel %vm2781, %v2765, %v2768
        %v2786 = vsel %vm2784, %v2774, 2102212464
        %v2787 = vsel %vm2783, %v2771, %v2786
        %v2788 = vsel %vm2782, %v2785, %v2787
        %v2789 = vsel %vm2781, %v2768, %v2771
        %v2790 = vsel %vm2784, %v2777, 920167782
        %v2791 = vsel %vm2783, %v2774, %v2790
        %v2792 = vsel %vm2782, %v2789, %v2791
        %v2793 = vsel %vm2781, %v2771, %v2774
        %v2794 = vsel %vm2784, %v2780, 1326507024
        %v2795 = vsel %vm2783, %v2777, %v2794
        %v2796 = vsel %vm2782, %v2793, %v2795
        %v2797 = vshll.u32 %v2757, 8
        %v2798 = vand.u32 %v2797, 65535
        %v2799 = vshrl.u32 %v2797, 16
        %v2800 = vand.u32 %v2796, 65535
        %v2801 = vshrl.u32 %v2796, 16
        %v2802 = vmul.u32 %v2798, %v2800
        %v2803 = vmul.u32 %v2798, %v2801
        %v2804 = vmul.u32 %v2799, %v2800
        %v2805 = vmul.u32 %v2799, %v2801
        %v2806 = vshll.u32 %v2803, 16
        %v2807 = vshrl.u32 %v2803, 16
        %v2808 = vshll.u32 %v2804, 16
        %v2809 = vshrl.u32 %v2804, 16
        %vm2810 = vc.u32 %v2802, %v2806
        %v2811 = vsel %vm2810, 1, 0
        %v2812 = vadd.s32 %v2802, %v2806
        %v2813 = vadd.s32 %v2805, %v2811
        %vm2814 = vc.u32 %v2812, %v2808
        %v2815 = vsel %vm2814, 1, 0
        %v2816 = vadd.s32 %v2812, %v2808
        %v2817 = vadd.s32 %v2813, %v2815
        %v2818 = vadd.s32 %v2817, %v2807
        %v2819 = vadd.s32 %v2818, %v2809
        %v2820 = vand.u32 %v2797, 65535
        %v2821 = vshrl.u32 %v2797, 16
        %v2822 = vand.u32 %v2792, 65535
        %v2823 = vshrl.u32 %v2792, 16
        %v2824 = vmul.u32 %v2820, %v2822
        %v2825 = vmul.u32 %v2820, %v2823
        %v2826 = vmul.u32 %v2821, %v2822
        %v2827 = vmul.u32 %v2821, %v2823
        %v2828 = vshll.u32 %v2825, 16
        %v2829 = vshrl.u32 %v2825, 16
        %v2830 = vshll.u32 %v2826, 16
        %v2831 = vshrl.u32 %v2826, 16
        %vm2832 = vc.u32 %v2824, %v2828
        %v2833 = vsel %vm2832, 1, 0
        %v2834 = vadd.s32 %v2824, %v2828
        %v2835 = vadd.s32 %v2827, %v2833
        %vm2836 = vc.u32 %v2834, %v2830
        %v2837 = vsel %vm2836, 1, 0
        %v2838 = vadd.s32 %v2834, %v2830
        %v2839 = vadd.s32 %v2835, %v2837
        %v2840 = vadd.s32 %v2839, %v2829
        %v2841 = vadd.s32 %v2840, %v2831
        %v2842 = vmul.u32 %v2797, %v2788
        %v2843 = vadd.s32 %v2819, %v2838
        %vm2844 = vc.u32 %v2819, %v2838
        %v2845 = vadd.s32 %v2841, 1
        %v2846 = vsel %vm2844, %v2845, %v2841
        %v2847 = vadd.s32 %v2842, %v2846
        %v2848 = vadd.s32 %v2847, 536870912
        %v2849 = vshrl.u32 %v2848, 30
        %v2850 = vshll.u32 %v2849, 30
        %v2851 = vsub.s32 %v2847, %v2850
        %vm2852 = vcmp.lt.s32.totalorder %v2851, 0
        %v2853 = vsub.s32 0, %v2851
        %v2854 = vsel %vm2852, %v2853, %v2851
        %v2855 = vclz %v2854
        %v2856 = vsub.s32 %v2855, 2
        %vm2857 = vcmp.gt.s32.totalorder 0, %v2856
        %v2858 = vsel %vm2857, 0, %v2856
        %v2859 = vsub.s32 32, %v2858
        %v2860 = vshll.u32 %v2851, %v2858
        %v2861 = vshrl.u32 %v2843, %v2859
        %v2862 = vor.u32 %v2860, %v2861
        %v2863 = vsub.s32 4294967266, %v2858
        %v2864 = vadd.s32 %v2863, 127
        %v2865 = vshll.u32 %v2864, 23
        %v2866 = vor.u32 4788187, %v2865
        %v2867 = vand.u32 2147483647, %v2866
        %v2869 = vcvt.s32.f32 %v2862
        %v2870 = vmul.f32 %v2869, %v2867
        %v2871 = vxor.u32 %v2870, 2147483648
        %v2872 = vsel %vm2751, %v2871, %v2870
        %v2873 = vsub.s32 4, %v2849
        %v2874 = vsel %vm2751, %v2873, %v2849
        %v2875 = vsel %vm2750, %v2732, %v2872
        %v2876 = vsel %vm2750, 0, %v2874
        %v2877 = vmul.f32 %v2875, %v2875
        %v2878 = vmul.f32 %v2877, -0.001358992
        %v2879 = vadd.f32 %v2878, 0.041655596
        %v2880 = vmul.f32 %v2877, %v2879
        %v2881 = vadd.f32 %v2880, -0.4999988
        %v2882 = vmul.f32 %v2877, %v2881
        %v2883 = vadd.f32 1.0, %v2882
        %v2884 = vmul.f32 %v2875, %v2875
        %v2885 = vmul.f32 %v2884, -0.00019511016
        %v2886 = vadd.f32 %v2885, 0.008332121
        %v2887 = vmul.f32 %v2884, %v2886
        %v2888 = vadd.f32 %v2887, -0.16666654
        %v2889 = vmul.f32 %v2884, %v2888
        %v2890 = vadd.f32 %v2889, 1.0
        %v2891 = vmul.f32 %v2890, %v2875
        %vm2892 = vweird.f32 %v2732
        %v2893 = vand.u32 %v2876, 3
        %vm2894 = vcmp.lt.s32.totalorder %v2893, 2
        %vm2895 = vcmp.eq.s32.totalorder %v2893, 0
        %v2896 = vxor.u32 %v2891, 2147483648
        %v2897 = vsel %vm2895, %v2883, %v2896
        %vm2898 = vcmp.eq.s32.totalorder %v2893, 2
        %v2899 = vxor.u32 %v2883, 2147483648
        %v2900 = vsel %vm2898, %v2899, %v2891
        %v2901 = vsel %vm2894, %v2897, %v2900
        %v2902 = vsel %vm2892, nan, %v2901
        %v2903 = vand.u32 2147483647, %v2735
        %vm2904 = vcmp.le.f32.partialorder %v2903, 0.7853982
        %vm2905 = vcmp.lt.s32.totalorder %v2735, 0
        %v2906 = vand.u32 %v2735, 2139095040
        %v2907 = vshrl.u32 %v2906, 23
        %v2908 = vsub.s32 %v2907, 127
        %v2909 = vand.u32 2147483647, %v2735
        %v2910 = vand.u32 %v2909, 8388607
        %v2911 = vor.u32 %v2910, 8388608
        %v2912 = vsub.s32 0, %v2911
        %v2913 = vadd.s32 %v2908, 1
        %vm2914 = vcmp.gt.s32.totalorder %v2913, 0
        %v2915 = vsel %vm2914, %v2913, 0
        %v2916 = vshrl.u32 %v2915, 5
        %v2917 = vand.u32 %v2915, 31
        %v2918 = vsub.s32 32, %v2917
        %v2919 = vshrl.u32 683565275, %v2918
        %v2920 = vshll.u32 683565275, %v2917
        %v2921 = vshrl.u32 2475754826, %v2918
        %v2922 = vor.u32 %v2920, %v2921
        %v2923 = vshll.u32 2475754826, %v2917
        %v2924 = vshrl.u32 2131351028, %v2918
        %v2925 = vor.u32 %v2923, %v2924
        %v2926 = vshll.u32 2131351028, %v2917
        %v2927 = vshrl.u32 2102212464, %v2918
        %v2928 = vor.u32 %v2926, %v2927
        %v2929 = vshll.u32 2102212464, %v2917
        %v2930 = vshrl.u32 920167782, %v2918
        %v2931 = vor.u32 %v2929, %v2930
        %v2932 = vshll.u32 920167782, %v2917
        %v2933 = vshrl.u32 1326507024, %v2918
        %v2934 = vor.u32 %v2932, %v2933
        %vm2935 = vcmp.lt.s32.totalorder %v2916, 1
        %vm2936 = vcmp.lt.s32.totalorder %v2916, 2
        %vm2937 = vcmp.lt.s32.totalorder %v2916, 3
        %vm2938 = vcmp.lt.s32.totalorder %v2916, 4
        %v2939 = vsel %vm2935, %v2919, %v2922
        %v2940 = vsel %vm2938, %v2928, 2102212464
        %v2941 = vsel %vm2937, %v2925, %v2940
        %v2942 = vsel %vm2936, %v2939, %v2941
        %v2943 = vsel %vm2935, %v2922, %v2925
        %v2944 = vsel %vm2938, %v2931, 920167782
        %v2945 = vsel %vm2937, %v2928, %v2944
        %v2946 = vsel %vm2936, %v2943, %v2945
        %v2947 = vsel %vm2935, %v2925, %v2928
        %v2948 = vsel %vm2938, %v2934, 1326507024
        %v2949 = vsel %vm2937, %v2931, %v2948
        %v2950 = vsel %vm2936, %v2947, %v2949
        %v2951 = vshll.u32 %v2911, 8
        %v2952 = vand.u32 %v2951, 65535
        %v2953 = vshrl.u32 %v2951, 16
        %v2954 = vand.u32 %v2950, 65535
        %v2955 = vshrl.u32 %v2950, 16
        %v2956 = vmul.u32 %v2952, %v2954
        %v2957 = vmul.u32 %v2952, %v2955
        %v2958 = vmul.u32 %v2953, %v2954
        %v2959 = vmul.u32 %v2953, %v2955
        %v2960 = vshll.u32 %v2957, 16
        %v2961 = vshrl.u32 %v2957, 16
        %v2962 = vshll.u32 %v2958, 16
        %v2963 = vshrl.u32 %v2958, 16
        %vm2964 = vc.u32 %v2956, %v2960
        %v2965 = vsel %vm2964, 1, 0
        %v2966 = vadd.s32 %v2956, %v2960
        %v2967 = vadd.s32 %v2959, %v2965
        %vm2968 = vc.u32 %v2966, %v2962
        %v2969 = vsel %vm2968, 1, 0
        %v2970 = vadd.s32 %v2966, %v2962
        %v2971 = vadd.s32 %v2967, %v2969
        %v2972 = vadd.s32 %v2971, %v2961
        %v2973 = vadd.s32 %v2972, %v2963
        %v2974 = vand.u32 %v2951, 65535
        %v2975 = vshrl.u32 %v2951, 16
        %v2976 = vand.u32 %v2946, 65535
        %v2977 = vshrl.u32 %v2946, 16
        %v2978 = vmul.u32 %v2974, %v2976
        %v2979 = vmul.u32 %v2974, %v2977
        %v2980 = vmul.u32 %v2975, %v2976
        %v2981 = vmul.u32 %v2975, %v2977
        %v2982 = vshll.u32 %v2979, 16
        %v2983 = vshrl.u32 %v2979, 16
        %v2984 = vshll.u32 %v2980, 16
        %v2985 = vshrl.u32 %v2980, 16
        %vm2986 = vc.u32 %v2978, %v2982
        %v2987 = vsel %vm2986, 1, 0
        %v2988 = vadd.s32 %v2978, %v2982
        %v2989 = vadd.s32 %v2981, %v2987
        %vm2990 = vc.u32 %v2988, %v2984
        %v2991 = vsel %vm2990, 1, 0
        %v2992 = vadd.s32 %v2988, %v2984
        %v2993 = vadd.s32 %v2989, %v2991
        %v2994 = vadd.s32 %v2993, %v2983
        %v2995 = vadd.s32 %v2994, %v2985
        %v2996 = vmul.u32 %v2951, %v2942
        %v2997 = vadd.s32 %v2973, %v2992
        %vm2998 = vc.u32 %v2973, %v2992
        %v2999 = vadd.s32 %v2995, 1
        %v3000 = vsel %vm2998, %v2999, %v2995
        %v3001 = vadd.s32 %v2996, %v3000
        %v3002 = vadd.s32 %v3001, 536870912
        %v3003 = vshrl.u32 %v3002, 30
        %v3004 = vshll.u32 %v3003, 30
        %v3005 = vsub.s32 %v3001, %v3004
        %vm3006 = vcmp.lt.s32.totalorder %v3005, 0
        %v3007 = vsub.s32 0, %v3005
        %v3008 = vsel %vm3006, %v3007, %v3005
        %v3009 = vclz %v3008
        %v3010 = vsub.s32 %v3009, 2
        %vm3011 = vcmp.gt.s32.totalorder 0, %v3010
        %v3012 = vsel %vm3011, 0, %v3010
        %v3013 = vsub.s32 32, %v3012
        %v3014 = vshll.u32 %v3005, %v3012
        %v3015 = vshrl.u32 %v2997, %v3013
        %v3016 = vor.u32 %v3014, %v3015
        %v3017 = vsub.s32 4294967266, %v3012
        %v3018 = vadd.s32 %v3017, 127
        %v3019 = vshll.u32 %v3018, 23
        %v3020 = vor.u32 4788187, %v3019
        %v3021 = vand.u32 2147483647, %v3020
        %v3023 = vcvt.s32.f32 %v3016
        %v3024 = vmul.f32 %v3023, %v3021
        %v3025 = vxor.u32 %v3024, 2147483648
        %v3026 = vsel %vm2905, %v3025, %v3024
        %v3027 = vsub.s32 4, %v3003
        %v3028 = vsel %vm2905, %v3027, %v3003
        %v3029 = vsel %vm2904, %v2735, %v3026
        %v3030 = vsel %vm2904, 0, %v3028
        %v3031 = vmul.f32 %v3029, %v3029
        %v3032 = vmul.f32 %v3031, -0.001358992
        %v3033 = vadd.f32 %v3032, 0.041655596
        %v3034 = vmul.f32 %v3031, %v3033
        %v3035 = vadd.f32 %v3034, -0.4999988
        %v3036 = vmul.f32 %v3031, %v3035
        %v3037 = vadd.f32 1.0, %v3036
        %v3038 = vmul.f32 %v3029, %v3029
        %v3039 = vmul.f32 %v3038, -0.00019511016
        %v3040 = vadd.f32 %v3039, 0.008332121
        %v3041 = vmul.f32 %v3038, %v3040
        %v3042 = vadd.f32 %v3041, -0.16666654
        %v3043 = vmul.f32 %v3038, %v3042
        %v3044 = vadd.f32 %v3043, 1.0
        %v3045 = vmul.f32 %v3044, %v3029
        %vm3046 = vweird.f32 %v2735
        %v3047 = vand.u32 %v3030, 3
        %vm3048 = vcmp.lt.s32.totalorder %v3047, 2
        %vm3049 = vcmp.eq.s32.totalorder %v3047, 0
        %v3050 = vxor.u32 %v3045, 2147483648
        %v3051 = vsel %vm3049, %v3037, %v3050
        %vm3052 = vcmp.eq.s32.totalorder %v3047, 2
        %v3053 = vxor.u32 %v3037, 2147483648
        %v3054 = vsel %vm3052, %v3053, %v3045
        %v3055 = vsel %vm3048, %v3051, %v3054
        %v3056 = vsel %vm3046, nan, %v3055
        %v3057 = vand.u32 2147483647, %v2738
        %vm3058 = vcmp.le.f32.partialorder %v3057, 0.7853982
        %vm3059 = vcmp.lt.s32.totalorder %v2738, 0
        %v3060 = vand.u32 %v2738, 2139095040
        %v3061 = vshrl.u32 %v3060, 23
        %v3062 = vsub.s32 %v3061, 127
        %v3063 = vand.u32 2147483647, %v2738
        %v3064 = vand.u32 %v3063, 8388607
        %v3065 = vor.u32 %v3064, 8388608
        %v3066 = vsub.s32 0, %v3065
        %v3067 = vadd.s32 %v3062, 1
        %vm3068 = vcmp.gt.s32.totalorder %v3067, 0
        %v3069 = vsel %vm3068, %v3067, 0
        %v3070 = vshrl.u32 %v3069, 5
        %v3071 = vand.u32 %v3069, 31
        %v3072 = vsub.s32 32, %v3071
        %v3073 = vshrl.u32 683565275, %v3072
        %v3074 = vshll.u32 683565275, %v3071
        %v3075 = vshrl.u32 2475754826, %v3072
        %v3076 = vor.u32 %v3074, %v3075
        %v3077 = vshll.u32 2475754826, %v3071
        %v3078 = vshrl.u32 2131351028, %v3072
        %v3079 = vor.u32 %v3077, %v3078
        %v3080 = vshll.u32 2131351028, %v3071
        %v3081 = vshrl.u32 2102212464, %v3072
        %v3082 = vor.u32 %v3080, %v3081
        %v3083 = vshll.u32 2102212464, %v3071
        %v3084 = vshrl.u32 920167782, %v3072
        %v3085 = vor.u32 %v3083, %v3084
        %v3086 = vshll.u32 920167782, %v3071
        %v3087 = vshrl.u32 1326507024, %v3072
        %v3088 = vor.u32 %v3086, %v3087
        %vm3089 = vcmp.lt.s32.totalorder %v3070, 1
        %vm3090 = vcmp.lt.s32.totalorder %v3070, 2
        %vm3091 = vcmp.lt.s32.totalorder %v3070, 3
        %vm3092 = vcmp.lt.s32.totalorder %v3070, 4
        %v3093 = vsel %vm3089, %v3073, %v3076
        %v3094 = vsel %vm3092, %v3082, 2102212464
        %v3095 = vsel %vm3091, %v3079, %v3094
        %v3096 = vsel %vm3090, %v3093, %v3095
        %v3097 = vsel %vm3089, %v3076, %v3079
        %v3098 = vsel %vm3092, %v3085, 920167782
        %v3099 = vsel %vm3091, %v3082, %v3098
        %v3100 = vsel %vm3090, %v3097, %v3099
        %v3101 = vsel %vm3089, %v3079, %v3082
        %v3102 = vsel %vm3092, %v3088, 1326507024
        %v3103 = vsel %vm3091, %v3085, %v3102
        %v3104 = vsel %vm3090, %v3101, %v3103
        %v3105 = vshll.u32 %v3065, 8
        %v3106 = vand.u32 %v3105, 65535
        %v3107 = vshrl.u32 %v3105, 16
        %v3108 = vand.u32 %v3104, 65535
        %v3109 = vshrl.u32 %v3104, 16
        %v3110 = vmul.u32 %v3106, %v3108
        %v3111 = vmul.u32 %v3106, %v3109
        %v3112 = vmul.u32 %v3107, %v3108
        %v3113 = vmul.u32 %v3107, %v3109
        %v3114 = vshll.u32 %v3111, 16
        %v3115 = vshrl.u32 %v3111, 16
        %v3116 = vshll.u32 %v3112, 16
        %v3117 = vshrl.u32 %v3112, 16
        %vm3118 = vc.u32 %v3110, %v3114
        %v3119 = vsel %vm3118, 1, 0
        %v3120 = vadd.s32 %v3110, %v3114
        %v3121 = vadd.s32 %v3113, %v3119
        %vm3122 = vc.u32 %v3120, %v3116
        %v3123 = vsel %vm3122, 1, 0
        %v3124 = vadd.s32 %v3120, %v3116
        %v3125 = vadd.s32 %v3121, %v3123
        %v3126 = vadd.s32 %v3125, %v3115
        %v3127 = vadd.s32 %v3126, %v3117
        %v3128 = vand.u32 %v3105, 65535
        %v3129 = vshrl.u32 %v3105, 16
        %v3130 = vand.u32 %v3100, 65535
        %v3131 = vshrl.u32 %v3100, 16
        %v3132 = vmul.u32 %v3128, %v3130
        %v3133 = vmul.u32 %v3128, %v3131
        %v3134 = vmul.u32 %v3129, %v3130
        %v3135 = vmul.u32 %v3129, %v3131
        %v3136 = vshll.u32 %v3133, 16
        %v3137 = vshrl.u32 %v3133, 16
        %v3138 = vshll.u32 %v3134, 16
        %v3139 = vshrl.u32 %v3134, 16
        %vm3140 = vc.u32 %v3132, %v3136
        %v3141 = vsel %vm3140, 1, 0
        %v3142 = vadd.s32 %v3132, %v3136
        %v3143 = vadd.s32 %v3135, %v3141
        %vm3144 = vc.u32 %v3142, %v3138
        %v3145 = vsel %vm3144, 1, 0
        %v3146 = vadd.s32 %v3142, %v3138
        %v3147 = vadd.s32 %v3143, %v3145
        %v3148 = vadd.s32 %v3147, %v3137
        %v3149 = vadd.s32 %v3148, %v3139
        %v3150 = vmul.u32 %v3105, %v3096
        %v3151 = vadd.s32 %v3127, %v3146
        %vm3152 = vc.u32 %v3127, %v3146
        %v3153 = vadd.s32 %v3149, 1
        %v3154 = vsel %vm3152, %v3153, %v3149
        %v3155 = vadd.s32 %v3150, %v3154
        %v3156 = vadd.s32 %v3155, 536870912
        %v3157 = vshrl.u32 %v3156, 30
        %v3158 = vshll.u32 %v3157, 30
        %v3159 = vsub.s32 %v3155, %v3158
        %vm3160 = vcmp.lt.s32.totalorder %v3159, 0
        %v3161 = vsub.s32 0, %v3159
        %v3162 = vsel %vm3160, %v3161, %v3159
        %v3163 = vclz %v3162
        %v3164 = vsub.s32 %v3163, 2
        %vm3165 = vcmp.gt.s32.totalorder 0, %v3164
        %v3166 = vsel %vm3165, 0, %v3164
        %v3167 = vsub.s32 32, %v3166
        %v3168 = vshll.u32 %v3159, %v3166
        %v3169 = vshrl.u32 %v3151, %v3167
        %v3170 = vor.u32 %v3168, %v3169
        %v3171 = vsub.s32 4294967266, %v3166
        %v3172 = vadd.s32 %v3171, 127
        %v3173 = vshll.u32 %v3172, 23
        %v3174 = vor.u32 4788187, %v3173
        %v3175 = vand.u32 2147483647, %v3174
        %v3177 = vcvt.s32.f32 %v3170
        %v3178 = vmul.f32 %v3177, %v3175
        %v3179 = vxor.u32 %v3178, 2147483648
        %v3180 = vsel %vm3059, %v3179, %v3178
        %v3181 = vsub.s32 4, %v3157
        %v3182 = vsel %vm3059, %v3181, %v3157
        %v3183 = vsel %vm3058, %v2738, %v3180
        %v3184 = vsel %vm3058, 0, %v3182
        %v3185 = vmul.f32 %v3183, %v3183
        %v3186 = vmul.f32 %v3185, -0.001358992
        %v3187 = vadd.f32 %v3186, 0.041655596
        %v3188 = vmul.f32 %v3185, %v3187
        %v3189 = vadd.f32 %v3188, -0.4999988
        %v3190 = vmul.f32 %v3185, %v3189
        %v3191 = vadd.f32 1.0, %v3190
        %v3192 = vmul.f32 %v3183, %v3183
        %v3193 = vmul.f32 %v3192, -0.00019511016
        %v3194 = vadd.f32 %v3193, 0.008332121
        %v3195 = vmul.f32 %v3192, %v3194
        %v3196 = vadd.f32 %v3195, -0.16666654
        %v3197 = vmul.f32 %v3192, %v3196
        %v3198 = vadd.f32 %v3197, 1.0
        %v3199 = vmul.f32 %v3198, %v3183
        %vm3200 = vweird.f32 %v2738
        %v3201 = vand.u32 %v3184, 3
        %vm3202 = vcmp.lt.s32.totalorder %v3201, 2
        %vm3203 = vcmp.eq.s32.totalorder %v3201, 0
        %v3204 = vxor.u32 %v3199, 2147483648
        %v3205 = vsel %vm3203, %v3191, %v3204
        %vm3206 = vcmp.eq.s32.totalorder %v3201, 2
        %v3207 = vxor.u32 %v3191, 2147483648
        %v3208 = vsel %vm3206, %v3207, %v3199
        %v3209 = vsel %vm3202, %v3205, %v3208
        %v3210 = vsel %vm3200, nan, %v3209
        %v3211 = vmul.f32 %v2746, %v2902
        %v3212 = vmul.f32 %v2747, %v3056
        %v3213 = vmul.f32 %v2748, %v3210
        %v3214 = vand.u32 2147483647, %v2732
        %vm3215 = vcmp.le.f32.partialorder %v3214, 0.7853982
        %vm3216 = vcmp.lt.s32.totalorder %v2732, 0
        %v3217 = vand.u32 %v2732, 2139095040
        %v3218 = vshrl.u32 %v3217, 23
        %v3219 = vsub.s32 %v3218, 127
        %v3220 = vand.u32 2147483647, %v2732
        %v3221 = vand.u32 %v3220, 8388607
        %v3222 = vor.u32 %v3221, 8388608
        %v3223 = vsub.s32 0, %v3222
        %v3224 = vadd.s32 %v3219, 1
        %vm3225 = vcmp.gt.s32.totalorder %v3224, 0
        %v3226 = vsel %vm3225, %v3224, 0
        %v3227 = vshrl.u32 %v3226, 5
        %v3228 = vand.u32 %v3226, 31
        %v3229 = vsub.s32 32, %v3228
        %v3230 = vshrl.u32 683565275, %v3229
        %v3231 = vshll.u32 683565275, %v3228
        %v3232 = vshrl.u32 2475754826, %v3229
        %v3233 = vor.u32 %v3231, %v3232
        %v3234 = vshll.u32 2475754826, %v3228
        %v3235 = vshrl.u32 2131351028, %v3229
        %v3236 = vor.u32 %v3234, %v3235
        %v3237 = vshll.u32 2131351028, %v3228
        %v3238 = vshrl.u32 2102212464, %v3229
        %v3239 = vor.u32 %v3237, %v3238
        %v3240 = vshll.u32 2102212464, %v3228
        %v3241 = vshrl.u32 920167782, %v3229
        %v3242 = vor.u32 %v3240, %v3241
        %v3243 = vshll.u32 920167782, %v3228
        %v3244 = vshrl.u32 1326507024, %v3229
        %v3245 = vor.u32 %v3243, %v3244
        %vm3246 = vcmp.lt.s32.totalorder %v3227, 1
        %vm3247 = vcmp.lt.s32.totalorder %v3227, 2
        %vm3248 = vcmp.lt.s32.totalorder %v3227, 3
        %vm3249 = vcmp.lt.s32.totalorder %v3227, 4
        %v3250 = vsel %vm3246, %v3230, %v3233
        %v3251 = vsel %vm3249, %v3239, 2102212464
        %v3252 = vsel %vm3248, %v3236, %v3251
        %v3253 = vsel %vm3247, %v3250, %v3252
        %v3254 = vsel %vm3246, %v3233, %v3236
        %v3255 = vsel %vm3249, %v3242, 920167782
        %v3256 = vsel %vm3248, %v3239, %v3255
        %v3257 = vsel %vm3247, %v3254, %v3256
        %v3258 = vsel %vm3246, %v3236, %v3239
        %v3259 = vsel %vm3249, %v3245, 1326507024
        %v3260 = vsel %vm3248, %v3242, %v3259
        %v3261 = vsel %vm3247, %v3258, %v3260
        %v3262 = vshll.u32 %v3222, 8
        %v3263 = vand.u32 %v3262, 65535
        %v3264 = vshrl.u32 %v3262, 16
        %v3265 = vand.u32 %v3261, 65535
        %v3266 = vshrl.u32 %v3261, 16
        %v3267 = vmul.u32 %v3263, %v3265
        %v3268 = vmul.u32 %v3263, %v3266
        %v3269 = vmul.u32 %v3264, %v3265
        %v3270 = vmul.u32 %v3264, %v3266
        %v3271 = vshll.u32 %v3268, 16
        %v3272 = vshrl.u32 %v3268, 16
        %v3273 = vshll.u32 %v3269, 16
        %v3274 = vshrl.u32 %v3269, 16
        %vm3275 = vc.u32 %v3267, %v3271
        %v3276 = vsel %vm3275, 1, 0
        %v3277 = vadd.s32 %v3267, %v3271
        %v3278 = vadd.s32 %v3270, %v3276
        %vm3279 = vc.u32 %v3277, %v3273
        %v3280 = vsel %vm3279, 1, 0
        %v3281 = vadd.s32 %v3277, %v3273
        %v3282 = vadd.s32 %v3278, %v3280
        %v3283 = vadd.s32 %v3282, %v3272
        %v3284 = vadd.s32 %v3283, %v3274
        %v3285 = vand.u32 %v3262, 65535
        %v3286 = vshrl.u32 %v3262, 16
        %v3287 = vand.u32 %v3257, 65535
        %v3288 = vshrl.u32 %v3257, 16
        %v3289 = vmul.u32 %v3285, %v3287
        %v3290 = vmul.u32 %v3285, %v3288
        %v3291 = vmul.u32 %v3286, %v3287
        %v3292 = vmul.u32 %v3286, %v3288
        %v3293 = vshll.u32 %v3290, 16
        %v3294 = vshrl.u32 %v3290, 16
        %v3295 = vshll.u32 %v3291, 16
        %v3296 = vshrl.u32 %v3291, 16
        %vm3297 = vc.u32 %v3289, %v3293
        %v3298 = vsel %vm3297, 1, 0
        %v3299 = vadd.s32 %v3289, %v3293
        %v3300 = vadd.s32 %v3292, %v3298
        %vm3301 = vc.u32 %v3299, %v3295
        %v3302 = vsel %vm3301, 1, 0
        %v3303 = vadd.s32 %v3299, %v3295
        %v3304 = vadd.s32 %v3300, %v3302
        %v3305 = vadd.s32 %v3304, %v3294
        %v3306 = vadd.s32 %v3305, %v3296
        %v3307 = vmul.u32 %v3262, %v3253
        %v3308 = vadd.s32 %v3284, %v3303
        %vm3309 = vc.u32 %v3284, %v3303
        %v3310 = vadd.s32 %v3306, 1
        %v3311 = vsel %vm3309, %v3310, %v3306
        %v3312 = vadd.s32 %v3307, %v3311
        %v3313 = vadd.s32 %v3312, 536870912
        %v3314 = vshrl.u32 %v3313, 30
        %v3315 = vshll.u32 %v3314, 30
        %v3316 = vsub.s32 %v3312, %v3315
        %vm3317 = vcmp.lt.s32.totalorder %v3316, 0
        %v3318 = vsub.s32 0, %v3316
        %v3319 = vsel %vm3317, %v3318, %v3316
        %v3320 = vclz %v3319
        %v3321 = vsub.s32 %v3320, 2
        %vm3322 = vcmp.gt.s32.totalorder 0, %v3321
        %v3323 = vsel %vm3322, 0, %v3321
        %v3324 = vsub.s32 32, %v3323
        %v3325 = vshll.u32 %v3316, %v3323
        %v3326 = vshrl.u32 %v3308, %v3324
        %v3327 = vor.u32 %v3325, %v3326
        %v3328 = vsub.s32 4294967266, %v3323
        %v3329 = vadd.s32 %v3328, 127
        %v3330 = vshll.u32 %v3329, 23
        %v3331 = vor.u32 4788187, %v3330
        %v3332 = vand.u32 2147483647, %v3331
        %v3334 = vcvt.s32.f32 %v3327
        %v3335 = vmul.f32 %v3334, %v3332
        %v3336 = vxor.u32 %v3335, 2147483648
        %v3337 = vsel %vm3216, %v3336, %v3335
        %v3338 = vsub.s32 4, %v3314
        %v3339 = vsel %vm3216, %v3338, %v3314
        %v3340 = vsel %vm3215, %v2732, %v3337
        %v3341 = vsel %vm3215, 0, %v3339
        %v3342 = vmul.f32 %v3340, %v3340
        %v3343 = vmul.f32 %v3342, -0.001358992
        %v3344 = vadd.f32 %v3343, 0.041655596
        %v3345 = vmul.f32 %v3342, %v3344
        %v3346 = vadd.f32 %v3345, -0.4999988
        %v3347 = vmul.f32 %v3342, %v3346
        %v3348 = vadd.f32 1.0, %v3347
        %v3349 = vmul.f32 %v3340, %v3340
        %v3350 = vmul.f32 %v3349, -0.00019511016
        %v3351 = vadd.f32 %v3350, 0.008332121
        %v3352 = vmul.f32 %v3349, %v3351
        %v3353 = vadd.f32 %v3352, -0.16666654
        %v3354 = vmul.f32 %v3349, %v3353
        %v3355 = vadd.f32 %v3354, 1.0
        %v3356 = vmul.f32 %v3355, %v3340
        %vm3357 = vweird.f32 %v2732
        %v3358 = vadd.s32 %v3341, 3
        %v3359 = vand.u32 %v3358, 3
        %vm3360 = vcmp.lt.s32.totalorder %v3359, 2
        %vm3361 = vcmp.eq.s32.totalorder %v3359, 0
        %v3362 = vxor.u32 %v3356, 2147483648
        %v3363 = vsel %vm3361, %v3348, %v3362
        %vm3364 = vcmp.eq.s32.totalorder %v3359, 2
        %v3365 = vxor.u32 %v3348, 2147483648
        %v3366 = vsel %vm3364, %v3365, %v3356
        %v3367 = vsel %vm3360, %v3363, %v3366
        %v3368 = vsel %vm3357, nan, %v3367
        %v3369 = vand.u32 2147483647, %v2735
        %vm3370 = vcmp.le.f32.partialorder %v3369, 0.7853982
        %vm3371 = vcmp.lt.s32.totalorder %v2735, 0
        %v3372 = vand.u32 %v2735, 2139095040
        %v3373 = vshrl.u32 %v3372, 23
        %v3374 = vsub.s32 %v3373, 127
        %v3375 = vand.u32 2147483647, %v2735
        %v3376 = vand.u32 %v3375, 8388607
        %v3377 = vor.u32 %v3376, 8388608
        %v3378 = vsub.s32 0, %v3377
        %v3379 = vadd.s32 %v3374, 1
        %vm3380 = vcmp.gt.s32.totalorder %v3379, 0
        %v3381 = vsel %vm3380, %v3379, 0
        %v3382 = vshrl.u32 %v3381, 5
        %v3383 = vand.u32 %v3381, 31
        %v3384 = vsub.s32 32, %v3383
        %v3385 = vshrl.u32 683565275, %v3384
        %v3386 = vshll.u32 683565275, %v3383
        %v3387 = vshrl.u32 2475754826, %v3384
        %v3388 = vor.u32 %v3386, %v3387
        %v3389 = vshll.u32 2475754826, %v3383
        %v3390 = vshrl.u32 2131351028, %v3384
        %v3391 = vor.u32 %v3389, %v3390
        %v3392 = vshll.u32 2131351028, %v3383
        %v3393 = vshrl.u32 2102212464, %v3384
        %v3394 = vor.u32 %v3392, %v3393
        %v3395 = vshll.u32 2102212464, %v3383
        %v3396 = vshrl.u32 920167782, %v3384
        %v3397 = vor.u32 %v3395, %v3396
        %v3398 = vshll.u32 920167782, %v3383
        %v3399 = vshrl.u32 1326507024, %v3384
        %v3400 = vor.u32 %v3398, %v3399
        %vm3401 = vcmp.lt.s32.totalorder %v3382, 1
        %vm3402 = vcmp.lt.s32.totalorder %v3382, 2
        %vm3403 = vcmp.lt.s32.totalorder %v3382, 3
        %vm3404 = vcmp.lt.s32.totalorder %v3382, 4
        %v3405 = vsel %vm3401, %v3385, %v3388
        %v3406 = vsel %vm3404, %v3394, 2102212464
        %v3407 = vsel %vm3403, %v3391, %v3406
        %v3408 = vsel %vm3402, %v3405, %v3407
        %v3409 = vsel %vm3401, %v3388, %v3391
        %v3410 = vsel %vm3404, %v3397, 920167782
        %v3411 = vsel %vm3403, %v3394, %v3410
        %v3412 = vsel %vm3402, %v3409, %v3411
        %v3413 = vsel %vm3401, %v3391, %v3394
        %v3414 = vsel %vm3404, %v3400, 1326507024
        %v3415 = vsel %vm3403, %v3397, %v3414
        %v3416 = vsel %vm3402, %v3413, %v3415
        %v3417 = vshll.u32 %v3377, 8
        %v3418 = vand.u32 %v3417, 65535
        %v3419 = vshrl.u32 %v3417, 16
        %v3420 = vand.u32 %v3416, 65535
        %v3421 = vshrl.u32 %v3416, 16
        %v3422 = vmul.u32 %v3418, %v3420
        %v3423 = vmul.u32 %v3418, %v3421
        %v3424 = vmul.u32 %v3419, %v3420
        %v3425 = vmul.u32 %v3419, %v3421
        %v3426 = vshll.u32 %v3423, 16
        %v3427 = vshrl.u32 %v3423, 16
        %v3428 = vshll.u32 %v3424, 16
        %v3429 = vshrl.u32 %v3424, 16
        %vm3430 = vc.u32 %v3422, %v3426
        %v3431 = vsel %vm3430, 1, 0
        %v3432 = vadd.s32 %v3422, %v3426
        %v3433 = vadd.s32 %v3425, %v3431
        %vm3434 = vc.u32 %v3432, %v3428
        %v3435 = vsel %vm3434, 1, 0
        %v3436 = vadd.s32 %v3432, %v3428
        %v3437 = vadd.s32 %v3433, %v3435
        %v3438 = vadd.s32 %v3437, %v3427
        %v3439 = vadd.s32 %v3438, %v3429
        %v3440 = vand.u32 %v3417, 65535
        %v3441 = vshrl.u32 %v3417, 16
        %v3442 = vand.u32 %v3412, 65535
        %v3443 = vshrl.u32 %v3412, 16
        %v3444 = vmul.u32 %v3440, %v3442
        %v3445 = vmul.u32 %v3440, %v3443
        %v3446 = vmul.u32 %v3441, %v3442
        %v3447 = vmul.u32 %v3441, %v3443
        %v3448 = vshll.u32 %v3445, 16
        %v3449 = vshrl.u32 %v3445, 16
        %v3450 = vshll.u32 %v3446, 16
        %v3451 = vshrl.u32 %v3446, 16
        %vm3452 = vc.u32 %v3444, %v3448
        %v3453 = vsel %vm3452, 1, 0
        %v3454 = vadd.s32 %v3444, %v3448
        %v3455 = vadd.s32 %v3447, %v3453
        %vm3456 = vc.u32 %v3454, %v3450
        %v3457 = vsel %vm3456, 1, 0
        %v3458 = vadd.s32 %v3454, %v3450
        %v3459 = vadd.s32 %v3455, %v3457
        %v3460 = vadd.s32 %v3459, %v3449
        %v3461 = vadd.s32 %v3460, %v3451
        %v3462 = vmul.u32 %v3417, %v3408
        %v3463 = vadd.s32 %v3439, %v3458
        %vm3464 = vc.u32 %v3439, %v3458
        %v3465 = vadd.s32 %v3461, 1
        %v3466 = vsel %vm3464, %v3465, %v3461
        %v3467 = vadd.s32 %v3462, %v3466
        %v3468 = vadd.s32 %v3467, 536870912
        %v3469 = vshrl.u32 %v3468, 30
        %v3470 = vshll.u32 %v3469, 30
        %v3471 = vsub.s32 %v3467, %v3470
        %vm3472 = vcmp.lt.s32.totalorder %v3471, 0
        %v3473 = vsub.s32 0, %v3471
        %v3474 = vsel %vm3472, %v3473, %v3471
        %v3475 = vclz %v3474
        %v3476 = vsub.s32 %v3475, 2
        %vm3477 = vcmp.gt.s32.totalorder 0, %v3476
        %v3478 = vsel %vm3477, 0, %v3476
        %v3479 = vsub.s32 32, %v3478
        %v3480 = vshll.u32 %v3471, %v3478
        %v3481 = vshrl.u32 %v3463, %v3479
        %v3482 = vor.u32 %v3480, %v3481
        %v3483 = vsub.s32 4294967266, %v3478
        %v3484 = vadd.s32 %v3483, 127
        %v3485 = vshll.u32 %v3484, 23
        %v3486 = vor.u32 4788187, %v3485
        %v3487 = vand.u32 2147483647, %v3486
        %v3489 = vcvt.s32.f32 %v3482
        %v3490 = vmul.f32 %v3489, %v3487
        %v3491 = vxor.u32 %v3490, 2147483648
        %v3492 = vsel %vm3371, %v3491, %v3490
        %v3493 = vsub.s32 4, %v3469
        %v3494 = vsel %vm3371, %v3493, %v3469
        %v3495 = vsel %vm3370, %v2735, %v3492
        %v3496 = vsel %vm3370, 0, %v3494
        %v3497 = vmul.f32 %v3495, %v3495
        %v3498 = vmul.f32 %v3497, -0.001358992
        %v3499 = vadd.f32 %v3498, 0.041655596
        %v3500 = vmul.f32 %v3497, %v3499
        %v3501 = vadd.f32 %v3500, -0.4999988
        %v3502 = vmul.f32 %v3497, %v3501
        %v3503 = vadd.f32 1.0, %v3502
        %v3504 = vmul.f32 %v3495, %v3495
        %v3505 = vmul.f32 %v3504, -0.00019511016
        %v3506 = vadd.f32 %v3505, 0.008332121
        %v3507 = vmul.f32 %v3504, %v3506
        %v3508 = vadd.f32 %v3507, -0.16666654
        %v3509 = vmul.f32 %v3504, %v3508
        %v3510 = vadd.f32 %v3509, 1.0
        %v3511 = vmul.f32 %v3510, %v3495
        %vm3512 = vweird.f32 %v2735
        %v3513 = vadd.s32 %v3496, 3
        %v3514 = vand.u32 %v3513, 3
        %vm3515 = vcmp.lt.s32.totalorder %v3514, 2
        %vm3516 = vcmp.eq.s32.totalorder %v3514, 0
        %v3517 = vxor.u32 %v3511, 2147483648
        %v3518 = vsel %vm3516, %v3503, %v3517
        %vm3519 = vcmp.eq.s32.totalorder %v3514, 2
        %v3520 = vxor.u32 %v3503, 2147483648
        %v3521 = vsel %vm3519, %v3520, %v3511
        %v3522 = vsel %vm3515, %v3518, %v3521
        %v3523 = vsel %vm3512, nan, %v3522
        %v3524 = vand.u32 2147483647, %v2738
        %vm3525 = vcmp.le.f32.partialorder %v3524, 0.7853982
        %vm3526 = vcmp.lt.s32.totalorder %v2738, 0
        %v3527 = vand.u32 %v2738, 2139095040
        %v3528 = vshrl.u32 %v3527, 23
        %v3529 = vsub.s32 %v3528, 127
        %v3530 = vand.u32 2147483647, %v2738
        %v3531 = vand.u32 %v3530, 8388607
        %v3532 = vor.u32 %v3531, 8388608
        %v3533 = vsub.s32 0, %v3532
        %v3534 = vadd.s32 %v3529, 1
        %vm3535 = vcmp.gt.s32.totalorder %v3534, 0
        %v3536 = vsel %vm3535, %v3534, 0
        %v3537 = vshrl.u32 %v3536, 5
        %v3538 = vand.u32 %v3536, 31
        %v3539 = vsub.s32 32, %v3538
        %v3540 = vshrl.u32 683565275, %v3539
        %v3541 = vshll.u32 683565275, %v3538
        %v3542 = vshrl.u32 2475754826, %v3539
        %v3543 = vor.u32 %v3541, %v3542
        %v3544 = vshll.u32 2475754826, %v3538
        %v3545 = vshrl.u32 2131351028, %v3539
        %v3546 = vor.u32 %v3544, %v3545
        %v3547 = vshll.u32 2131351028, %v3538
        %v3548 = vshrl.u32 2102212464, %v3539
        %v3549 = vor.u32 %v3547, %v3548
        %v3550 = vshll.u32 2102212464, %v3538
        %v3551 = vshrl.u32 920167782, %v3539
        %v3552 = vor.u32 %v3550, %v3551
        %v3553 = vshll.u32 920167782, %v3538
        %v3554 = vshrl.u32 1326507024, %v3539
        %v3555 = vor.u32 %v3553, %v3554
        %vm3556 = vcmp.lt.s32.totalorder %v3537, 1
        %vm3557 = vcmp.lt.s32.totalorder %v3537, 2
        %vm3558 = vcmp.lt.s32.totalorder %v3537, 3
        %vm3559 = vcmp.lt.s32.totalorder %v3537, 4
        %v3560 = vsel %vm3556, %v3540, %v3543
        %v3561 = vsel %vm3559, %v3549, 2102212464
        %v3562 = vsel %vm3558, %v3546, %v3561
        %v3563 = vsel %vm3557, %v3560, %v3562
        %v3564 = vsel %vm3556, %v3543, %v3546
        %v3565 = vsel %vm3559, %v3552, 920167782
        %v3566 = vsel %vm3558, %v3549, %v3565
        %v3567 = vsel %vm3557, %v3564, %v3566
        %v3568 = vsel %vm3556, %v3546, %v3549
        %v3569 = vsel %vm3559, %v3555, 1326507024
        %v3570 = vsel %vm3558, %v3552, %v3569
        %v3571 = vsel %vm3557, %v3568, %v3570
        %v3572 = vshll.u32 %v3532, 8
        %v3573 = vand.u32 %v3572, 65535
        %v3574 = vshrl.u32 %v3572, 16
        %v3575 = vand.u32 %v3571, 65535
        %v3576 = vshrl.u32 %v3571, 16
        %v3577 = vmul.u32 %v3573, %v3575
        %v3578 = vmul.u32 %v3573, %v3576
        %v3579 = vmul.u32 %v3574, %v3575
        %v3580 = vmul.u32 %v3574, %v3576
        %v3581 = vshll.u32 %v3578, 16
        %v3582 = vshrl.u32 %v3578, 16
        %v3583 = vshll.u32 %v3579, 16
        %v3584 = vshrl.u32 %v3579, 16
        %vm3585 = vc.u32 %v3577, %v3581
        %v3586 = vsel %vm3585, 1, 0
        %v3587 = vadd.s32 %v3577, %v3581
        %v3588 = vadd.s32 %v3580, %v3586
        %vm3589 = vc.u32 %v3587, %v3583
        %v3590 = vsel %vm3589, 1, 0
        %v3591 = vadd.s32 %v3587, %v3583
        %v3592 = vadd.s32 %v3588, %v3590
        %v3593 = vadd.s32 %v3592, %v3582
        %v3594 = vadd.s32 %v3593, %v3584
        %v3595 = vand.u32 %v3572, 65535
        %v3596 = vshrl.u32 %v3572, 16
        %v3597 = vand.u32 %v3567, 65535
        %v3598 = vshrl.u32 %v3567, 16
        %v3599 = vmul.u32 %v3595, %v3597
        %v3600 = vmul.u32 %v3595, %v3598
        %v3601 = vmul.u32 %v3596, %v3597
        %v3602 = vmul.u32 %v3596, %v3598
        %v3603 = vshll.u32 %v3600, 16
        %v3604 = vshrl.u32 %v3600, 16
        %v3605 = vshll.u32 %v3601, 16
        %v3606 = vshrl.u32 %v3601, 16
        %vm3607 = vc.u32 %v3599, %v3603
        %v3608 = vsel %vm3607, 1, 0
        %v3609 = vadd.s32 %v3599, %v3603
        %v3610 = vadd.s32 %v3602, %v3608
        %vm3611 = vc.u32 %v3609, %v3605
        %v3612 = vsel %vm3611, 1, 0
        %v3613 = vadd.s32 %v3609, %v3605
        %v3614 = vadd.s32 %v3610, %v3612
        %v3615 = vadd.s32 %v3614, %v3604
        %v3616 = vadd.s32 %v3615, %v3606
        %v3617 = vmul.u32 %v3572, %v3563
        %v3618 = vadd.s32 %v3594, %v3613
        %vm3619 = vc.u32 %v3594, %v3613
        %v3620 = vadd.s32 %v3616, 1
        %v3621 = vsel %vm3619, %v3620, %v3616
        %v3622 = vadd.s32 %v3617, %v3621
        %v3623 = vadd.s32 %v3622, 536870912
        %v3624 = vshrl.u32 %v3623, 30
        %v3625 = vshll.u32 %v3624, 30
        %v3626 = vsub.s32 %v3622, %v3625
        %vm3627 = vcmp.lt.s32.totalorder %v3626, 0
        %v3628 = vsub.s32 0, %v3626
        %v3629 = vsel %vm3627, %v3628, %v3626
        %v3630 = vclz %v3629
        %v3631 = vsub.s32 %v3630, 2
        %vm3632 = vcmp.gt.s32.totalorder 0, %v3631
        %v3633 = vsel %vm3632, 0, %v3631
        %v3634 = vsub.s32 32, %v3633
        %v3635 = vshll.u32 %v3626, %v3633
        %v3636 = vshrl.u32 %v3618, %v3634
        %v3637 = vor.u32 %v3635, %v3636
        %v3638 = vsub.s32 4294967266, %v3633
        %v3639 = vadd.s32 %v3638, 127
        %v3640 = vshll.u32 %v3639, 23
        %v3641 = vor.u32 4788187, %v3640
        %v3642 = vand.u32 2147483647, %v3641
        %v3644 = vcvt.s32.f32 %v3637
        %v3645 = vmul.f32 %v3644, %v3642
        %v3646 = vxor.u32 %v3645, 2147483648
        %v3647 = vsel %vm3526, %v3646, %v3645
        %v3648 = vsub.s32 4, %v3624
        %v3649 = vsel %vm3526, %v3648, %v3624
        %v3650 = vsel %vm3525, %v2738, %v3647
        %v3651 = vsel %vm3525, 0, %v3649
        %v3652 = vmul.f32 %v3650, %v3650
        %v3653 = vmul.f32 %v3652, -0.001358992
        %v3654 = vadd.f32 %v3653, 0.041655596
        %v3655 = vmul.f32 %v3652, %v3654
        %v3656 = vadd.f32 %v3655, -0.4999988
        %v3657 = vmul.f32 %v3652, %v3656
        %v3658 = vadd.f32 1.0, %v3657
        %v3659 = vmul.f32 %v3650, %v3650
        %v3660 = vmul.f32 %v3659, -0.00019511016
        %v3661 = vadd.f32 %v3660, 0.008332121
        %v3662 = vmul.f32 %v3659, %v3661
        %v3663 = vadd.f32 %v3662, -0.16666654
        %v3664 = vmul.f32 %v3659, %v3663
        %v3665 = vadd.f32 %v3664, 1.0
        %v3666 = vmul.f32 %v3665, %v3650
        %vm3667 = vweird.f32 %v2738
        %v3668 = vadd.s32 %v3651, 3
        %v3669 = vand.u32 %v3668, 3
        %vm3670 = vcmp.lt.s32.totalorder %v3669, 2
        %vm3671 = vcmp.eq.s32.totalorder %v3669, 0
        %v3672 = vxor.u32 %v3666, 2147483648
        %v3673 = vsel %vm3671, %v3658, %v3672
        %vm3674 = vcmp.eq.s32.totalorder %v3669, 2
        %v3675 = vxor.u32 %v3658, 2147483648
        %v3676 = vsel %vm3674, %v3675, %v3666
        %v3677 = vsel %vm3670, %v3673, %v3676
        %v3678 = vsel %vm3667, nan, %v3677
        %v3679 = vmul.f32 %v2746, %v3368
        %v3680 = vmul.f32 %v2747, %v3523
        %v3681 = vmul.f32 %v2748, %v3678
        %v3682 = vld [vmem:[#allocation22] sm:$0xff]
        %v3683 = vld [vmem:[#allocation22 + $0x8] sm:$0xff]
        %v3684 = vld [vmem:[#allocation22 + $0x10] sm:$0xff]
        %v3685 = vld [vmem:[#allocation22 + $0x18] sm:$0xff]
        %v3686 = vld [vmem:[#allocation22 + $0x20] sm:$0xff]
        %v3687 = vld [vmem:[#allocation22 + $0x28] sm:$0xff]
        %v3688 = vld [vmem:[#allocation22 + $0x30] sm:$0xff]
        %v3689 = vld [vmem:[#allocation22 + $0x38] sm:$0xff]
        %v3690 = vld [vmem:[%s67] sm:$0xff]
        %v3691 = vld [vmem:[%s67 + $0x8] sm:$0xff]
        %v3692 = vld [vmem:[%s67 + $0x10] sm:$0xff]
        %v3693 = vld [vmem:[%s67 + $0x18] sm:$0xff]
        %v3694 = vld [vmem:[%s67 + $0x20] sm:$0xff]
        %v3695 = vld [vmem:[%s67 + $0x28] sm:$0xff]
        %v3696 = vld [vmem:[%s67 + $0x30] sm:$0xff]
        %v3697 = vld [vmem:[%s67 + $0x38] sm:$0xff]
        %v3699 = vsel %vm1336, %v3679, 0
        %v3702 = vsel %vm1336, %v3680, 0
        %v3705 = vsel %vm1336, %v3681, 0
        %3707 = vmatpush.msra.mxu0 0.0
        %3708 = vmatpush.msra.mxu0 0.0
        %3709 = vmatpush.msra.mxu0 0.0
        %3710 = vmatpush.msra.mxu0 0.0
        %3711 = vmatpush.msra.mxu0 0.0
        %3712 = vmatpush.msra.mxu0 0.0
        %3713 = vmatpush.msra.mxu0 0.0
        %3714 = vmatpush.msra.mxu0 0.0
        %3715 = vmatpush.msra.mxu0 %v3697
        %3716 = vmatpush.msra.mxu0 %v3696
        %3717 = vmatpush.msra.mxu0 %v3695
        %3718 = vmatpush.msra.mxu0 %v3694
        %3719 = vmatpush.msra.mxu0 %v3693
        %3720 = vmatpush.msra.mxu0 %v3692
        %3721 = vmatpush.msra.mxu0 %v3691
        %3722 = vmatpush.msra.mxu0 %v3690
        %3723 = vmatmul.f32.gmra.mxu0 %v3699
        %v3724 = vpop.f32.mrf.mxu0
        %v3725 = vadd.f32 0.0, %v3724
        %3726 = vmatmul.f32.gmra.mxu0 %v3702
        %v3727 = vpop.f32.mrf.mxu0
        %v3728 = vadd.f32 0.0, %v3727
        %3729 = vmatmul.f32.gmra.mxu0 %v3705
        %v3730 = vpop.f32.mrf.mxu0
        %v3731 = vadd.f32 0.0, %v3730
        %3732 = vdwg.mxu0
        %v3734 = vsel %vm1336, %v3211, 0
        %v3737 = vsel %vm1336, %v3212, 0
        %v3740 = vsel %vm1336, %v3213, 0
        %3742 = vmatpush.msra.mxu0 0.0
        %3743 = vmatpush.msra.mxu0 0.0
        %3744 = vmatpush.msra.mxu0 0.0
        %3745 = vmatpush.msra.mxu0 0.0
        %3746 = vmatpush.msra.mxu0 0.0
        %3747 = vmatpush.msra.mxu0 0.0
        %3748 = vmatpush.msra.mxu0 0.0
        %3749 = vmatpush.msra.mxu0 0.0
        %3750 = vmatpush.msra.mxu0 %v3689
        %3751 = vmatpush.msra.mxu0 %v3688
        %3752 = vmatpush.msra.mxu0 %v3687
        %3753 = vmatpush.msra.mxu0 %v3686
        %3754 = vmatpush.msra.mxu0 %v3685
        %3755 = vmatpush.msra.mxu0 %v3684
        %3756 = vmatpush.msra.mxu0 %v3683
        %3757 = vmatpush.msra.mxu0 %v3682
        %3758 = vmatmul.f32.gmra.mxu0 %v3734
        %v3759 = vpop.f32.mrf.mxu0
        %v3760 = vadd.f32 %v3725, %v3759
        %3761 = vmatmul.f32.gmra.mxu0 %v3737
        %v3762 = vpop.f32.mrf.mxu0
        %v3763 = vadd.f32 %v3728, %v3762
        %3764 = vmatmul.f32.gmra.mxu0 %v3740
        %v3765 = vpop.f32.mrf.mxu0
        %v3766 = vadd.f32 %v3731, %v3765
        %3767 = vdwg.mxu0
        %3768 = vst.msk [vmem:[#allocation4] sm:$0xff] %vm1316, 0.0
        %3769 = vst.msk [vmem:[#allocation4 + $0x8] sm:$0xff] %vm1316, 0.0
        %vm3770 = vcmask 125952
        %3771 = vst.msk [vmem:[#allocation4 + $0x10] sm:$0xf] %vm3770, 0.0
        %v3772 = vld [vmem:[#allocation4] sm:$0xff]
        %v3773 = vld [vmem:[#allocation4 + $0x8] sm:$0xff]
        %v3774 = vld [vmem:[#allocation4 + $0x10] sm:$0x1]
        %v3775 = vadd.f32 %v3772, %v3760
        %v3776 = vadd.f32 %v3773, %v3763
        %v3777 = vadd.f32 %v3774, %v3766
        %3778 = vst.msk [vmem:[#allocation4] sm:$0xff] %vm1316, %v3775
        %3779 = vst.msk [vmem:[#allocation4 + $0x8] sm:$0xff] %vm1316, %v3776
        %vm3780 = vcmask 122880
        %3781 = vst.msk [vmem:[#allocation4 + $0x10] sm:$0x1] %vm3780, %v3777
        %v3782 = vld [vmem:[#allocation4 + $0x1] sm:$0xff]
        %v3783 = vld [vmem:[#allocation4 + $0x9] sm:$0xff]
        %v3784 = vld [vmem:[#allocation4 + $0x11] sm:$0x1]
        %3788 = vrot.lane.b32.xlu0 %v3760, 112
        %v3789 = vpop.permute.xlu0 %3788
        %3790 = vrot.lane.b32.xlu0 %v3763, 112
        %v3791 = vpop.permute.xlu0 %3790
        %3792 = vrot.lane.b32.xlu0 %v3766, 112
        %v3793 = vpop.permute.xlu0 %3792
        %v3797 = vadd.f32 %v3782, %v3789
        %v3798 = vadd.f32 %v3783, %v3791
        %v3799 = vadd.f32 %v3784, %v3793
        %3800 = vst.msk [vmem:[#allocation4 + $0x1] sm:$0xff] %vm1316, %v3797
        %3801 = vst.msk [vmem:[#allocation4 + $0x9] sm:$0xff] %vm1316, %v3798
        %3802 = vst.msk [vmem:[#allocation4 + $0x11] sm:$0x1] %vm3780, %v3799
        %v3803 = vld [vmem:[#allocation4 + $0x2] sm:$0xff]
        %v3804 = vld [vmem:[#allocation4 + $0xa] sm:$0xff]
        %v3805 = vld [vmem:[#allocation4 + $0x12] sm:$0x1]
        %3806 = vrot.lane.b32.xlu0 %v3760, 96
        %v3807 = vpop.permute.xlu0 %3806
        %3808 = vrot.lane.b32.xlu0 %v3763, 96
        %v3809 = vpop.permute.xlu0 %3808
        %3810 = vrot.lane.b32.xlu0 %v3766, 96
        %v3811 = vpop.permute.xlu0 %3810
        %v3815 = vadd.f32 %v3803, %v3807
        %v3816 = vadd.f32 %v3804, %v3809
        %v3817 = vadd.f32 %v3805, %v3811
        %3818 = vst.msk [vmem:[#allocation4 + $0x2] sm:$0xff] %vm1316, %v3815
        %3819 = vst.msk [vmem:[#allocation4 + $0xa] sm:$0xff] %vm1316, %v3816
        %3820 = vst.msk [vmem:[#allocation4 + $0x12] sm:$0x1] %vm3780, %v3817
        %v3821 = vld [vmem:[#allocation4 + $0x3] sm:$0xff]
        %v3822 = vld [vmem:[#allocation4 + $0xb] sm:$0xff]
        %v3823 = vld [vmem:[#allocation4 + $0x13] sm:$0x1]
        %3824 = vrot.lane.b32.xlu0 %v3760, 80
        %v3825 = vpop.permute.xlu0 %3824
        %3826 = vrot.lane.b32.xlu0 %v3763, 80
        %v3827 = vpop.permute.xlu0 %3826
        %3828 = vrot.lane.b32.xlu0 %v3766, 80
        %v3829 = vpop.permute.xlu0 %3828
        %v3833 = vadd.f32 %v3821, %v3825
        %v3834 = vadd.f32 %v3822, %v3827
        %v3835 = vadd.f32 %v3823, %v3829
        %3836 = vst.msk [vmem:[#allocation4 + $0x3] sm:$0xff] %vm1316, %v3833
        %3837 = vst.msk [vmem:[#allocation4 + $0xb] sm:$0xff] %vm1316, %v3834
        %3838 = vst.msk [vmem:[#allocation4 + $0x13] sm:$0x1] %vm3780, %v3835
        %v3839 = vld [vmem:[#allocation4 + $0x2] sm:$0xff]
        %v3840 = vld [vmem:[#allocation4 + $0xa] sm:$0xff]
        %v3841 = vld [vmem:[%s69] sm:$0xff]
        %v3842 = vld [vmem:[%s69 + $0x8] sm:$0xff]
        %v3843 = vmul.f32 %v3839, %v3841
        %v3844 = vmul.f32 %v3840, %v3842
        %3845 = vst.msk [vmem:[%s1267] sm:$0xff] %vm1316, %v3843
        %3846 = vst.msk [vmem:[%s1267 + $0x8] sm:$0xff] %vm1316, %v3844
        %p3847 = scmp.lt.s32.totalorder %s89, 1
        %s3848 = scalar_select %p3847, %s89, 1
        %s3849 = smul.addr %s3848, 2
        %s3850 = smul.addr %s3849, 8
        %s3851 = scalar_lea.vmem %s71, %s3850
        // Predicated region
        $region209: #{forward.1} parent=159 // pred_check
          %p3852 = pneg %p847
        $region210: #{forward.1} parent=159 // pred_check_branch
          %3854 = sbr.rel (%p3852) target = $region212
        $region211: #{forward.1} parent=159 // pred_region
          _
        $region212: #{forward.1} parent=159 // pred_fallthru
          _
      $region160: #{forward.1} parent=5 // pred_fallthru
        _
      %p3855 = scmp.le.s32.totalorder 2, %s84
      // Predicated region
      $region213: #{forward.1} parent=5 // pred_check
        %p3856 = pneg %p3855
      $region214: #{forward.1} parent=5 // pred_check_branch
        %3858 = sbr.rel (%p3856) target = $region216
      $region215: #{forward.1} parent=5 // pred_region
        %s3859 = ssub.s32 %s84, 2
        // Predicated region
        $region217: #{forward.1} parent=215 // pred_check
          %p3860 = pneg %p853
        $region218: #{forward.1} parent=215 // pred_check_branch
          %3862 = sbr.rel (%p3860) target = $region220
        $region219: #{forward.1} parent=215 // pred_region
          %p3863 = scmp.lt.s32.totalorder %s90, 1
          %s3864 = scalar_select %p3863, %s90, 1
          %s3865 = smul.addr %s3864, 2
          %s3866 = smul.addr %s3865, 8
          %s3867 = scalar_lea.vmem %s71, %s3866
        $region220: #{forward.1} parent=215 // pred_fallthru
          _
      $region216: #{forward.1} parent=5 // pred_fallthru
        _
    $region6: #{forward.1} parent=1 // loop_footer
      %s88 = sadd.s32 1, %s84
    $region7: #{forward.1} parent=1 // loop_footer_branch
      %83 = sbr.rel target = $region3
    $region8: #{forward.1} parent=1 // loop_exit
      _
    %3868 = vsyncpa [#allocation6], 1
    %s3869 = scalar_lea.sflag [#allocation6], 1
    %3870 = vsyncpa %s3869, 1
    %3871 = vsyncpa [#allocation8], 1
    %3872 = vsyncpa [#allocation11], 1
    %3873 = vsyncpa [#allocation14], 1
    %3874 = vsyncpa [#allocation17], 1
    %3875 = vsyncpa [#allocation20], 1
    %3876 = vsyncpa [#allocation23], 1

</llo_original>
